<compile_context>
chip_gen: v6e
topology: v6e:2x2x1
jax: 0.10.0
libtpu: 0.0.40
codegen_flags: <defaults>
</compile_context>

<pallas_src>
import functools

import jax
import jax.numpy as jnp
import numpy as np
from jax.experimental import pallas as pl
from jax.experimental.pallas import tpu as pltpu


def _attention_conv2d_kernel(
    h_ref,      # (NB, C, H, W)  Height block                        (VMEM)
    p_ref,      # (NB, C, H, W)  Pillars block                       (VMEM)
    wa_ref,     # (9*C*Ch,)  conv_a weights, order (ky,kx,ci,co)     (SMEM)
    ba_ref,     # (Ch,)      conv_a bias                             (SMEM)
    wb_ref,     # (9*C*Ch,)  conv_b weights                          (SMEM)
    bb_ref,     # (Ch,)      conv_b bias                             (SMEM)
    w1_ref,     # (C,)       conv_1_1 weights                        (SMEM)
    watt_ref,   # (27,)      attention conv weights (ky,kx,c)        (SMEM)
    sc_ref,     # (8,) [b1, bn_scale, bn_shift, b_att, sH, sP, 0, 0] (SMEM)
    out_ref,    # (NB, C, H, W)                                      (VMEM)
    hp_ref,     # scratch (C, H+2, NB*(W+2))  packed padded Height   (VMEM)
    pp_ref,     # scratch (C, H+2, NB*(W+2))  packed padded Pillars  (VMEM)
    f_ref,      # scratch (3, H+2, NB*(W+2))  packed padded fusion   (VMEM)
    *, C, H, W, NB):
  Ch = C // 2
  Wseg = W + 2                 # per-batch-segment padded width
  Wp = NB * Wseg               # packed (lane-axis) padded width
  X = Wp - 2                   # packed accumulator width

  # ---- build zero-padded, batch-packed planes in VMEM ----------------------
  # Each batch element owns one (H+2, W+2) column segment on the lane axis so
  # a single (H, X)-wide vector op processes the whole batch block at once.
  # Zeroing is per-step (tiny), so it stays correct with "parallel" semantics.
  hp_ref[...] = jnp.zeros(hp_ref.shape, jnp.float32)
  pp_ref[...] = jnp.zeros(pp_ref.shape, jnp.float32)
  f_ref[...] = jnp.zeros(f_ref.shape, jnp.float32)
  for b in range(NB):
    c0 = b * Wseg
    for ci in range(C):
      hp_ref[ci, 1:H + 1, c0 + 1:c0 + 1 + W] = h_ref[b, ci]
      pp_ref[ci, 1:H + 1, c0 + 1:c0 + 1 + W] = p_ref[b, ci]

  # Lane mask that zeroes the per-segment halo columns, so the 3x3 attention
  # conv later sees proper zero padding between packed batch segments.
  col = jax.lax.broadcasted_iota(jnp.int32, (1, X), 1) + 1     # packed col id
  seg_col = col % Wseg
  interior = jnp.logical_and(seg_col >= 1, seg_col <= W)
  mask = jnp.where(interior, 1.0, 0.0).astype(jnp.float32)     # (1, X)

  # ---- conv_a / conv_b : 3x3, stride 1, pad 1, C -> C/2 --------------------
  acc_h = [jnp.zeros((H, X), jnp.float32) + ba_ref[co] for co in range(Ch)]
  acc_p = [jnp.zeros((H, X), jnp.float32) + bb_ref[co] for co in range(Ch)]
  for ci in range(C):
    # Hoist the cross-lane (dx) shifts: 3 lane slices per channel instead of
    # 9; the dy taps are sublane-only sub-slices of the in-register windows.
    h_dx = [hp_ref[ci, :, dx:dx + X] for dx in range(3)]
    p_dx = [pp_ref[ci, :, dx:dx + X] for dx in range(3)]
    for dx in range(3):
      for dy in range(3):
        hw = h_dx[dx][dy:dy + H, :]
        pw = p_dx[dx][dy:dy + H, :]
        base = ((dy * 3 + dx) * C + ci) * Ch
        for co in range(Ch):
          acc_h[co] = acc_h[co] + wa_ref[base + co] * hw
          acc_p[co] = acc_p[co] + wb_ref[base + co] * pw

  # Cat_HP channel order: [Height_x channels, Pillars_x channels]
  planes = acc_h + acc_p

  # ---- conv_1_1 (1x1 conv) + inference BatchNorm (folded scale/shift) ------
  catt = jnp.zeros((H, X), jnp.float32) + sc_ref[0]            # conv_1_1 bias
  for c in range(C):
    catt = catt + w1_ref[c] * planes[c]
  catt = catt * sc_ref[1] + sc_ref[2]                          # BN: x*s + t

  # ---- channel-wise max / mean of Cat_HP -----------------------------------
  maxc = planes[0]
  sumc = planes[0]
  for c in range(1, C):
    maxc = jnp.maximum(maxc, planes[c])
    sumc = sumc + planes[c]
  meanc = sumc * (1.0 / C)

  # ---- masked write of the fusion planes into the zero-halo scratch --------
  f_ref[0, 1:H + 1, 1:1 + X] = catt * mask
  f_ref[1, 1:H + 1, 1:1 + X] = maxc * mask
  f_ref[2, 1:H + 1, 1:1 + X] = meanc * mask

  # ---- _conv_attention_a : 3x3, pad 1, 3 -> 1 ------------------------------
  attn = jnp.zeros((H, X), jnp.float32) + sc_ref[3]            # attention bias
  for c in range(3):
    f_dx = [f_ref[c, :, dx:dx + X] for dx in range(3)]
    for dx in range(3):
      for dy in range(3):
        attn = attn + watt_ref[(dy * 3 + dx) * 3 + c] * f_dx[dx][dy:dy + H, :]

  # attention_maps_H and attention_maps_P use the same conv -> same map.
  sig = jax.nn.sigmoid(attn)
  gate_h = 1.0 + sc_ref[4] * sig        # 1 + scale_H * sigmoid(att)
  gate_p = 1.0 + sc_ref[5] * sig        # 1 + scale_P * sigmoid(att)

  gh = [gate_h * acc_h[co] for co in range(Ch)]
  gp = [gate_p * acc_p[co] for co in range(Ch)]

  # ---- unpack batch segments and store (concat order [H, P]) ---------------
  for b in range(NB):
    c0 = b * Wseg
    for co in range(Ch):
      out_ref[b, co] = gh[co][:, c0:c0 + W]
      out_ref[b, Ch + co] = gp[co][:, c0:c0 + W]


def _pick_batch_block(N, W):
  """Largest divisor of N whose packed padded width fits one 128-lane tile."""
  nb = 1
  for cand in range(1, N + 1):
    if N % cand == 0 and cand * (W + 2) <= 128:
      nb = cand
  return nb


def attention_conv2d(height, pillars, params, *, batch_block=None):
  """Pallas implementation of AttentionConv2D.forward (NCHW in / NCHW out)."""
  N, C, H, W = height.shape
  eps = 1e-5

  NB = batch_block if batch_block is not None else _pick_batch_block(N, W)
  assert N % NB == 0, "batch block must divide N"
  G = N // NB
  Wp = NB * (W + 2)

  # Flatten weights into the scalar order used by the kernel.
  # PyTorch conv weight layout is (out, in, kH, kW) -> (kH, kW, in, out).
  wa = jnp.transpose(params["wa"], (2, 3, 1, 0)).reshape(-1).astype(jnp.float32)
  wb = jnp.transpose(params["wb"], (2, 3, 1, 0)).reshape(-1).astype(jnp.float32)
  w1 = params["w1"].reshape(-1).astype(jnp.float32)                 # (C,)
  watt = jnp.transpose(params["watt"][0], (1, 2, 0)).reshape(-1)    # (27,)
  watt = watt.astype(jnp.float32)

  bn_scale = params["bn_gamma"] / jnp.sqrt(params["bn_var"] + eps)
  bn_shift = params["bn_beta"] - params["bn_mean"] * bn_scale
  scalars = jnp.stack([
      params["b1"][0], bn_scale[0], bn_shift[0], params["batt"][0],
      params["scale_H"], params["scale_P"],
      jnp.float32(0.0), jnp.float32(0.0),
  ]).astype(jnp.float32)

  kernel = functools.partial(_attention_conv2d_kernel, C=C, H=H, W=W, NB=NB)
  smem = pl.BlockSpec(memory_space=pltpu.MemorySpace.SMEM)

  return pl.pallas_call(
      kernel,
      out_shape=jax.ShapeDtypeStruct((N, C, H, W), jnp.float32),
      grid=(G,),
      in_specs=[
          pl.BlockSpec((NB, C, H, W), lambda g: (g, 0, 0, 0)),
          pl.BlockSpec((NB, C, H, W), lambda g: (g, 0, 0, 0)),
          smem, smem, smem, smem, smem, smem, smem,
      ],
      out_specs=pl.BlockSpec((NB, C, H, W), lambda g: (g, 0, 0, 0)),
      scratch_shapes=[
          pltpu.VMEM((C, H + 2, Wp), jnp.float32),   # packed padded Height
          pltpu.VMEM((C, H + 2, Wp), jnp.float32),   # packed padded Pillars
          pltpu.VMEM((3, H + 2, Wp), jnp.float32),   # packed padded fusion
      ],
      compiler_params=pltpu.CompilerParams(
          dimension_semantics=("parallel",)),
  )(height, pillars, wa, params["ba"], wb, params["bb"], w1, watt, scalars)


def init_params(key, C):
  """Deterministic synthetic parameters matching the module's __init__ shapes."""
  Ch = C // 2
  ks = jax.random.split(key, 8)

  def u(k, shape, fan_in):
    bound = 1.0 / np.sqrt(fan_in)
    return jax.random.uniform(k, shape, jnp.float32, -bound, bound)

  params = dict(
      wa=u(ks[0], (Ch, C, 3, 3), C * 9),     # _conv_a
      ba=u(ks[1], (Ch,), C * 9),
      wb=u(ks[2], (Ch, C, 3, 3), C * 9),     # _conv_b
      bb=u(ks[3], (Ch,), C * 9),
      w1=u(ks[4], (1, C, 1, 1), C),          # conv_1_1
      b1=u(ks[5], (1,), C),
      watt=u(ks[6], (1, 3, 3, 3), 3 * 9),    # _conv_attention_a
      batt=u(ks[7], (1,), 3 * 9),
      bn_gamma=jnp.ones((1,), jnp.float32),  # BatchNorm2d(1), inference mode
      bn_beta=jnp.zeros((1,), jnp.float32),
      bn_mean=jnp.zeros((1,), jnp.float32),
      bn_var=jnp.ones((1,), jnp.float32),
      scale_H=jnp.float32(1.0),
      scale_P=jnp.float32(1.0),
  )
  # init_attention_weight(): abs() on input channels [3:] of a 3-in-channel
  # conv is an empty slice -> no-op, nothing to replicate.
  return params


def ref_forward(height, pillars, p):
  """Pure-JAX reference (mirrors the PyTorch forward) for validation."""
  def conv(x, w, b, pad):
    y = jax.lax.conv_general_dilated(
        x, w, window_strides=(1, 1), padding=[(pad, pad), (pad, pad)],
        dimension_numbers=("NCHW", "OIHW", "NCHW"))
    return y + b[None, :, None, None]

  eps = 1e-5
  hx = conv(height, p["wa"], p["ba"], 1)
  px = conv(pillars, p["wb"], p["bb"], 1)
  cat = jnp.concatenate([hx, px], axis=1)
  catt = conv(cat, p["w1"], p["b1"], 0)
  catt = (catt - p["bn_mean"][None, :, None, None]) / jnp.sqrt(
      p["bn_var"][None, :, None, None] + eps) \
      * p["bn_gamma"][None, :, None, None] + p["bn_beta"][None, :, None, None]
  maxc = jnp.max(cat, axis=1, keepdims=True)
  meanc = jnp.mean(cat, axis=1, keepdims=True)
  fus = jnp.concatenate([catt, maxc, meanc], axis=1)
  att = conv(fus, p["watt"], p["batt"], 1)
  sig = jax.nn.sigmoid(att)
  hx2 = (1.0 + p["scale_H"] * sig) * hx
  px2 = (1.0 + p["scale_P"] * sig) * px
  return jnp.concatenate([hx2, px2], axis=1)


if __name__ == "__main__":
  key = jax.random.PRNGKey(0)
  k_param, k_h, k_p = jax.random.split(key, 3)

  N, C, H, W = 2, 4, 16, 16          # small synthetic shapes (in_channels=4)
  params = init_params(k_param, C)
  height = jax.random.normal(k_h, (N, C, H, W), jnp.float32)
  pillars = jax.random.normal(k_p, (N, C, H, W), jnp.float32)

  out = attention_conv2d(height, pillars, params)
  out = jax.block_until_ready(out)

  ref = jax.block_until_ready(ref_forward(height, pillars, params))
  assert out.shape == (N, C, H, W)
  np.testing.assert_allclose(np.asarray(out), np.asarray(ref),
                             rtol=1e-4, atol=1e-4)
  print("KERNEL_OK")
</pallas_src>

<mosaic_0001>
module attributes {stable_mosaic.version = 11 : i64} {
  func.func @_attention_conv2d_kernel(%arg0: i32, %arg1: memref<2x4x16x16xf32, #tpu.memory_space<vmem>>, %arg2: memref<2x4x16x16xf32, #tpu.memory_space<vmem>>, %arg3: memref<72xf32, #tpu.memory_space<smem>>, %arg4: memref<2xf32, #tpu.memory_space<smem>>, %arg5: memref<72xf32, #tpu.memory_space<smem>>, %arg6: memref<2xf32, #tpu.memory_space<smem>>, %arg7: memref<4xf32, #tpu.memory_space<smem>>, %arg8: memref<27xf32, #tpu.memory_space<smem>>, %arg9: memref<8xf32, #tpu.memory_space<smem>>, %arg10: memref<2x4x16x16xf32, #tpu.memory_space<vmem>>, %arg11: memref<4x18x36xf32, #tpu.memory_space<vmem>>, %arg12: memref<4x18x36xf32, #tpu.memory_space<vmem>>, %arg13: memref<3x18x36xf32, #tpu.memory_space<vmem>>) attributes {dimension_semantics = [#tpu.dimension_semantics<parallel>], iteration_bounds = array<i64: 1>, scalar_prefetch = 0 : i64, scratch_operands = 3 : i64, tpu.core_type = #tpu.core_type<tc>, window_params = [{transform_indices = @transform_0, window_bounds = array<i64: 2, 4, 16, 16>}, {transform_indices = @transform_1, window_bounds = array<i64: 2, 4, 16, 16>}, {transform_indices = @transform_2, window_bounds = array<i64: 72>}, {transform_indices = @transform_3, window_bounds = array<i64: 2>}, {transform_indices = @transform_4, window_bounds = array<i64: 72>}, {transform_indices = @transform_5, window_bounds = array<i64: 2>}, {transform_indices = @transform_6, window_bounds = array<i64: 4>}, {transform_indices = @transform_7, window_bounds = array<i64: 27>}, {transform_indices = @transform_8, window_bounds = array<i64: 8>}, {transform_indices = @transform_9, window_bounds = array<i64: 2, 4, 16, 16>}]} {
    %cst = arith.constant 0.000000e+00 : f32
    %0 = vector.broadcast %cst : f32 to vector<4x18x36xf32>
    %c0 = arith.constant 0 : index
    %c0_0 = arith.constant 0 : index
    %c0_1 = arith.constant 0 : index
    %1 = vector.load %arg11[%c0, %c0_0, %c0_1] : memref<4x18x36xf32, #tpu.memory_space<vmem>>, vector<4x18x36xf32>
    tpu.vector_store %arg11[%c0, %c0_0, %c0_1], %0 {strides = array<i32>} : memref<4x18x36xf32, #tpu.memory_space<vmem>>, vector<4x18x36xf32>,
    %cst_2 = arith.constant 0.000000e+00 : f32
    %2 = vector.broadcast %cst_2 : f32 to vector<4x18x36xf32>
    %c0_3 = arith.constant 0 : index
    %c0_4 = arith.constant 0 : index
    %c0_5 = arith.constant 0 : index
    %3 = vector.load %arg12[%c0_3, %c0_4, %c0_5] : memref<4x18x36xf32, #tpu.memory_space<vmem>>, vector<4x18x36xf32>
    tpu.vector_store %arg12[%c0_3, %c0_4, %c0_5], %2 {strides = array<i32>} : memref<4x18x36xf32, #tpu.memory_space<vmem>>, vector<4x18x36xf32>,
    %cst_6 = arith.constant 0.000000e+00 : f32
    %4 = vector.broadcast %cst_6 : f32 to vector<3x18x36xf32>
    %c0_7 = arith.constant 0 : index
    %c0_8 = arith.constant 0 : index
    %c0_9 = arith.constant 0 : index
    %5 = vector.load %arg13[%c0_7, %c0_8, %c0_9] : memref<3x18x36xf32, #tpu.memory_space<vmem>>, vector<3x18x36xf32>
    tpu.vector_store %arg13[%c0_7, %c0_8, %c0_9], %4 {strides = array<i32>} : memref<3x18x36xf32, #tpu.memory_space<vmem>>, vector<3x18x36xf32>,
    %c0_10 = arith.constant 0 : index
    %c0_11 = arith.constant 0 : index
    %c0_12 = arith.constant 0 : index
    %c0_13 = arith.constant 0 : index
    %6 = vector.load %arg1[%c0_10, %c0_11, %c0_12, %c0_13] : memref<2x4x16x16xf32, #tpu.memory_space<vmem>>, vector<1x1x16x16xf32>
    %7 = vector.shape_cast %6 : vector<1x1x16x16xf32> to vector<16x16xf32>
    %c0_14 = arith.constant 0 : index
    %c1 = arith.constant 1 : index
    %c1_15 = arith.constant 1 : index
    %8 = vector.load %arg11[%c0_14, %c1, %c1_15] : memref<4x18x36xf32, #tpu.memory_space<vmem>>, vector<1x16x16xf32>
    %9 = vector.shape_cast %8 : vector<1x16x16xf32> to vector<16x16xf32>
    %10 = vector.shape_cast %7 : vector<16x16xf32> to vector<1x16x16xf32>
    tpu.vector_store %arg11[%c0_14, %c1, %c1_15], %10 {strides = array<i32>} : memref<4x18x36xf32, #tpu.memory_space<vmem>>, vector<1x16x16xf32>,
    %c0_16 = arith.constant 0 : index
    %c0_17 = arith.constant 0 : index
    %c0_18 = arith.constant 0 : index
    %c0_19 = arith.constant 0 : index
    %11 = vector.load %arg2[%c0_16, %c0_17, %c0_18, %c0_19] : memref<2x4x16x16xf32, #tpu.memory_space<vmem>>, vector<1x1x16x16xf32>
    %12 = vector.shape_cast %11 : vector<1x1x16x16xf32> to vector<16x16xf32>
    %c0_20 = arith.constant 0 : index
    %c1_21 = arith.constant 1 : index
    %c1_22 = arith.constant 1 : index
    %13 = vector.load %arg12[%c0_20, %c1_21, %c1_22] : memref<4x18x36xf32, #tpu.memory_space<vmem>>, vector<1x16x16xf32>
    %14 = vector.shape_cast %13 : vector<1x16x16xf32> to vector<16x16xf32>
    %15 = vector.shape_cast %12 : vector<16x16xf32> to vector<1x16x16xf32>
    tpu.vector_store %arg12[%c0_20, %c1_21, %c1_22], %15 {strides = array<i32>} : memref<4x18x36xf32, #tpu.memory_space<vmem>>, vector<1x16x16xf32>,
    %c0_23 = arith.constant 0 : index
    %c1_24 = arith.constant 1 : index
    %c0_25 = arith.constant 0 : index
    %c0_26 = arith.constant 0 : index
    %16 = vector.load %arg1[%c0_23, %c1_24, %c0_25, %c0_26] : memref<2x4x16x16xf32, #tpu.memory_space<vmem>>, vector<1x1x16x16xf32>
    %17 = vector.shape_cast %16 : vector<1x1x16x16xf32> to vector<16x16xf32>
    %c1_27 = arith.constant 1 : index
    %c1_28 = arith.constant 1 : index
    %c1_29 = arith.constant 1 : index
    %18 = vector.load %arg11[%c1_27, %c1_28, %c1_29] : memref<4x18x36xf32, #tpu.memory_space<vmem>>, vector<1x16x16xf32>
    %19 = vector.shape_cast %18 : vector<1x16x16xf32> to vector<16x16xf32>
    %20 = vector.shape_cast %17 : vector<16x16xf32> to vector<1x16x16xf32>
    tpu.vector_store %arg11[%c1_27, %c1_28, %c1_29], %20 {strides = array<i32>} : memref<4x18x36xf32, #tpu.memory_space<vmem>>, vector<1x16x16xf32>,
    %c0_30 = arith.constant 0 : index
    %c1_31 = arith.constant 1 : index
    %c0_32 = arith.constant 0 : index
    %c0_33 = arith.constant 0 : index
    %21 = vector.load %arg2[%c0_30, %c1_31, %c0_32, %c0_33] : memref<2x4x16x16xf32, #tpu.memory_space<vmem>>, vector<1x1x16x16xf32>
    %22 = vector.shape_cast %21 : vector<1x1x16x16xf32> to vector<16x16xf32>
    %c1_34 = arith.constant 1 : index
    %c1_35 = arith.constant 1 : index
    %c1_36 = arith.constant 1 : index
    %23 = vector.load %arg12[%c1_34, %c1_35, %c1_36] : memref<4x18x36xf32, #tpu.memory_space<vmem>>, vector<1x16x16xf32>
    %24 = vector.shape_cast %23 : vector<1x16x16xf32> to vector<16x16xf32>
    %25 = vector.shape_cast %22 : vector<16x16xf32> to vector<1x16x16xf32>
    tpu.vector_store %arg12[%c1_34, %c1_35, %c1_36], %25 {strides = array<i32>} : memref<4x18x36xf32, #tpu.memory_space<vmem>>, vector<1x16x16xf32>,
    %c0_37 = arith.constant 0 : index
    %c2 = arith.constant 2 : index
    %c0_38 = arith.constant 0 : index
    %c0_39 = arith.constant 0 : index
    %26 = vector.load %arg1[%c0_37, %c2, %c0_38, %c0_39] : memref<2x4x16x16xf32, #tpu.memory_space<vmem>>, vector<1x1x16x16xf32>
    %27 = vector.shape_cast %26 : vector<1x1x16x16xf32> to vector<16x16xf32>
    %c2_40 = arith.constant 2 : index
    %c1_41 = arith.constant 1 : index
    %c1_42 = arith.constant 1 : index
    %28 = vector.load %arg11[%c2_40, %c1_41, %c1_42] : memref<4x18x36xf32, #tpu.memory_space<vmem>>, vector<1x16x16xf32>
    %29 = vector.shape_cast %28 : vector<1x16x16xf32> to vector<16x16xf32>
    %30 = vector.shape_cast %27 : vector<16x16xf32> to vector<1x16x16xf32>
    tpu.vector_store %arg11[%c2_40, %c1_41, %c1_42], %30 {strides = array<i32>} : memref<4x18x36xf32, #tpu.memory_space<vmem>>, vector<1x16x16xf32>,
    %c0_43 = arith.constant 0 : index
    %c2_44 = arith.constant 2 : index
    %c0_45 = arith.constant 0 : index
    %c0_46 = arith.constant 0 : index
    %31 = vector.load %arg2[%c0_43, %c2_44, %c0_45, %c0_46] : memref<2x4x16x16xf32, #tpu.memory_space<vmem>>, vector<1x1x16x16xf32>
    %32 = vector.shape_cast %31 : vector<1x1x16x16xf32> to vector<16x16xf32>
    %c2_47 = arith.constant 2 : index
    %c1_48 = arith.constant 1 : index
    %c1_49 = arith.constant 1 : index
    %33 = vector.load %arg12[%c2_47, %c1_48, %c1_49] : memref<4x18x36xf32, #tpu.memory_space<vmem>>, vector<1x16x16xf32>
    %34 = vector.shape_cast %33 : vector<1x16x16xf32> to vector<16x16xf32>
    %35 = vector.shape_cast %32 : vector<16x16xf32> to vector<1x16x16xf32>
    tpu.vector_store %arg12[%c2_47, %c1_48, %c1_49], %35 {strides = array<i32>} : memref<4x18x36xf32, #tpu.memory_space<vmem>>, vector<1x16x16xf32>,
    %c0_50 = arith.constant 0 : index
    %c3 = arith.constant 3 : index
    %c0_51 = arith.constant 0 : index
    %c0_52 = arith.constant 0 : index
    %36 = vector.load %arg1[%c0_50, %c3, %c0_51, %c0_52] : memref<2x4x16x16xf32, #tpu.memory_space<vmem>>, vector<1x1x16x16xf32>
    %37 = vector.shape_cast %36 : vector<1x1x16x16xf32> to vector<16x16xf32>
    %c3_53 = arith.constant 3 : index
    %c1_54 = arith.constant 1 : index
    %c1_55 = arith.constant 1 : index
    %38 = vector.load %arg11[%c3_53, %c1_54, %c1_55] : memref<4x18x36xf32, #tpu.memory_space<vmem>>, vector<1x16x16xf32>
    %39 = vector.shape_cast %38 : vector<1x16x16xf32> to vector<16x16xf32>
    %40 = vector.shape_cast %37 : vector<16x16xf32> to vector<1x16x16xf32>
    tpu.vector_store %arg11[%c3_53, %c1_54, %c1_55], %40 {strides = array<i32>} : memref<4x18x36xf32, #tpu.memory_space<vmem>>, vector<1x16x16xf32>,
    %c0_56 = arith.constant 0 : index
    %c3_57 = arith.constant 3 : index
    %c0_58 = arith.constant 0 : index
    %c0_59 = arith.constant 0 : index
    %41 = vector.load %arg2[%c0_56, %c3_57, %c0_58, %c0_59] : memref<2x4x16x16xf32, #tpu.memory_space<vmem>>, vector<1x1x16x16xf32>
    %42 = vector.shape_cast %41 : vector<1x1x16x16xf32> to vector<16x16xf32>
    %c3_60 = arith.constant 3 : index
    %c1_61 = arith.constant 1 : index
    %c1_62 = arith.constant 1 : index
    %43 = vector.load %arg12[%c3_60, %c1_61, %c1_62] : memref<4x18x36xf32, #tpu.memory_space<vmem>>, vector<1x16x16xf32>
    %44 = vector.shape_cast %43 : vector<1x16x16xf32> to vector<16x16xf32>
    %45 = vector.shape_cast %42 : vector<16x16xf32> to vector<1x16x16xf32>
    tpu.vector_store %arg12[%c3_60, %c1_61, %c1_62], %45 {strides = array<i32>} : memref<4x18x36xf32, #tpu.memory_space<vmem>>, vector<1x16x16xf32>,
    %c1_63 = arith.constant 1 : index
    %c0_64 = arith.constant 0 : index
    %c0_65 = arith.constant 0 : index
    %c0_66 = arith.constant 0 : index
    %46 = vector.load %arg1[%c1_63, %c0_64, %c0_65, %c0_66] : memref<2x4x16x16xf32, #tpu.memory_space<vmem>>, vector<1x1x16x16xf32>
    %47 = vector.shape_cast %46 : vector<1x1x16x16xf32> to vector<16x16xf32>
    %c0_67 = arith.constant 0 : index
    %c1_68 = arith.constant 1 : index
    %c19 = arith.constant 19 : index
    %48 = vector.load %arg11[%c0_67, %c1_68, %c19] : memref<4x18x36xf32, #tpu.memory_space<vmem>>, vector<1x16x16xf32>
    %49 = vector.shape_cast %48 : vector<1x16x16xf32> to vector<16x16xf32>
    %50 = vector.shape_cast %47 : vector<16x16xf32> to vector<1x16x16xf32>
    tpu.vector_store %arg11[%c0_67, %c1_68, %c19], %50 {strides = array<i32>} : memref<4x18x36xf32, #tpu.memory_space<vmem>>, vector<1x16x16xf32>,
    %c1_69 = arith.constant 1 : index
    %c0_70 = arith.constant 0 : index
    %c0_71 = arith.constant 0 : index
    %c0_72 = arith.constant 0 : index
    %51 = vector.load %arg2[%c1_69, %c0_70, %c0_71, %c0_72] : memref<2x4x16x16xf32, #tpu.memory_space<vmem>>, vector<1x1x16x16xf32>
    %52 = vector.shape_cast %51 : vector<1x1x16x16xf32> to vector<16x16xf32>
    %c0_73 = arith.constant 0 : index
    %c1_74 = arith.constant 1 : index
    %c19_75 = arith.constant 19 : index
    %53 = vector.load %arg12[%c0_73, %c1_74, %c19_75] : memref<4x18x36xf32, #tpu.memory_space<vmem>>, vector<1x16x16xf32>
    %54 = vector.shape_cast %53 : vector<1x16x16xf32> to vector<16x16xf32>
    %55 = vector.shape_cast %52 : vector<16x16xf32> to vector<1x16x16xf32>
    tpu.vector_store %arg12[%c0_73, %c1_74, %c19_75], %55 {strides = array<i32>} : memref<4x18x36xf32, #tpu.memory_space<vmem>>, vector<1x16x16xf32>,
    %c1_76 = arith.constant 1 : index
    %c1_77 = arith.constant 1 : index
    %c0_78 = arith.constant 0 : index
    %c0_79 = arith.constant 0 : index
    %56 = vector.load %arg1[%c1_76, %c1_77, %c0_78, %c0_79] : memref<2x4x16x16xf32, #tpu.memory_space<vmem>>, vector<1x1x16x16xf32>
    %57 = vector.shape_cast %56 : vector<1x1x16x16xf32> to vector<16x16xf32>
    %c1_80 = arith.constant 1 : index
    %c1_81 = arith.constant 1 : index
    %c19_82 = arith.constant 19 : index
    %58 = vector.load %arg11[%c1_80, %c1_81, %c19_82] : memref<4x18x36xf32, #tpu.memory_space<vmem>>, vector<1x16x16xf32>
    %59 = vector.shape_cast %58 : vector<1x16x16xf32> to vector<16x16xf32>
    %60 = vector.shape_cast %57 : vector<16x16xf32> to vector<1x16x16xf32>
    tpu.vector_store %arg11[%c1_80, %c1_81, %c19_82], %60 {strides = array<i32>} : memref<4x18x36xf32, #tpu.memory_space<vmem>>, vector<1x16x16xf32>,
    %c1_83 = arith.constant 1 : index
    %c1_84 = arith.constant 1 : index
    %c0_85 = arith.constant 0 : index
    %c0_86 = arith.constant 0 : index
    %61 = vector.load %arg2[%c1_83, %c1_84, %c0_85, %c0_86] : memref<2x4x16x16xf32, #tpu.memory_space<vmem>>, vector<1x1x16x16xf32>
    %62 = vector.shape_cast %61 : vector<1x1x16x16xf32> to vector<16x16xf32>
    %c1_87 = arith.constant 1 : index
    %c1_88 = arith.constant 1 : index
    %c19_89 = arith.constant 19 : index
    %63 = vector.load %arg12[%c1_87, %c1_88, %c19_89] : memref<4x18x36xf32, #tpu.memory_space<vmem>>, vector<1x16x16xf32>
    %64 = vector.shape_cast %63 : vector<1x16x16xf32> to vector<16x16xf32>
    %65 = vector.shape_cast %62 : vector<16x16xf32> to vector<1x16x16xf32>
    tpu.vector_store %arg12[%c1_87, %c1_88, %c19_89], %65 {strides = array<i32>} : memref<4x18x36xf32, #tpu.memory_space<vmem>>, vector<1x16x16xf32>,
    %c1_90 = arith.constant 1 : index
    %c2_91 = arith.constant 2 : index
    %c0_92 = arith.constant 0 : index
    %c0_93 = arith.constant 0 : index
    %66 = vector.load %arg1[%c1_90, %c2_91, %c0_92, %c0_93] : memref<2x4x16x16xf32, #tpu.memory_space<vmem>>, vector<1x1x16x16xf32>
    %67 = vector.shape_cast %66 : vector<1x1x16x16xf32> to vector<16x16xf32>
    %c2_94 = arith.constant 2 : index
    %c1_95 = arith.constant 1 : index
    %c19_96 = arith.constant 19 : index
    %68 = vector.load %arg11[%c2_94, %c1_95, %c19_96] : memref<4x18x36xf32, #tpu.memory_space<vmem>>, vector<1x16x16xf32>
    %69 = vector.shape_cast %68 : vector<1x16x16xf32> to vector<16x16xf32>
    %70 = vector.shape_cast %67 : vector<16x16xf32> to vector<1x16x16xf32>
    tpu.vector_store %arg11[%c2_94, %c1_95, %c19_96], %70 {strides = array<i32>} : memref<4x18x36xf32, #tpu.memory_space<vmem>>, vector<1x16x16xf32>,
    %c1_97 = arith.constant 1 : index
    %c2_98 = arith.constant 2 : index
    %c0_99 = arith.constant 0 : index
    %c0_100 = arith.constant 0 : index
    %71 = vector.load %arg2[%c1_97, %c2_98, %c0_99, %c0_100] : memref<2x4x16x16xf32, #tpu.memory_space<vmem>>, vector<1x1x16x16xf32>
    %72 = vector.shape_cast %71 : vector<1x1x16x16xf32> to vector<16x16xf32>
    %c2_101 = arith.constant 2 : index
    %c1_102 = arith.constant 1 : index
    %c19_103 = arith.constant 19 : index
    %73 = vector.load %arg12[%c2_101, %c1_102, %c19_103] : memref<4x18x36xf32, #tpu.memory_space<vmem>>, vector<1x16x16xf32>
    %74 = vector.shape_cast %73 : vector<1x16x16xf32> to vector<16x16xf32>
    %75 = vector.shape_cast %72 : vector<16x16xf32> to vector<1x16x16xf32>
    tpu.vector_store %arg12[%c2_101, %c1_102, %c19_103], %75 {strides = array<i32>} : memref<4x18x36xf32, #tpu.memory_space<vmem>>, vector<1x16x16xf32>,
    %c1_104 = arith.constant 1 : index
    %c3_105 = arith.constant 3 : index
    %c0_106 = arith.constant 0 : index
    %c0_107 = arith.constant 0 : index
    %76 = vector.load %arg1[%c1_104, %c3_105, %c0_106, %c0_107] : memref<2x4x16x16xf32, #tpu.memory_space<vmem>>, vector<1x1x16x16xf32>
    %77 = vector.shape_cast %76 : vector<1x1x16x16xf32> to vector<16x16xf32>
    %c3_108 = arith.constant 3 : index
    %c1_109 = arith.constant 1 : index
    %c19_110 = arith.constant 19 : index
    %78 = vector.load %arg11[%c3_108, %c1_109, %c19_110] : memref<4x18x36xf32, #tpu.memory_space<vmem>>, vector<1x16x16xf32>
    %79 = vector.shape_cast %78 : vector<1x16x16xf32> to vector<16x16xf32>
    %80 = vector.shape_cast %77 : vector<16x16xf32> to vector<1x16x16xf32>
    tpu.vector_store %arg11[%c3_108, %c1_109, %c19_110], %80 {strides = array<i32>} : memref<4x18x36xf32, #tpu.memory_space<vmem>>, vector<1x16x16xf32>,
    %c1_111 = arith.constant 1 : index
    %c3_112 = arith.constant 3 : index
    %c0_113 = arith.constant 0 : index
    %c0_114 = arith.constant 0 : index
    %81 = vector.load %arg2[%c1_111, %c3_112, %c0_113, %c0_114] : memref<2x4x16x16xf32, #tpu.memory_space<vmem>>, vector<1x1x16x16xf32>
    %82 = vector.shape_cast %81 : vector<1x1x16x16xf32> to vector<16x16xf32>
    %c3_115 = arith.constant 3 : index
    %c1_116 = arith.constant 1 : index
    %c19_117 = arith.constant 19 : index
    %83 = vector.load %arg12[%c3_115, %c1_116, %c19_117] : memref<4x18x36xf32, #tpu.memory_space<vmem>>, vector<1x16x16xf32>
    %84 = vector.shape_cast %83 : vector<1x16x16xf32> to vector<16x16xf32>
    %85 = vector.shape_cast %82 : vector<16x16xf32> to vector<1x16x16xf32>
    tpu.vector_store %arg12[%c3_115, %c1_116, %c19_117], %85 {strides = array<i32>} : memref<4x18x36xf32, #tpu.memory_space<vmem>>, vector<1x16x16xf32>,
    %86 = tpu.iota {dimensions = array<i32: 1>} : vector<1x34xi32>
    %c1_i32 = arith.constant 1 : i32
    %87 = vector.broadcast %c1_i32 : i32 to vector<1x34xi32>
    %88 = arith.addi %86, %87 : vector<1x34xi32>
    %c18_i32 = arith.constant 18 : i32
    %c0_i32 = arith.constant 0 : i32
    %89 = arith.cmpi eq, %c18_i32, %c0_i32 : i32
    %c1_i32_118 = arith.constant 1 : i32
    %90 = arith.select %89, %c1_i32_118, %c18_i32 : i32
    %91 = vector.broadcast %90 : i32 to vector<1x34xi32>
    %92 = arith.remsi %88, %91 : vector<1x34xi32>
    %c0_i32_119 = arith.constant 0 : i32
    %93 = vector.broadcast %c0_i32_119 : i32 to vector<1x34xi32>
    %94 = arith.cmpi ne, %92, %93 : vector<1x34xi32>
    %c0_i32_120 = arith.constant 0 : i32
    %95 = vector.broadcast %c0_i32_120 : i32 to vector<1x34xi32>
    %96 = arith.cmpi slt, %92, %95 : vector<1x34xi32>
    %c0_i32_121 = arith.constant 0 : i32
    %97 = arith.cmpi slt, %90, %c0_i32_121 : i32
    %98 = vector.broadcast %97 : i1 to vector<1x34xi1>
    %99 = vector.broadcast %98 : vector<1x34xi1> to vector<1x34xi1>
    %100 = arith.xori %96, %99 : vector<1x34xi1>
    %101 = arith.andi %100, %94 : vector<1x34xi1>
    %102 = vector.broadcast %90 : i32 to vector<1x34xi32>
    %103 = arith.addi %92, %102 : vector<1x34xi32>
    %104 = arith.select %101, %103, %92 : vector<1x34xi1>, vector<1x34xi32>
    %c1_i32_122 = arith.constant 1 : i32
    %105 = vector.broadcast %c1_i32_122 : i32 to vector<1x34xi32>
    %106 = arith.cmpi sge, %104, %105 : vector<1x34xi32>
    %c16_i32 = arith.constant 16 : i32
    %107 = vector.broadcast %c16_i32 : i32 to vector<1x34xi32>
    %108 = arith.cmpi sle, %104, %107 : vector<1x34xi32>
    %109 = arith.andi %106, %108 : vector<1x34xi1>
    %cst_123 = arith.constant 1.000000e+00 : f32
    %cst_124 = arith.constant 0.000000e+00 : f32
    %110 = vector.broadcast %cst_123 : f32 to vector<1x34xf32>
    %111 = vector.broadcast %cst_124 : f32 to vector<1x34xf32>
    %112 = arith.select %109, %110, %111 : vector<1x34xi1>, vector<1x34xf32>
    %cst_125 = arith.constant 0.000000e+00 : f32
    %113 = vector.broadcast %cst_125 : f32 to vector<16x34xf32>
    %c0_126 = arith.constant 0 : index
    %114 = memref.load %arg4[%c0_126] : memref<2xf32, #tpu.memory_space<smem>>
    %115 = vector.broadcast %114 : f32 to vector<16x34xf32>
    %116 = arith.addf %113, %115 : vector<16x34xf32>
    %cst_127 = arith.constant 0.000000e+00 : f32
    %117 = vector.broadcast %cst_127 : f32 to vector<16x34xf32>
    %c1_128 = arith.constant 1 : index
    %118 = memref.load %arg4[%c1_128] : memref<2xf32, #tpu.memory_space<smem>>
    %119 = vector.broadcast %118 : f32 to vector<16x34xf32>
    %120 = arith.addf %117, %119 : vector<16x34xf32>
    %cst_129 = arith.constant 0.000000e+00 : f32
    %121 = vector.broadcast %cst_129 : f32 to vector<16x34xf32>
    %c0_130 = arith.constant 0 : index
    %122 = memref.load %arg6[%c0_130] : memref<2xf32, #tpu.memory_space<smem>>
    %123 = vector.broadcast %122 : f32 to vector<16x34xf32>
    %124 = arith.addf %121, %123 : vector<16x34xf32>
    %cst_131 = arith.constant 0.000000e+00 : f32
    %125 = vector.broadcast %cst_131 : f32 to vector<16x34xf32>
    %c1_132 = arith.constant 1 : index
    %126 = memref.load %arg6[%c1_132] : memref<2xf32, #tpu.memory_space<smem>>
    %127 = vector.broadcast %126 : f32 to vector<16x34xf32>
    %128 = arith.addf %125, %127 : vector<16x34xf32>
    %c0_133 = arith.constant 0 : index
    %c0_134 = arith.constant 0 : index
    %c0_135 = arith.constant 0 : index
    %129 = vector.load %arg11[%c0_133, %c0_134, %c0_135] : memref<4x18x36xf32, #tpu.memory_space<vmem>>, vector<1x18x34xf32>
    %130 = vector.shape_cast %129 : vector<1x18x34xf32> to vector<18x34xf32>
    %c0_136 = arith.constant 0 : index
    %c0_137 = arith.constant 0 : index
    %c1_138 = arith.constant 1 : index
    %131 = vector.load %arg11[%c0_136, %c0_137, %c1_138] : memref<4x18x36xf32, #tpu.memory_space<vmem>>, vector<1x18x34xf32>
    %132 = vector.shape_cast %131 : vector<1x18x34xf32> to vector<18x34xf32>
    %c0_139 = arith.constant 0 : index
    %c0_140 = arith.constant 0 : index
    %c2_141 = arith.constant 2 : index
    %133 = vector.load %arg11[%c0_139, %c0_140, %c2_141] : memref<4x18x36xf32, #tpu.memory_space<vmem>>, vector<1x18x34xf32>
    %134 = vector.shape_cast %133 : vector<1x18x34xf32> to vector<18x34xf32>
    %c0_142 = arith.constant 0 : index
    %c0_143 = arith.constant 0 : index
    %c0_144 = arith.constant 0 : index
    %135 = vector.load %arg12[%c0_142, %c0_143, %c0_144] : memref<4x18x36xf32, #tpu.memory_space<vmem>>, vector<1x18x34xf32>
    %136 = vector.shape_cast %135 : vector<1x18x34xf32> to vector<18x34xf32>
    %c0_145 = arith.constant 0 : index
    %c0_146 = arith.constant 0 : index
    %c1_147 = arith.constant 1 : index
    %137 = vector.load %arg12[%c0_145, %c0_146, %c1_147] : memref<4x18x36xf32, #tpu.memory_space<vmem>>, vector<1x18x34xf32>
    %138 = vector.shape_cast %137 : vector<1x18x34xf32> to vector<18x34xf32>
    %c0_148 = arith.constant 0 : index
    %c0_149 = arith.constant 0 : index
    %c2_150 = arith.constant 2 : index
    %139 = vector.load %arg12[%c0_148, %c0_149, %c2_150] : memref<4x18x36xf32, #tpu.memory_space<vmem>>, vector<1x18x34xf32>
    %140 = vector.shape_cast %139 : vector<1x18x34xf32> to vector<18x34xf32>
    %141 = vector.extract_strided_slice %130 {offsets = [0, 0], sizes = [16, 34], strides = [1, 1]} : vector<18x34xf32> to vector<16x34xf32>
    %142 = vector.extract_strided_slice %136 {offsets = [0, 0], sizes = [16, 34], strides = [1, 1]} : vector<18x34xf32> to vector<16x34xf32>
    %c0_151 = arith.constant 0 : index
    %143 = memref.load %arg3[%c0_151] : memref<72xf32, #tpu.memory_space<smem>>
    %144 = vector.broadcast %143 : f32 to vector<16x34xf32>
    %145 = arith.mulf %144, %141 : vector<16x34xf32>
    %146 = arith.addf %116, %145 : vector<16x34xf32>
    %c0_152 = arith.constant 0 : index
    %147 = memref.load %arg5[%c0_152] : memref<72xf32, #tpu.memory_space<smem>>
    %148 = vector.broadcast %147 : f32 to vector<16x34xf32>
    %149 = arith.mulf %148, %142 : vector<16x34xf32>
    %150 = arith.addf %124, %149 : vector<16x34xf32>
    %c1_153 = arith.constant 1 : index
    %151 = memref.load %arg3[%c1_153] : memref<72xf32, #tpu.memory_space<smem>>
    %152 = vector.broadcast %151 : f32 to vector<16x34xf32>
    %153 = arith.mulf %152, %141 : vector<16x34xf32>
    %154 = arith.addf %120, %153 : vector<16x34xf32>
    %c1_154 = arith.constant 1 : index
    %155 = memref.load %arg5[%c1_154] : memref<72xf32, #tpu.memory_space<smem>>
    %156 = vector.broadcast %155 : f32 to vector<16x34xf32>
    %157 = arith.mulf %156, %142 : vector<16x34xf32>
    %158 = arith.addf %128, %157 : vector<16x34xf32>
    %159 = vector.extract_strided_slice %130 {offsets = [1, 0], sizes = [16, 34], strides = [1, 1]} : vector<18x34xf32> to vector<16x34xf32>
    %160 = vector.extract_strided_slice %136 {offsets = [1, 0], sizes = [16, 34], strides = [1, 1]} : vector<18x34xf32> to vector<16x34xf32>
    %c24 = arith.constant 24 : index
    %161 = memref.load %arg3[%c24] : memref<72xf32, #tpu.memory_space<smem>>
    %162 = vector.broadcast %161 : f32 to vector<16x34xf32>
    %163 = arith.mulf %162, %159 : vector<16x34xf32>
    %164 = arith.addf %146, %163 : vector<16x34xf32>
    %c24_155 = arith.constant 24 : index
    %165 = memref.load %arg5[%c24_155] : memref<72xf32, #tpu.memory_space<smem>>
    %166 = vector.broadcast %165 : f32 to vector<16x34xf32>
    %167 = arith.mulf %166, %160 : vector<16x34xf32>
    %168 = arith.addf %150, %167 : vector<16x34xf32>
    %c25 = arith.constant 25 : index
    %169 = memref.load %arg3[%c25] : memref<72xf32, #tpu.memory_space<smem>>
    %170 = vector.broadcast %169 : f32 to vector<16x34xf32>
    %171 = arith.mulf %170, %159 : vector<16x34xf32>
    %172 = arith.addf %154, %171 : vector<16x34xf32>
    %c25_156 = arith.constant 25 : index
    %173 = memref.load %arg5[%c25_156] : memref<72xf32, #tpu.memory_space<smem>>
    %174 = vector.broadcast %173 : f32 to vector<16x34xf32>
    %175 = arith.mulf %174, %160 : vector<16x34xf32>
    %176 = arith.addf %158, %175 : vector<16x34xf32>
    %177 = vector.extract_strided_slice %130 {offsets = [2, 0], sizes = [16, 34], strides = [1, 1]} : vector<18x34xf32> to vector<16x34xf32>
    %178 = vector.extract_strided_slice %136 {offsets = [2, 0], sizes = [16, 34], strides = [1, 1]} : vector<18x34xf32> to vector<16x34xf32>
    %c48 = arith.constant 48 : index
    %179 = memref.load %arg3[%c48] : memref<72xf32, #tpu.memory_space<smem>>
    %180 = vector.broadcast %179 : f32 to vector<16x34xf32>
    %181 = arith.mulf %180, %177 : vector<16x34xf32>
    %182 = arith.addf %164, %181 : vector<16x34xf32>
    %c48_157 = arith.constant 48 : index
    %183 = memref.load %arg5[%c48_157] : memref<72xf32, #tpu.memory_space<smem>>
    %184 = vector.broadcast %183 : f32 to vector<16x34xf32>
    %185 = arith.mulf %184, %178 : vector<16x34xf32>
    %186 = arith.addf %168, %185 : vector<16x34xf32>
    %c49 = arith.constant 49 : index
    %187 = memref.load %arg3[%c49] : memref<72xf32, #tpu.memory_space<smem>>
    %188 = vector.broadcast %187 : f32 to vector<16x34xf32>
    %189 = arith.mulf %188, %177 : vector<16x34xf32>
    %190 = arith.addf %172, %189 : vector<16x34xf32>
    %c49_158 = arith.constant 49 : index
    %191 = memref.load %arg5[%c49_158] : memref<72xf32, #tpu.memory_space<smem>>
    %192 = vector.broadcast %191 : f32 to vector<16x34xf32>
    %193 = arith.mulf %192, %178 : vector<16x34xf32>
    %194 = arith.addf %176, %193 : vector<16x34xf32>
    %195 = vector.extract_strided_slice %132 {offsets = [0, 0], sizes = [16, 34], strides = [1, 1]} : vector<18x34xf32> to vector<16x34xf32>
    %196 = vector.extract_strided_slice %138 {offsets = [0, 0], sizes = [16, 34], strides = [1, 1]} : vector<18x34xf32> to vector<16x34xf32>
    %c8 = arith.constant 8 : index
    %197 = memref.load %arg3[%c8] : memref<72xf32, #tpu.memory_space<smem>>
    %198 = vector.broadcast %197 : f32 to vector<16x34xf32>
    %199 = arith.mulf %198, %195 : vector<16x34xf32>
    %200 = arith.addf %182, %199 : vector<16x34xf32>
    %c8_159 = arith.constant 8 : index
    %201 = memref.load %arg5[%c8_159] : memref<72xf32, #tpu.memory_space<smem>>
    %202 = vector.broadcast %201 : f32 to vector<16x34xf32>
    %203 = arith.mulf %202, %196 : vector<16x34xf32>
    %204 = arith.addf %186, %203 : vector<16x34xf32>
    %c9 = arith.constant 9 : index
    %205 = memref.load %arg3[%c9] : memref<72xf32, #tpu.memory_space<smem>>
    %206 = vector.broadcast %205 : f32 to vector<16x34xf32>
    %207 = arith.mulf %206, %195 : vector<16x34xf32>
    %208 = arith.addf %190, %207 : vector<16x34xf32>
    %c9_160 = arith.constant 9 : index
    %209 = memref.load %arg5[%c9_160] : memref<72xf32, #tpu.memory_space<smem>>
    %210 = vector.broadcast %209 : f32 to vector<16x34xf32>
    %211 = arith.mulf %210, %196 : vector<16x34xf32>
    %212 = arith.addf %194, %211 : vector<16x34xf32>
    %213 = vector.extract_strided_slice %132 {offsets = [1, 0], sizes = [16, 34], strides = [1, 1]} : vector<18x34xf32> to vector<16x34xf32>
    %214 = vector.extract_strided_slice %138 {offsets = [1, 0], sizes = [16, 34], strides = [1, 1]} : vector<18x34xf32> to vector<16x34xf32>
    %c32 = arith.constant 32 : index
    %215 = memref.load %arg3[%c32] : memref<72xf32, #tpu.memory_space<smem>>
    %216 = vector.broadcast %215 : f32 to vector<16x34xf32>
    %217 = arith.mulf %216, %213 : vector<16x34xf32>
    %218 = arith.addf %200, %217 : vector<16x34xf32>
    %c32_161 = arith.constant 32 : index
    %219 = memref.load %arg5[%c32_161] : memref<72xf32, #tpu.memory_space<smem>>
    %220 = vector.broadcast %219 : f32 to vector<16x34xf32>
    %221 = arith.mulf %220, %214 : vector<16x34xf32>
    %222 = arith.addf %204, %221 : vector<16x34xf32>
    %c33 = arith.constant 33 : index
    %223 = memref.load %arg3[%c33] : memref<72xf32, #tpu.memory_space<smem>>
    %224 = vector.broadcast %223 : f32 to vector<16x34xf32>
    %225 = arith.mulf %224, %213 : vector<16x34xf32>
    %226 = arith.addf %208, %225 : vector<16x34xf32>
    %c33_162 = arith.constant 33 : index
    %227 = memref.load %arg5[%c33_162] : memref<72xf32, #tpu.memory_space<smem>>
    %228 = vector.broadcast %227 : f32 to vector<16x34xf32>
    %229 = arith.mulf %228, %214 : vector<16x34xf32>
    %230 = arith.addf %212, %229 : vector<16x34xf32>
    %231 = vector.extract_strided_slice %132 {offsets = [2, 0], sizes = [16, 34], strides = [1, 1]} : vector<18x34xf32> to vector<16x34xf32>
    %232 = vector.extract_strided_slice %138 {offsets = [2, 0], sizes = [16, 34], strides = [1, 1]} : vector<18x34xf32> to vector<16x34xf32>
    %c56 = arith.constant 56 : index
    %233 = memref.load %arg3[%c56] : memref<72xf32, #tpu.memory_space<smem>>
    %234 = vector.broadcast %233 : f32 to vector<16x34xf32>
    %235 = arith.mulf %234, %231 : vector<16x34xf32>
    %236 = arith.addf %218, %235 : vector<16x34xf32>
    %c56_163 = arith.constant 56 : index
    %237 = memref.load %arg5[%c56_163] : memref<72xf32, #tpu.memory_space<smem>>
    %238 = vector.broadcast %237 : f32 to vector<16x34xf32>
    %239 = arith.mulf %238, %232 : vector<16x34xf32>
    %240 = arith.addf %222, %239 : vector<16x34xf32>
    %c57 = arith.constant 57 : index
    %241 = memref.load %arg3[%c57] : memref<72xf32, #tpu.memory_space<smem>>
    %242 = vector.broadcast %241 : f32 to vector<16x34xf32>
    %243 = arith.mulf %242, %231 : vector<16x34xf32>
    %244 = arith.addf %226, %243 : vector<16x34xf32>
    %c57_164 = arith.constant 57 : index
    %245 = memref.load %arg5[%c57_164] : memref<72xf32, #tpu.memory_space<smem>>
    %246 = vector.broadcast %245 : f32 to vector<16x34xf32>
    %247 = arith.mulf %246, %232 : vector<16x34xf32>
    %248 = arith.addf %230, %247 : vector<16x34xf32>
    %249 = vector.extract_strided_slice %134 {offsets = [0, 0], sizes = [16, 34], strides = [1, 1]} : vector<18x34xf32> to vector<16x34xf32>
    %250 = vector.extract_strided_slice %140 {offsets = [0, 0], sizes = [16, 34], strides = [1, 1]} : vector<18x34xf32> to vector<16x34xf32>
    %c16 = arith.constant 16 : index
    %251 = memref.load %arg3[%c16] : memref<72xf32, #tpu.memory_space<smem>>
    %252 = vector.broadcast %251 : f32 to vector<16x34xf32>
    %253 = arith.mulf %252, %249 : vector<16x34xf32>
    %254 = arith.addf %236, %253 : vector<16x34xf32>
    %c16_165 = arith.constant 16 : index
    %255 = memref.load %arg5[%c16_165] : memref<72xf32, #tpu.memory_space<smem>>
    %256 = vector.broadcast %255 : f32 to vector<16x34xf32>
    %257 = arith.mulf %256, %250 : vector<16x34xf32>
    %258 = arith.addf %240, %257 : vector<16x34xf32>
    %c17 = arith.constant 17 : index
    %259 = memref.load %arg3[%c17] : memref<72xf32, #tpu.memory_space<smem>>
    %260 = vector.broadcast %259 : f32 to vector<16x34xf32>
    %261 = arith.mulf %260, %249 : vector<16x34xf32>
    %262 = arith.addf %244, %261 : vector<16x34xf32>
    %c17_166 = arith.constant 17 : index
    %263 = memref.load %arg5[%c17_166] : memref<72xf32, #tpu.memory_space<smem>>
    %264 = vector.broadcast %263 : f32 to vector<16x34xf32>
    %265 = arith.mulf %264, %250 : vector<16x34xf32>
    %266 = arith.addf %248, %265 : vector<16x34xf32>
    %267 = vector.extract_strided_slice %134 {offsets = [1, 0], sizes = [16, 34], strides = [1, 1]} : vector<18x34xf32> to vector<16x34xf32>
    %268 = vector.extract_strided_slice %140 {offsets = [1, 0], sizes = [16, 34], strides = [1, 1]} : vector<18x34xf32> to vector<16x34xf32>
    %c40 = arith.constant 40 : index
    %269 = memref.load %arg3[%c40] : memref<72xf32, #tpu.memory_space<smem>>
    %270 = vector.broadcast %269 : f32 to vector<16x34xf32>
    %271 = arith.mulf %270, %267 : vector<16x34xf32>
    %272 = arith.addf %254, %271 : vector<16x34xf32>
    %c40_167 = arith.constant 40 : index
    %273 = memref.load %arg5[%c40_167] : memref<72xf32, #tpu.memory_space<smem>>
    %274 = vector.broadcast %273 : f32 to vector<16x34xf32>
    %275 = arith.mulf %274, %268 : vector<16x34xf32>
    %276 = arith.addf %258, %275 : vector<16x34xf32>
    %c41 = arith.constant 41 : index
    %277 = memref.load %arg3[%c41] : memref<72xf32, #tpu.memory_space<smem>>
    %278 = vector.broadcast %277 : f32 to vector<16x34xf32>
    %279 = arith.mulf %278, %267 : vector<16x34xf32>
    %280 = arith.addf %262, %279 : vector<16x34xf32>
    %c41_168 = arith.constant 41 : index
    %281 = memref.load %arg5[%c41_168] : memref<72xf32, #tpu.memory_space<smem>>
    %282 = vector.broadcast %281 : f32 to vector<16x34xf32>
    %283 = arith.mulf %282, %268 : vector<16x34xf32>
    %284 = arith.addf %266, %283 : vector<16x34xf32>
    %285 = vector.extract_strided_slice %134 {offsets = [2, 0], sizes = [16, 34], strides = [1, 1]} : vector<18x34xf32> to vector<16x34xf32>
    %286 = vector.extract_strided_slice %140 {offsets = [2, 0], sizes = [16, 34], strides = [1, 1]} : vector<18x34xf32> to vector<16x34xf32>
    %c64 = arith.constant 64 : index
    %287 = memref.load %arg3[%c64] : memref<72xf32, #tpu.memory_space<smem>>
    %288 = vector.broadcast %287 : f32 to vector<16x34xf32>
    %289 = arith.mulf %288, %285 : vector<16x34xf32>
    %290 = arith.addf %272, %289 : vector<16x34xf32>
    %c64_169 = arith.constant 64 : index
    %291 = memref.load %arg5[%c64_169] : memref<72xf32, #tpu.memory_space<smem>>
    %292 = vector.broadcast %291 : f32 to vector<16x34xf32>
    %293 = arith.mulf %292, %286 : vector<16x34xf32>
    %294 = arith.addf %276, %293 : vector<16x34xf32>
    %c65 = arith.constant 65 : index
    %295 = memref.load %arg3[%c65] : memref<72xf32, #tpu.memory_space<smem>>
    %296 = vector.broadcast %295 : f32 to vector<16x34xf32>
    %297 = arith.mulf %296, %285 : vector<16x34xf32>
    %298 = arith.addf %280, %297 : vector<16x34xf32>
    %c65_170 = arith.constant 65 : index
    %299 = memref.load %arg5[%c65_170] : memref<72xf32, #tpu.memory_space<smem>>
    %300 = vector.broadcast %299 : f32 to vector<16x34xf32>
    %301 = arith.mulf %300, %286 : vector<16x34xf32>
    %302 = arith.addf %284, %301 : vector<16x34xf32>
    %c1_171 = arith.constant 1 : index
    %c0_172 = arith.constant 0 : index
    %c0_173 = arith.constant 0 : index
    %303 = vector.load %arg11[%c1_171, %c0_172, %c0_173] : memref<4x18x36xf32, #tpu.memory_space<vmem>>, vector<1x18x34xf32>
    %304 = vector.shape_cast %303 : vector<1x18x34xf32> to vector<18x34xf32>
    %c1_174 = arith.constant 1 : index
    %c0_175 = arith.constant 0 : index
    %c1_176 = arith.constant 1 : index
    %305 = vector.load %arg11[%c1_174, %c0_175, %c1_176] : memref<4x18x36xf32, #tpu.memory_space<vmem>>, vector<1x18x34xf32>
    %306 = vector.shape_cast %305 : vector<1x18x34xf32> to vector<18x34xf32>
    %c1_177 = arith.constant 1 : index
    %c0_178 = arith.constant 0 : index
    %c2_179 = arith.constant 2 : index
    %307 = vector.load %arg11[%c1_177, %c0_178, %c2_179] : memref<4x18x36xf32, #tpu.memory_space<vmem>>, vector<1x18x34xf32>
    %308 = vector.shape_cast %307 : vector<1x18x34xf32> to vector<18x34xf32>
    %c1_180 = arith.constant 1 : index
    %c0_181 = arith.constant 0 : index
    %c0_182 = arith.constant 0 : index
    %309 = vector.load %arg12[%c1_180, %c0_181, %c0_182] : memref<4x18x36xf32, #tpu.memory_space<vmem>>, vector<1x18x34xf32>
    %310 = vector.shape_cast %309 : vector<1x18x34xf32> to vector<18x34xf32>
    %c1_183 = arith.constant 1 : index
    %c0_184 = arith.constant 0 : index
    %c1_185 = arith.constant 1 : index
    %311 = vector.load %arg12[%c1_183, %c0_184, %c1_185] : memref<4x18x36xf32, #tpu.memory_space<vmem>>, vector<1x18x34xf32>
    %312 = vector.shape_cast %311 : vector<1x18x34xf32> to vector<18x34xf32>
    %c1_186 = arith.constant 1 : index
    %c0_187 = arith.constant 0 : index
    %c2_188 = arith.constant 2 : index
    %313 = vector.load %arg12[%c1_186, %c0_187, %c2_188] : memref<4x18x36xf32, #tpu.memory_space<vmem>>, vector<1x18x34xf32>
    %314 = vector.shape_cast %313 : vector<1x18x34xf32> to vector<18x34xf32>
    %315 = vector.extract_strided_slice %304 {offsets = [0, 0], sizes = [16, 34], strides = [1, 1]} : vector<18x34xf32> to vector<16x34xf32>
    %316 = vector.extract_strided_slice %310 {offsets = [0, 0], sizes = [16, 34], strides = [1, 1]} : vector<18x34xf32> to vector<16x34xf32>
    %c2_189 = arith.constant 2 : index
    %317 = memref.load %arg3[%c2_189] : memref<72xf32, #tpu.memory_space<smem>>
    %318 = vector.broadcast %317 : f32 to vector<16x34xf32>
    %319 = arith.mulf %318, %315 : vector<16x34xf32>
    %320 = arith.addf %290, %319 : vector<16x34xf32>
    %c2_190 = arith.constant 2 : index
    %321 = memref.load %arg5[%c2_190] : memref<72xf32, #tpu.memory_space<smem>>
    %322 = vector.broadcast %321 : f32 to vector<16x34xf32>
    %323 = arith.mulf %322, %316 : vector<16x34xf32>
    %324 = arith.addf %294, %323 : vector<16x34xf32>
    %c3_191 = arith.constant 3 : index
    %325 = memref.load %arg3[%c3_191] : memref<72xf32, #tpu.memory_space<smem>>
    %326 = vector.broadcast %325 : f32 to vector<16x34xf32>
    %327 = arith.mulf %326, %315 : vector<16x34xf32>
    %328 = arith.addf %298, %327 : vector<16x34xf32>
    %c3_192 = arith.constant 3 : index
    %329 = memref.load %arg5[%c3_192] : memref<72xf32, #tpu.memory_space<smem>>
    %330 = vector.broadcast %329 : f32 to vector<16x34xf32>
    %331 = arith.mulf %330, %316 : vector<16x34xf32>
    %332 = arith.addf %302, %331 : vector<16x34xf32>
    %333 = vector.extract_strided_slice %304 {offsets = [1, 0], sizes = [16, 34], strides = [1, 1]} : vector<18x34xf32> to vector<16x34xf32>
    %334 = vector.extract_strided_slice %310 {offsets = [1, 0], sizes = [16, 34], strides = [1, 1]} : vector<18x34xf32> to vector<16x34xf32>
    %c26 = arith.constant 26 : index
    %335 = memref.load %arg3[%c26] : memref<72xf32, #tpu.memory_space<smem>>
    %336 = vector.broadcast %335 : f32 to vector<16x34xf32>
    %337 = arith.mulf %336, %333 : vector<16x34xf32>
    %338 = arith.addf %320, %337 : vector<16x34xf32>
    %c26_193 = arith.constant 26 : index
    %339 = memref.load %arg5[%c26_193] : memref<72xf32, #tpu.memory_space<smem>>
    %340 = vector.broadcast %339 : f32 to vector<16x34xf32>
    %341 = arith.mulf %340, %334 : vector<16x34xf32>
    %342 = arith.addf %324, %341 : vector<16x34xf32>
    %c27 = arith.constant 27 : index
    %343 = memref.load %arg3[%c27] : memref<72xf32, #tpu.memory_space<smem>>
    %344 = vector.broadcast %343 : f32 to vector<16x34xf32>
    %345 = arith.mulf %344, %333 : vector<16x34xf32>
    %346 = arith.addf %328, %345 : vector<16x34xf32>
    %c27_194 = arith.constant 27 : index
    %347 = memref.load %arg5[%c27_194] : memref<72xf32, #tpu.memory_space<smem>>
    %348 = vector.broadcast %347 : f32 to vector<16x34xf32>
    %349 = arith.mulf %348, %334 : vector<16x34xf32>
    %350 = arith.addf %332, %349 : vector<16x34xf32>
    %351 = vector.extract_strided_slice %304 {offsets = [2, 0], sizes = [16, 34], strides = [1, 1]} : vector<18x34xf32> to vector<16x34xf32>
    %352 = vector.extract_strided_slice %310 {offsets = [2, 0], sizes = [16, 34], strides = [1, 1]} : vector<18x34xf32> to vector<16x34xf32>
    %c50 = arith.constant 50 : index
    %353 = memref.load %arg3[%c50] : memref<72xf32, #tpu.memory_space<smem>>
    %354 = vector.broadcast %353 : f32 to vector<16x34xf32>
    %355 = arith.mulf %354, %351 : vector<16x34xf32>
    %356 = arith.addf %338, %355 : vector<16x34xf32>
    %c50_195 = arith.constant 50 : index
    %357 = memref.load %arg5[%c50_195] : memref<72xf32, #tpu.memory_space<smem>>
    %358 = vector.broadcast %357 : f32 to vector<16x34xf32>
    %359 = arith.mulf %358, %352 : vector<16x34xf32>
    %360 = arith.addf %342, %359 : vector<16x34xf32>
    %c51 = arith.constant 51 : index
    %361 = memref.load %arg3[%c51] : memref<72xf32, #tpu.memory_space<smem>>
    %362 = vector.broadcast %361 : f32 to vector<16x34xf32>
    %363 = arith.mulf %362, %351 : vector<16x34xf32>
    %364 = arith.addf %346, %363 : vector<16x34xf32>
    %c51_196 = arith.constant 51 : index
    %365 = memref.load %arg5[%c51_196] : memref<72xf32, #tpu.memory_space<smem>>
    %366 = vector.broadcast %365 : f32 to vector<16x34xf32>
    %367 = arith.mulf %366, %352 : vector<16x34xf32>
    %368 = arith.addf %350, %367 : vector<16x34xf32>
    %369 = vector.extract_strided_slice %306 {offsets = [0, 0], sizes = [16, 34], strides = [1, 1]} : vector<18x34xf32> to vector<16x34xf32>
    %370 = vector.extract_strided_slice %312 {offsets = [0, 0], sizes = [16, 34], strides = [1, 1]} : vector<18x34xf32> to vector<16x34xf32>
    %c10 = arith.constant 10 : index
    %371 = memref.load %arg3[%c10] : memref<72xf32, #tpu.memory_space<smem>>
    %372 = vector.broadcast %371 : f32 to vector<16x34xf32>
    %373 = arith.mulf %372, %369 : vector<16x34xf32>
    %374 = arith.addf %356, %373 : vector<16x34xf32>
    %c10_197 = arith.constant 10 : index
    %375 = memref.load %arg5[%c10_197] : memref<72xf32, #tpu.memory_space<smem>>
    %376 = vector.broadcast %375 : f32 to vector<16x34xf32>
    %377 = arith.mulf %376, %370 : vector<16x34xf32>
    %378 = arith.addf %360, %377 : vector<16x34xf32>
    %c11 = arith.constant 11 : index
    %379 = memref.load %arg3[%c11] : memref<72xf32, #tpu.memory_space<smem>>
    %380 = vector.broadcast %379 : f32 to vector<16x34xf32>
    %381 = arith.mulf %380, %369 : vector<16x34xf32>
    %382 = arith.addf %364, %381 : vector<16x34xf32>
    %c11_198 = arith.constant 11 : index
    %383 = memref.load %arg5[%c11_198] : memref<72xf32, #tpu.memory_space<smem>>
    %384 = vector.broadcast %383 : f32 to vector<16x34xf32>
    %385 = arith.mulf %384, %370 : vector<16x34xf32>
    %386 = arith.addf %368, %385 : vector<16x34xf32>
    %387 = vector.extract_strided_slice %306 {offsets = [1, 0], sizes = [16, 34], strides = [1, 1]} : vector<18x34xf32> to vector<16x34xf32>
    %388 = vector.extract_strided_slice %312 {offsets = [1, 0], sizes = [16, 34], strides = [1, 1]} : vector<18x34xf32> to vector<16x34xf32>
    %c34 = arith.constant 34 : index
    %389 = memref.load %arg3[%c34] : memref<72xf32, #tpu.memory_space<smem>>
    %390 = vector.broadcast %389 : f32 to vector<16x34xf32>
    %391 = arith.mulf %390, %387 : vector<16x34xf32>
    %392 = arith.addf %374, %391 : vector<16x34xf32>
    %c34_199 = arith.constant 34 : index
    %393 = memref.load %arg5[%c34_199] : memref<72xf32, #tpu.memory_space<smem>>
    %394 = vector.broadcast %393 : f32 to vector<16x34xf32>
    %395 = arith.mulf %394, %388 : vector<16x34xf32>
    %396 = arith.addf %378, %395 : vector<16x34xf32>
    %c35 = arith.constant 35 : index
    %397 = memref.load %arg3[%c35] : memref<72xf32, #tpu.memory_space<smem>>
    %398 = vector.broadcast %397 : f32 to vector<16x34xf32>
    %399 = arith.mulf %398, %387 : vector<16x34xf32>
    %400 = arith.addf %382, %399 : vector<16x34xf32>
    %c35_200 = arith.constant 35 : index
    %401 = memref.load %arg5[%c35_200] : memref<72xf32, #tpu.memory_space<smem>>
    %402 = vector.broadcast %401 : f32 to vector<16x34xf32>
    %403 = arith.mulf %402, %388 : vector<16x34xf32>
    %404 = arith.addf %386, %403 : vector<16x34xf32>
    %405 = vector.extract_strided_slice %306 {offsets = [2, 0], sizes = [16, 34], strides = [1, 1]} : vector<18x34xf32> to vector<16x34xf32>
    %406 = vector.extract_strided_slice %312 {offsets = [2, 0], sizes = [16, 34], strides = [1, 1]} : vector<18x34xf32> to vector<16x34xf32>
    %c58 = arith.constant 58 : index
    %407 = memref.load %arg3[%c58] : memref<72xf32, #tpu.memory_space<smem>>
    %408 = vector.broadcast %407 : f32 to vector<16x34xf32>
    %409 = arith.mulf %408, %405 : vector<16x34xf32>
    %410 = arith.addf %392, %409 : vector<16x34xf32>
    %c58_201 = arith.constant 58 : index
    %411 = memref.load %arg5[%c58_201] : memref<72xf32, #tpu.memory_space<smem>>
    %412 = vector.broadcast %411 : f32 to vector<16x34xf32>
    %413 = arith.mulf %412, %406 : vector<16x34xf32>
    %414 = arith.addf %396, %413 : vector<16x34xf32>
    %c59 = arith.constant 59 : index
    %415 = memref.load %arg3[%c59] : memref<72xf32, #tpu.memory_space<smem>>
    %416 = vector.broadcast %415 : f32 to vector<16x34xf32>
    %417 = arith.mulf %416, %405 : vector<16x34xf32>
    %418 = arith.addf %400, %417 : vector<16x34xf32>
    %c59_202 = arith.constant 59 : index
    %419 = memref.load %arg5[%c59_202] : memref<72xf32, #tpu.memory_space<smem>>
    %420 = vector.broadcast %419 : f32 to vector<16x34xf32>
    %421 = arith.mulf %420, %406 : vector<16x34xf32>
    %422 = arith.addf %404, %421 : vector<16x34xf32>
    %423 = vector.extract_strided_slice %308 {offsets = [0, 0], sizes = [16, 34], strides = [1, 1]} : vector<18x34xf32> to vector<16x34xf32>
    %424 = vector.extract_strided_slice %314 {offsets = [0, 0], sizes = [16, 34], strides = [1, 1]} : vector<18x34xf32> to vector<16x34xf32>
    %c18 = arith.constant 18 : index
    %425 = memref.load %arg3[%c18] : memref<72xf32, #tpu.memory_space<smem>>
    %426 = vector.broadcast %425 : f32 to vector<16x34xf32>
    %427 = arith.mulf %426, %423 : vector<16x34xf32>
    %428 = arith.addf %410, %427 : vector<16x34xf32>
    %c18_203 = arith.constant 18 : index
    %429 = memref.load %arg5[%c18_203] : memref<72xf32, #tpu.memory_space<smem>>
    %430 = vector.broadcast %429 : f32 to vector<16x34xf32>
    %431 = arith.mulf %430, %424 : vector<16x34xf32>
    %432 = arith.addf %414, %431 : vector<16x34xf32>
    %c19_204 = arith.constant 19 : index
    %433 = memref.load %arg3[%c19_204] : memref<72xf32, #tpu.memory_space<smem>>
    %434 = vector.broadcast %433 : f32 to vector<16x34xf32>
    %435 = arith.mulf %434, %423 : vector<16x34xf32>
    %436 = arith.addf %418, %435 : vector<16x34xf32>
    %c19_205 = arith.constant 19 : index
    %437 = memref.load %arg5[%c19_205] : memref<72xf32, #tpu.memory_space<smem>>
    %438 = vector.broadcast %437 : f32 to vector<16x34xf32>
    %439 = arith.mulf %438, %424 : vector<16x34xf32>
    %440 = arith.addf %422, %439 : vector<16x34xf32>
    %441 = vector.extract_strided_slice %308 {offsets = [1, 0], sizes = [16, 34], strides = [1, 1]} : vector<18x34xf32> to vector<16x34xf32>
    %442 = vector.extract_strided_slice %314 {offsets = [1, 0], sizes = [16, 34], strides = [1, 1]} : vector<18x34xf32> to vector<16x34xf32>
    %c42 = arith.constant 42 : index
    %443 = memref.load %arg3[%c42] : memref<72xf32, #tpu.memory_space<smem>>
    %444 = vector.broadcast %443 : f32 to vector<16x34xf32>
    %445 = arith.mulf %444, %441 : vector<16x34xf32>
    %446 = arith.addf %428, %445 : vector<16x34xf32>
    %c42_206 = arith.constant 42 : index
    %447 = memref.load %arg5[%c42_206] : memref<72xf32, #tpu.memory_space<smem>>
    %448 = vector.broadcast %447 : f32 to vector<16x34xf32>
    %449 = arith.mulf %448, %442 : vector<16x34xf32>
    %450 = arith.addf %432, %449 : vector<16x34xf32>
    %c43 = arith.constant 43 : index
    %451 = memref.load %arg3[%c43] : memref<72xf32, #tpu.memory_space<smem>>
    %452 = vector.broadcast %451 : f32 to vector<16x34xf32>
    %453 = arith.mulf %452, %441 : vector<16x34xf32>
    %454 = arith.addf %436, %453 : vector<16x34xf32>
    %c43_207 = arith.constant 43 : index
    %455 = memref.load %arg5[%c43_207] : memref<72xf32, #tpu.memory_space<smem>>
    %456 = vector.broadcast %455 : f32 to vector<16x34xf32>
    %457 = arith.mulf %456, %442 : vector<16x34xf32>
    %458 = arith.addf %440, %457 : vector<16x34xf32>
    %459 = vector.extract_strided_slice %308 {offsets = [2, 0], sizes = [16, 34], strides = [1, 1]} : vector<18x34xf32> to vector<16x34xf32>
    %460 = vector.extract_strided_slice %314 {offsets = [2, 0], sizes = [16, 34], strides = [1, 1]} : vector<18x34xf32> to vector<16x34xf32>
    %c66 = arith.constant 66 : index
    %461 = memref.load %arg3[%c66] : memref<72xf32, #tpu.memory_space<smem>>
    %462 = vector.broadcast %461 : f32 to vector<16x34xf32>
    %463 = arith.mulf %462, %459 : vector<16x34xf32>
    %464 = arith.addf %446, %463 : vector<16x34xf32>
    %c66_208 = arith.constant 66 : index
    %465 = memref.load %arg5[%c66_208] : memref<72xf32, #tpu.memory_space<smem>>
    %466 = vector.broadcast %465 : f32 to vector<16x34xf32>
    %467 = arith.mulf %466, %460 : vector<16x34xf32>
    %468 = arith.addf %450, %467 : vector<16x34xf32>
    %c67 = arith.constant 67 : index
    %469 = memref.load %arg3[%c67] : memref<72xf32, #tpu.memory_space<smem>>
    %470 = vector.broadcast %469 : f32 to vector<16x34xf32>
    %471 = arith.mulf %470, %459 : vector<16x34xf32>
    %472 = arith.addf %454, %471 : vector<16x34xf32>
    %c67_209 = arith.constant 67 : index
    %473 = memref.load %arg5[%c67_209] : memref<72xf32, #tpu.memory_space<smem>>
    %474 = vector.broadcast %473 : f32 to vector<16x34xf32>
    %475 = arith.mulf %474, %460 : vector<16x34xf32>
    %476 = arith.addf %458, %475 : vector<16x34xf32>
    %c2_210 = arith.constant 2 : index
    %c0_211 = arith.constant 0 : index
    %c0_212 = arith.constant 0 : index
    %477 = vector.load %arg11[%c2_210, %c0_211, %c0_212] : memref<4x18x36xf32, #tpu.memory_space<vmem>>, vector<1x18x34xf32>
    %478 = vector.shape_cast %477 : vector<1x18x34xf32> to vector<18x34xf32>
    %c2_213 = arith.constant 2 : index
    %c0_214 = arith.constant 0 : index
    %c1_215 = arith.constant 1 : index
    %479 = vector.load %arg11[%c2_213, %c0_214, %c1_215] : memref<4x18x36xf32, #tpu.memory_space<vmem>>, vector<1x18x34xf32>
    %480 = vector.shape_cast %479 : vector<1x18x34xf32> to vector<18x34xf32>
    %c2_216 = arith.constant 2 : index
    %c0_217 = arith.constant 0 : index
    %c2_218 = arith.constant 2 : index
    %481 = vector.load %arg11[%c2_216, %c0_217, %c2_218] : memref<4x18x36xf32, #tpu.memory_space<vmem>>, vector<1x18x34xf32>
    %482 = vector.shape_cast %481 : vector<1x18x34xf32> to vector<18x34xf32>
    %c2_219 = arith.constant 2 : index
    %c0_220 = arith.constant 0 : index
    %c0_221 = arith.constant 0 : index
    %483 = vector.load %arg12[%c2_219, %c0_220, %c0_221] : memref<4x18x36xf32, #tpu.memory_space<vmem>>, vector<1x18x34xf32>
    %484 = vector.shape_cast %483 : vector<1x18x34xf32> to vector<18x34xf32>
    %c2_222 = arith.constant 2 : index
    %c0_223 = arith.constant 0 : index
    %c1_224 = arith.constant 1 : index
    %485 = vector.load %arg12[%c2_222, %c0_223, %c1_224] : memref<4x18x36xf32, #tpu.memory_space<vmem>>, vector<1x18x34xf32>
    %486 = vector.shape_cast %485 : vector<1x18x34xf32> to vector<18x34xf32>
    %c2_225 = arith.constant 2 : index
    %c0_226 = arith.constant 0 : index
    %c2_227 = arith.constant 2 : index
    %487 = vector.load %arg12[%c2_225, %c0_226, %c2_227] : memref<4x18x36xf32, #tpu.memory_space<vmem>>, vector<1x18x34xf32>
    %488 = vector.shape_cast %487 : vector<1x18x34xf32> to vector<18x34xf32>
    %489 = vector.extract_strided_slice %478 {offsets = [0, 0], sizes = [16, 34], strides = [1, 1]} : vector<18x34xf32> to vector<16x34xf32>
    %490 = vector.extract_strided_slice %484 {offsets = [0, 0], sizes = [16, 34], strides = [1, 1]} : vector<18x34xf32> to vector<16x34xf32>
    %c4 = arith.constant 4 : index
    %491 = memref.load %arg3[%c4] : memref<72xf32, #tpu.memory_space<smem>>
    %492 = vector.broadcast %491 : f32 to vector<16x34xf32>
    %493 = arith.mulf %492, %489 : vector<16x34xf32>
    %494 = arith.addf %464, %493 : vector<16x34xf32>
    %c4_228 = arith.constant 4 : index
    %495 = memref.load %arg5[%c4_228] : memref<72xf32, #tpu.memory_space<smem>>
    %496 = vector.broadcast %495 : f32 to vector<16x34xf32>
    %497 = arith.mulf %496, %490 : vector<16x34xf32>
    %498 = arith.addf %468, %497 : vector<16x34xf32>
    %c5 = arith.constant 5 : index
    %499 = memref.load %arg3[%c5] : memref<72xf32, #tpu.memory_space<smem>>
    %500 = vector.broadcast %499 : f32 to vector<16x34xf32>
    %501 = arith.mulf %500, %489 : vector<16x34xf32>
    %502 = arith.addf %472, %501 : vector<16x34xf32>
    %c5_229 = arith.constant 5 : index
    %503 = memref.load %arg5[%c5_229] : memref<72xf32, #tpu.memory_space<smem>>
    %504 = vector.broadcast %503 : f32 to vector<16x34xf32>
    %505 = arith.mulf %504, %490 : vector<16x34xf32>
    %506 = arith.addf %476, %505 : vector<16x34xf32>
    %507 = vector.extract_strided_slice %478 {offsets = [1, 0], sizes = [16, 34], strides = [1, 1]} : vector<18x34xf32> to vector<16x34xf32>
    %508 = vector.extract_strided_slice %484 {offsets = [1, 0], sizes = [16, 34], strides = [1, 1]} : vector<18x34xf32> to vector<16x34xf32>
    %c28 = arith.constant 28 : index
    %509 = memref.load %arg3[%c28] : memref<72xf32, #tpu.memory_space<smem>>
    %510 = vector.broadcast %509 : f32 to vector<16x34xf32>
    %511 = arith.mulf %510, %507 : vector<16x34xf32>
    %512 = arith.addf %494, %511 : vector<16x34xf32>
    %c28_230 = arith.constant 28 : index
    %513 = memref.load %arg5[%c28_230] : memref<72xf32, #tpu.memory_space<smem>>
    %514 = vector.broadcast %513 : f32 to vector<16x34xf32>
    %515 = arith.mulf %514, %508 : vector<16x34xf32>
    %516 = arith.addf %498, %515 : vector<16x34xf32>
    %c29 = arith.constant 29 : index
    %517 = memref.load %arg3[%c29] : memref<72xf32, #tpu.memory_space<smem>>
    %518 = vector.broadcast %517 : f32 to vector<16x34xf32>
    %519 = arith.mulf %518, %507 : vector<16x34xf32>
    %520 = arith.addf %502, %519 : vector<16x34xf32>
    %c29_231 = arith.constant 29 : index
    %521 = memref.load %arg5[%c29_231] : memref<72xf32, #tpu.memory_space<smem>>
    %522 = vector.broadcast %521 : f32 to vector<16x34xf32>
    %523 = arith.mulf %522, %508 : vector<16x34xf32>
    %524 = arith.addf %506, %523 : vector<16x34xf32>
    %525 = vector.extract_strided_slice %478 {offsets = [2, 0], sizes = [16, 34], strides = [1, 1]} : vector<18x34xf32> to vector<16x34xf32>
    %526 = vector.extract_strided_slice %484 {offsets = [2, 0], sizes = [16, 34], strides = [1, 1]} : vector<18x34xf32> to vector<16x34xf32>
    %c52 = arith.constant 52 : index
    %527 = memref.load %arg3[%c52] : memref<72xf32, #tpu.memory_space<smem>>
    %528 = vector.broadcast %527 : f32 to vector<16x34xf32>
    %529 = arith.mulf %528, %525 : vector<16x34xf32>
    %530 = arith.addf %512, %529 : vector<16x34xf32>
    %c52_232 = arith.constant 52 : index
    %531 = memref.load %arg5[%c52_232] : memref<72xf32, #tpu.memory_space<smem>>
    %532 = vector.broadcast %531 : f32 to vector<16x34xf32>
    %533 = arith.mulf %532, %526 : vector<16x34xf32>
    %534 = arith.addf %516, %533 : vector<16x34xf32>
    %c53 = arith.constant 53 : index
    %535 = memref.load %arg3[%c53] : memref<72xf32, #tpu.memory_space<smem>>
    %536 = vector.broadcast %535 : f32 to vector<16x34xf32>
    %537 = arith.mulf %536, %525 : vector<16x34xf32>
    %538 = arith.addf %520, %537 : vector<16x34xf32>
    %c53_233 = arith.constant 53 : index
    %539 = memref.load %arg5[%c53_233] : memref<72xf32, #tpu.memory_space<smem>>
    %540 = vector.broadcast %539 : f32 to vector<16x34xf32>
    %541 = arith.mulf %540, %526 : vector<16x34xf32>
    %542 = arith.addf %524, %541 : vector<16x34xf32>
    %543 = vector.extract_strided_slice %480 {offsets = [0, 0], sizes = [16, 34], strides = [1, 1]} : vector<18x34xf32> to vector<16x34xf32>
    %544 = vector.extract_strided_slice %486 {offsets = [0, 0], sizes = [16, 34], strides = [1, 1]} : vector<18x34xf32> to vector<16x34xf32>
    %c12 = arith.constant 12 : index
    %545 = memref.load %arg3[%c12] : memref<72xf32, #tpu.memory_space<smem>>
    %546 = vector.broadcast %545 : f32 to vector<16x34xf32>
    %547 = arith.mulf %546, %543 : vector<16x34xf32>
    %548 = arith.addf %530, %547 : vector<16x34xf32>
    %c12_234 = arith.constant 12 : index
    %549 = memref.load %arg5[%c12_234] : memref<72xf32, #tpu.memory_space<smem>>
    %550 = vector.broadcast %549 : f32 to vector<16x34xf32>
    %551 = arith.mulf %550, %544 : vector<16x34xf32>
    %552 = arith.addf %534, %551 : vector<16x34xf32>
    %c13 = arith.constant 13 : index
    %553 = memref.load %arg3[%c13] : memref<72xf32, #tpu.memory_space<smem>>
    %554 = vector.broadcast %553 : f32 to vector<16x34xf32>
    %555 = arith.mulf %554, %543 : vector<16x34xf32>
    %556 = arith.addf %538, %555 : vector<16x34xf32>
    %c13_235 = arith.constant 13 : index
    %557 = memref.load %arg5[%c13_235] : memref<72xf32, #tpu.memory_space<smem>>
    %558 = vector.broadcast %557 : f32 to vector<16x34xf32>
    %559 = arith.mulf %558, %544 : vector<16x34xf32>
    %560 = arith.addf %542, %559 : vector<16x34xf32>
    %561 = vector.extract_strided_slice %480 {offsets = [1, 0], sizes = [16, 34], strides = [1, 1]} : vector<18x34xf32> to vector<16x34xf32>
    %562 = vector.extract_strided_slice %486 {offsets = [1, 0], sizes = [16, 34], strides = [1, 1]} : vector<18x34xf32> to vector<16x34xf32>
    %c36 = arith.constant 36 : index
    %563 = memref.load %arg3[%c36] : memref<72xf32, #tpu.memory_space<smem>>
    %564 = vector.broadcast %563 : f32 to vector<16x34xf32>
    %565 = arith.mulf %564, %561 : vector<16x34xf32>
    %566 = arith.addf %548, %565 : vector<16x34xf32>
    %c36_236 = arith.constant 36 : index
    %567 = memref.load %arg5[%c36_236] : memref<72xf32, #tpu.memory_space<smem>>
    %568 = vector.broadcast %567 : f32 to vector<16x34xf32>
    %569 = arith.mulf %568, %562 : vector<16x34xf32>
    %570 = arith.addf %552, %569 : vector<16x34xf32>
    %c37 = arith.constant 37 : index
    %571 = memref.load %arg3[%c37] : memref<72xf32, #tpu.memory_space<smem>>
    %572 = vector.broadcast %571 : f32 to vector<16x34xf32>
    %573 = arith.mulf %572, %561 : vector<16x34xf32>
    %574 = arith.addf %556, %573 : vector<16x34xf32>
    %c37_237 = arith.constant 37 : index
    %575 = memref.load %arg5[%c37_237] : memref<72xf32, #tpu.memory_space<smem>>
    %576 = vector.broadcast %575 : f32 to vector<16x34xf32>
    %577 = arith.mulf %576, %562 : vector<16x34xf32>
    %578 = arith.addf %560, %577 : vector<16x34xf32>
    %579 = vector.extract_strided_slice %480 {offsets = [2, 0], sizes = [16, 34], strides = [1, 1]} : vector<18x34xf32> to vector<16x34xf32>
    %580 = vector.extract_strided_slice %486 {offsets = [2, 0], sizes = [16, 34], strides = [1, 1]} : vector<18x34xf32> to vector<16x34xf32>
    %c60 = arith.constant 60 : index
    %581 = memref.load %arg3[%c60] : memref<72xf32, #tpu.memory_space<smem>>
    %582 = vector.broadcast %581 : f32 to vector<16x34xf32>
    %583 = arith.mulf %582, %579 : vector<16x34xf32>
    %584 = arith.addf %566, %583 : vector<16x34xf32>
    %c60_238 = arith.constant 60 : index
    %585 = memref.load %arg5[%c60_238] : memref<72xf32, #tpu.memory_space<smem>>
    %586 = vector.broadcast %585 : f32 to vector<16x34xf32>
    %587 = arith.mulf %586, %580 : vector<16x34xf32>
    %588 = arith.addf %570, %587 : vector<16x34xf32>
    %c61 = arith.constant 61 : index
    %589 = memref.load %arg3[%c61] : memref<72xf32, #tpu.memory_space<smem>>
    %590 = vector.broadcast %589 : f32 to vector<16x34xf32>
    %591 = arith.mulf %590, %579 : vector<16x34xf32>
    %592 = arith.addf %574, %591 : vector<16x34xf32>
    %c61_239 = arith.constant 61 : index
    %593 = memref.load %arg5[%c61_239] : memref<72xf32, #tpu.memory_space<smem>>
    %594 = vector.broadcast %593 : f32 to vector<16x34xf32>
    %595 = arith.mulf %594, %580 : vector<16x34xf32>
    %596 = arith.addf %578, %595 : vector<16x34xf32>
    %597 = vector.extract_strided_slice %482 {offsets = [0, 0], sizes = [16, 34], strides = [1, 1]} : vector<18x34xf32> to vector<16x34xf32>
    %598 = vector.extract_strided_slice %488 {offsets = [0, 0], sizes = [16, 34], strides = [1, 1]} : vector<18x34xf32> to vector<16x34xf32>
    %c20 = arith.constant 20 : index
    %599 = memref.load %arg3[%c20] : memref<72xf32, #tpu.memory_space<smem>>
    %600 = vector.broadcast %599 : f32 to vector<16x34xf32>
    %601 = arith.mulf %600, %597 : vector<16x34xf32>
    %602 = arith.addf %584, %601 : vector<16x34xf32>
    %c20_240 = arith.constant 20 : index
    %603 = memref.load %arg5[%c20_240] : memref<72xf32, #tpu.memory_space<smem>>
    %604 = vector.broadcast %603 : f32 to vector<16x34xf32>
    %605 = arith.mulf %604, %598 : vector<16x34xf32>
    %606 = arith.addf %588, %605 : vector<16x34xf32>
    %c21 = arith.constant 21 : index
    %607 = memref.load %arg3[%c21] : memref<72xf32, #tpu.memory_space<smem>>
    %608 = vector.broadcast %607 : f32 to vector<16x34xf32>
    %609 = arith.mulf %608, %597 : vector<16x34xf32>
    %610 = arith.addf %592, %609 : vector<16x34xf32>
    %c21_241 = arith.constant 21 : index
    %611 = memref.load %arg5[%c21_241] : memref<72xf32, #tpu.memory_space<smem>>
    %612 = vector.broadcast %611 : f32 to vector<16x34xf32>
    %613 = arith.mulf %612, %598 : vector<16x34xf32>
    %614 = arith.addf %596, %613 : vector<16x34xf32>
    %615 = vector.extract_strided_slice %482 {offsets = [1, 0], sizes = [16, 34], strides = [1, 1]} : vector<18x34xf32> to vector<16x34xf32>
    %616 = vector.extract_strided_slice %488 {offsets = [1, 0], sizes = [16, 34], strides = [1, 1]} : vector<18x34xf32> to vector<16x34xf32>
    %c44 = arith.constant 44 : index
    %617 = memref.load %arg3[%c44] : memref<72xf32, #tpu.memory_space<smem>>
    %618 = vector.broadcast %617 : f32 to vector<16x34xf32>
    %619 = arith.mulf %618, %615 : vector<16x34xf32>
    %620 = arith.addf %602, %619 : vector<16x34xf32>
    %c44_242 = arith.constant 44 : index
    %621 = memref.load %arg5[%c44_242] : memref<72xf32, #tpu.memory_space<smem>>
    %622 = vector.broadcast %621 : f32 to vector<16x34xf32>
    %623 = arith.mulf %622, %616 : vector<16x34xf32>
    %624 = arith.addf %606, %623 : vector<16x34xf32>
    %c45 = arith.constant 45 : index
    %625 = memref.load %arg3[%c45] : memref<72xf32, #tpu.memory_space<smem>>
    %626 = vector.broadcast %625 : f32 to vector<16x34xf32>
    %627 = arith.mulf %626, %615 : vector<16x34xf32>
    %628 = arith.addf %610, %627 : vector<16x34xf32>
    %c45_243 = arith.constant 45 : index
    %629 = memref.load %arg5[%c45_243] : memref<72xf32, #tpu.memory_space<smem>>
    %630 = vector.broadcast %629 : f32 to vector<16x34xf32>
    %631 = arith.mulf %630, %616 : vector<16x34xf32>
    %632 = arith.addf %614, %631 : vector<16x34xf32>
    %633 = vector.extract_strided_slice %482 {offsets = [2, 0], sizes = [16, 34], strides = [1, 1]} : vector<18x34xf32> to vector<16x34xf32>
    %634 = vector.extract_strided_slice %488 {offsets = [2, 0], sizes = [16, 34], strides = [1, 1]} : vector<18x34xf32> to vector<16x34xf32>
    %c68 = arith.constant 68 : index
    %635 = memref.load %arg3[%c68] : memref<72xf32, #tpu.memory_space<smem>>
    %636 = vector.broadcast %635 : f32 to vector<16x34xf32>
    %637 = arith.mulf %636, %633 : vector<16x34xf32>
    %638 = arith.addf %620, %637 : vector<16x34xf32>
    %c68_244 = arith.constant 68 : index
    %639 = memref.load %arg5[%c68_244] : memref<72xf32, #tpu.memory_space<smem>>
    %640 = vector.broadcast %639 : f32 to vector<16x34xf32>
    %641 = arith.mulf %640, %634 : vector<16x34xf32>
    %642 = arith.addf %624, %641 : vector<16x34xf32>
    %c69 = arith.constant 69 : index
    %643 = memref.load %arg3[%c69] : memref<72xf32, #tpu.memory_space<smem>>
    %644 = vector.broadcast %643 : f32 to vector<16x34xf32>
    %645 = arith.mulf %644, %633 : vector<16x34xf32>
    %646 = arith.addf %628, %645 : vector<16x34xf32>
    %c69_245 = arith.constant 69 : index
    %647 = memref.load %arg5[%c69_245] : memref<72xf32, #tpu.memory_space<smem>>
    %648 = vector.broadcast %647 : f32 to vector<16x34xf32>
    %649 = arith.mulf %648, %634 : vector<16x34xf32>
    %650 = arith.addf %632, %649 : vector<16x34xf32>
    %c3_246 = arith.constant 3 : index
    %c0_247 = arith.constant 0 : index
    %c0_248 = arith.constant 0 : index
    %651 = vector.load %arg11[%c3_246, %c0_247, %c0_248] : memref<4x18x36xf32, #tpu.memory_space<vmem>>, vector<1x18x34xf32>
    %652 = vector.shape_cast %651 : vector<1x18x34xf32> to vector<18x34xf32>
    %c3_249 = arith.constant 3 : index
    %c0_250 = arith.constant 0 : index
    %c1_251 = arith.constant 1 : index
    %653 = vector.load %arg11[%c3_249, %c0_250, %c1_251] : memref<4x18x36xf32, #tpu.memory_space<vmem>>, vector<1x18x34xf32>
    %654 = vector.shape_cast %653 : vector<1x18x34xf32> to vector<18x34xf32>
    %c3_252 = arith.constant 3 : index
    %c0_253 = arith.constant 0 : index
    %c2_254 = arith.constant 2 : index
    %655 = vector.load %arg11[%c3_252, %c0_253, %c2_254] : memref<4x18x36xf32, #tpu.memory_space<vmem>>, vector<1x18x34xf32>
    %656 = vector.shape_cast %655 : vector<1x18x34xf32> to vector<18x34xf32>
    %c3_255 = arith.constant 3 : index
    %c0_256 = arith.constant 0 : index
    %c0_257 = arith.constant 0 : index
    %657 = vector.load %arg12[%c3_255, %c0_256, %c0_257] : memref<4x18x36xf32, #tpu.memory_space<vmem>>, vector<1x18x34xf32>
    %658 = vector.shape_cast %657 : vector<1x18x34xf32> to vector<18x34xf32>
    %c3_258 = arith.constant 3 : index
    %c0_259 = arith.constant 0 : index
    %c1_260 = arith.constant 1 : index
    %659 = vector.load %arg12[%c3_258, %c0_259, %c1_260] : memref<4x18x36xf32, #tpu.memory_space<vmem>>, vector<1x18x34xf32>
    %660 = vector.shape_cast %659 : vector<1x18x34xf32> to vector<18x34xf32>
    %c3_261 = arith.constant 3 : index
    %c0_262 = arith.constant 0 : index
    %c2_263 = arith.constant 2 : index
    %661 = vector.load %arg12[%c3_261, %c0_262, %c2_263] : memref<4x18x36xf32, #tpu.memory_space<vmem>>, vector<1x18x34xf32>
    %662 = vector.shape_cast %661 : vector<1x18x34xf32> to vector<18x34xf32>
    %663 = vector.extract_strided_slice %652 {offsets = [0, 0], sizes = [16, 34], strides = [1, 1]} : vector<18x34xf32> to vector<16x34xf32>
    %664 = vector.extract_strided_slice %658 {offsets = [0, 0], sizes = [16, 34], strides = [1, 1]} : vector<18x34xf32> to vector<16x34xf32>
    %c6 = arith.constant 6 : index
    %665 = memref.load %arg3[%c6] : memref<72xf32, #tpu.memory_space<smem>>
    %666 = vector.broadcast %665 : f32 to vector<16x34xf32>
    %667 = arith.mulf %666, %663 : vector<16x34xf32>
    %668 = arith.addf %638, %667 : vector<16x34xf32>
    %c6_264 = arith.constant 6 : index
    %669 = memref.load %arg5[%c6_264] : memref<72xf32, #tpu.memory_space<smem>>
    %670 = vector.broadcast %669 : f32 to vector<16x34xf32>
    %671 = arith.mulf %670, %664 : vector<16x34xf32>
    %672 = arith.addf %642, %671 : vector<16x34xf32>
    %c7 = arith.constant 7 : index
    %673 = memref.load %arg3[%c7] : memref<72xf32, #tpu.memory_space<smem>>
    %674 = vector.broadcast %673 : f32 to vector<16x34xf32>
    %675 = arith.mulf %674, %663 : vector<16x34xf32>
    %676 = arith.addf %646, %675 : vector<16x34xf32>
    %c7_265 = arith.constant 7 : index
    %677 = memref.load %arg5[%c7_265] : memref<72xf32, #tpu.memory_space<smem>>
    %678 = vector.broadcast %677 : f32 to vector<16x34xf32>
    %679 = arith.mulf %678, %664 : vector<16x34xf32>
    %680 = arith.addf %650, %679 : vector<16x34xf32>
    %681 = vector.extract_strided_slice %652 {offsets = [1, 0], sizes = [16, 34], strides = [1, 1]} : vector<18x34xf32> to vector<16x34xf32>
    %682 = vector.extract_strided_slice %658 {offsets = [1, 0], sizes = [16, 34], strides = [1, 1]} : vector<18x34xf32> to vector<16x34xf32>
    %c30 = arith.constant 30 : index
    %683 = memref.load %arg3[%c30] : memref<72xf32, #tpu.memory_space<smem>>
    %684 = vector.broadcast %683 : f32 to vector<16x34xf32>
    %685 = arith.mulf %684, %681 : vector<16x34xf32>
    %686 = arith.addf %668, %685 : vector<16x34xf32>
    %c30_266 = arith.constant 30 : index
    %687 = memref.load %arg5[%c30_266] : memref<72xf32, #tpu.memory_space<smem>>
    %688 = vector.broadcast %687 : f32 to vector<16x34xf32>
    %689 = arith.mulf %688, %682 : vector<16x34xf32>
    %690 = arith.addf %672, %689 : vector<16x34xf32>
    %c31 = arith.constant 31 : index
    %691 = memref.load %arg3[%c31] : memref<72xf32, #tpu.memory_space<smem>>
    %692 = vector.broadcast %691 : f32 to vector<16x34xf32>
    %693 = arith.mulf %692, %681 : vector<16x34xf32>
    %694 = arith.addf %676, %693 : vector<16x34xf32>
    %c31_267 = arith.constant 31 : index
    %695 = memref.load %arg5[%c31_267] : memref<72xf32, #tpu.memory_space<smem>>
    %696 = vector.broadcast %695 : f32 to vector<16x34xf32>
    %697 = arith.mulf %696, %682 : vector<16x34xf32>
    %698 = arith.addf %680, %697 : vector<16x34xf32>
    %699 = vector.extract_strided_slice %652 {offsets = [2, 0], sizes = [16, 34], strides = [1, 1]} : vector<18x34xf32> to vector<16x34xf32>
    %700 = vector.extract_strided_slice %658 {offsets = [2, 0], sizes = [16, 34], strides = [1, 1]} : vector<18x34xf32> to vector<16x34xf32>
    %c54 = arith.constant 54 : index
    %701 = memref.load %arg3[%c54] : memref<72xf32, #tpu.memory_space<smem>>
    %702 = vector.broadcast %701 : f32 to vector<16x34xf32>
    %703 = arith.mulf %702, %699 : vector<16x34xf32>
    %704 = arith.addf %686, %703 : vector<16x34xf32>
    %c54_268 = arith.constant 54 : index
    %705 = memref.load %arg5[%c54_268] : memref<72xf32, #tpu.memory_space<smem>>
    %706 = vector.broadcast %705 : f32 to vector<16x34xf32>
    %707 = arith.mulf %706, %700 : vector<16x34xf32>
    %708 = arith.addf %690, %707 : vector<16x34xf32>
    %c55 = arith.constant 55 : index
    %709 = memref.load %arg3[%c55] : memref<72xf32, #tpu.memory_space<smem>>
    %710 = vector.broadcast %709 : f32 to vector<16x34xf32>
    %711 = arith.mulf %710, %699 : vector<16x34xf32>
    %712 = arith.addf %694, %711 : vector<16x34xf32>
    %c55_269 = arith.constant 55 : index
    %713 = memref.load %arg5[%c55_269] : memref<72xf32, #tpu.memory_space<smem>>
    %714 = vector.broadcast %713 : f32 to vector<16x34xf32>
    %715 = arith.mulf %714, %700 : vector<16x34xf32>
    %716 = arith.addf %698, %715 : vector<16x34xf32>
    %717 = vector.extract_strided_slice %654 {offsets = [0, 0], sizes = [16, 34], strides = [1, 1]} : vector<18x34xf32> to vector<16x34xf32>
    %718 = vector.extract_strided_slice %660 {offsets = [0, 0], sizes = [16, 34], strides = [1, 1]} : vector<18x34xf32> to vector<16x34xf32>
    %c14 = arith.constant 14 : index
    %719 = memref.load %arg3[%c14] : memref<72xf32, #tpu.memory_space<smem>>
    %720 = vector.broadcast %719 : f32 to vector<16x34xf32>
    %721 = arith.mulf %720, %717 : vector<16x34xf32>
    %722 = arith.addf %704, %721 : vector<16x34xf32>
    %c14_270 = arith.constant 14 : index
    %723 = memref.load %arg5[%c14_270] : memref<72xf32, #tpu.memory_space<smem>>
    %724 = vector.broadcast %723 : f32 to vector<16x34xf32>
    %725 = arith.mulf %724, %718 : vector<16x34xf32>
    %726 = arith.addf %708, %725 : vector<16x34xf32>
    %c15 = arith.constant 15 : index
    %727 = memref.load %arg3[%c15] : memref<72xf32, #tpu.memory_space<smem>>
    %728 = vector.broadcast %727 : f32 to vector<16x34xf32>
    %729 = arith.mulf %728, %717 : vector<16x34xf32>
    %730 = arith.addf %712, %729 : vector<16x34xf32>
    %c15_271 = arith.constant 15 : index
    %731 = memref.load %arg5[%c15_271] : memref<72xf32, #tpu.memory_space<smem>>
    %732 = vector.broadcast %731 : f32 to vector<16x34xf32>
    %733 = arith.mulf %732, %718 : vector<16x34xf32>
    %734 = arith.addf %716, %733 : vector<16x34xf32>
    %735 = vector.extract_strided_slice %654 {offsets = [1, 0], sizes = [16, 34], strides = [1, 1]} : vector<18x34xf32> to vector<16x34xf32>
    %736 = vector.extract_strided_slice %660 {offsets = [1, 0], sizes = [16, 34], strides = [1, 1]} : vector<18x34xf32> to vector<16x34xf32>
    %c38 = arith.constant 38 : index
    %737 = memref.load %arg3[%c38] : memref<72xf32, #tpu.memory_space<smem>>
    %738 = vector.broadcast %737 : f32 to vector<16x34xf32>
    %739 = arith.mulf %738, %735 : vector<16x34xf32>
    %740 = arith.addf %722, %739 : vector<16x34xf32>
    %c38_272 = arith.constant 38 : index
    %741 = memref.load %arg5[%c38_272] : memref<72xf32, #tpu.memory_space<smem>>
    %742 = vector.broadcast %741 : f32 to vector<16x34xf32>
    %743 = arith.mulf %742, %736 : vector<16x34xf32>
    %744 = arith.addf %726, %743 : vector<16x34xf32>
    %c39 = arith.constant 39 : index
    %745 = memref.load %arg3[%c39] : memref<72xf32, #tpu.memory_space<smem>>
    %746 = vector.broadcast %745 : f32 to vector<16x34xf32>
    %747 = arith.mulf %746, %735 : vector<16x34xf32>
    %748 = arith.addf %730, %747 : vector<16x34xf32>
    %c39_273 = arith.constant 39 : index
    %749 = memref.load %arg5[%c39_273] : memref<72xf32, #tpu.memory_space<smem>>
    %750 = vector.broadcast %749 : f32 to vector<16x34xf32>
    %751 = arith.mulf %750, %736 : vector<16x34xf32>
    %752 = arith.addf %734, %751 : vector<16x34xf32>
    %753 = vector.extract_strided_slice %654 {offsets = [2, 0], sizes = [16, 34], strides = [1, 1]} : vector<18x34xf32> to vector<16x34xf32>
    %754 = vector.extract_strided_slice %660 {offsets = [2, 0], sizes = [16, 34], strides = [1, 1]} : vector<18x34xf32> to vector<16x34xf32>
    %c62 = arith.constant 62 : index
    %755 = memref.load %arg3[%c62] : memref<72xf32, #tpu.memory_space<smem>>
    %756 = vector.broadcast %755 : f32 to vector<16x34xf32>
    %757 = arith.mulf %756, %753 : vector<16x34xf32>
    %758 = arith.addf %740, %757 : vector<16x34xf32>
    %c62_274 = arith.constant 62 : index
    %759 = memref.load %arg5[%c62_274] : memref<72xf32, #tpu.memory_space<smem>>
    %760 = vector.broadcast %759 : f32 to vector<16x34xf32>
    %761 = arith.mulf %760, %754 : vector<16x34xf32>
    %762 = arith.addf %744, %761 : vector<16x34xf32>
    %c63 = arith.constant 63 : index
    %763 = memref.load %arg3[%c63] : memref<72xf32, #tpu.memory_space<smem>>
    %764 = vector.broadcast %763 : f32 to vector<16x34xf32>
    %765 = arith.mulf %764, %753 : vector<16x34xf32>
    %766 = arith.addf %748, %765 : vector<16x34xf32>
    %c63_275 = arith.constant 63 : index
    %767 = memref.load %arg5[%c63_275] : memref<72xf32, #tpu.memory_space<smem>>
    %768 = vector.broadcast %767 : f32 to vector<16x34xf32>
    %769 = arith.mulf %768, %754 : vector<16x34xf32>
    %770 = arith.addf %752, %769 : vector<16x34xf32>
    %771 = vector.extract_strided_slice %656 {offsets = [0, 0], sizes = [16, 34], strides = [1, 1]} : vector<18x34xf32> to vector<16x34xf32>
    %772 = vector.extract_strided_slice %662 {offsets = [0, 0], sizes = [16, 34], strides = [1, 1]} : vector<18x34xf32> to vector<16x34xf32>
    %c22 = arith.constant 22 : index
    %773 = memref.load %arg3[%c22] : memref<72xf32, #tpu.memory_space<smem>>
    %774 = vector.broadcast %773 : f32 to vector<16x34xf32>
    %775 = arith.mulf %774, %771 : vector<16x34xf32>
    %776 = arith.addf %758, %775 : vector<16x34xf32>
    %c22_276 = arith.constant 22 : index
    %777 = memref.load %arg5[%c22_276] : memref<72xf32, #tpu.memory_space<smem>>
    %778 = vector.broadcast %777 : f32 to vector<16x34xf32>
    %779 = arith.mulf %778, %772 : vector<16x34xf32>
    %780 = arith.addf %762, %779 : vector<16x34xf32>
    %c23 = arith.constant 23 : index
    %781 = memref.load %arg3[%c23] : memref<72xf32, #tpu.memory_space<smem>>
    %782 = vector.broadcast %781 : f32 to vector<16x34xf32>
    %783 = arith.mulf %782, %771 : vector<16x34xf32>
    %784 = arith.addf %766, %783 : vector<16x34xf32>
    %c23_277 = arith.constant 23 : index
    %785 = memref.load %arg5[%c23_277] : memref<72xf32, #tpu.memory_space<smem>>
    %786 = vector.broadcast %785 : f32 to vector<16x34xf32>
    %787 = arith.mulf %786, %772 : vector<16x34xf32>
    %788 = arith.addf %770, %787 : vector<16x34xf32>
    %789 = vector.extract_strided_slice %656 {offsets = [1, 0], sizes = [16, 34], strides = [1, 1]} : vector<18x34xf32> to vector<16x34xf32>
    %790 = vector.extract_strided_slice %662 {offsets = [1, 0], sizes = [16, 34], strides = [1, 1]} : vector<18x34xf32> to vector<16x34xf32>
    %c46 = arith.constant 46 : index
    %791 = memref.load %arg3[%c46] : memref<72xf32, #tpu.memory_space<smem>>
    %792 = vector.broadcast %791 : f32 to vector<16x34xf32>
    %793 = arith.mulf %792, %789 : vector<16x34xf32>
    %794 = arith.addf %776, %793 : vector<16x34xf32>
    %c46_278 = arith.constant 46 : index
    %795 = memref.load %arg5[%c46_278] : memref<72xf32, #tpu.memory_space<smem>>
    %796 = vector.broadcast %795 : f32 to vector<16x34xf32>
    %797 = arith.mulf %796, %790 : vector<16x34xf32>
    %798 = arith.addf %780, %797 : vector<16x34xf32>
    %c47 = arith.constant 47 : index
    %799 = memref.load %arg3[%c47] : memref<72xf32, #tpu.memory_space<smem>>
    %800 = vector.broadcast %799 : f32 to vector<16x34xf32>
    %801 = arith.mulf %800, %789 : vector<16x34xf32>
    %802 = arith.addf %784, %801 : vector<16x34xf32>
    %c47_279 = arith.constant 47 : index
    %803 = memref.load %arg5[%c47_279] : memref<72xf32, #tpu.memory_space<smem>>
    %804 = vector.broadcast %803 : f32 to vector<16x34xf32>
    %805 = arith.mulf %804, %790 : vector<16x34xf32>
    %806 = arith.addf %788, %805 : vector<16x34xf32>
    %807 = vector.extract_strided_slice %656 {offsets = [2, 0], sizes = [16, 34], strides = [1, 1]} : vector<18x34xf32> to vector<16x34xf32>
    %808 = vector.extract_strided_slice %662 {offsets = [2, 0], sizes = [16, 34], strides = [1, 1]} : vector<18x34xf32> to vector<16x34xf32>
    %c70 = arith.constant 70 : index
    %809 = memref.load %arg3[%c70] : memref<72xf32, #tpu.memory_space<smem>>
    %810 = vector.broadcast %809 : f32 to vector<16x34xf32>
    %811 = arith.mulf %810, %807 : vector<16x34xf32>
    %812 = arith.addf %794, %811 : vector<16x34xf32>
    %c70_280 = arith.constant 70 : index
    %813 = memref.load %arg5[%c70_280] : memref<72xf32, #tpu.memory_space<smem>>
    %814 = vector.broadcast %813 : f32 to vector<16x34xf32>
    %815 = arith.mulf %814, %808 : vector<16x34xf32>
    %816 = arith.addf %798, %815 : vector<16x34xf32>
    %c71 = arith.constant 71 : index
    %817 = memref.load %arg3[%c71] : memref<72xf32, #tpu.memory_space<smem>>
    %818 = vector.broadcast %817 : f32 to vector<16x34xf32>
    %819 = arith.mulf %818, %807 : vector<16x34xf32>
    %820 = arith.addf %802, %819 : vector<16x34xf32>
    %c71_281 = arith.constant 71 : index
    %821 = memref.load %arg5[%c71_281] : memref<72xf32, #tpu.memory_space<smem>>
    %822 = vector.broadcast %821 : f32 to vector<16x34xf32>
    %823 = arith.mulf %822, %808 : vector<16x34xf32>
    %824 = arith.addf %806, %823 : vector<16x34xf32>
    %cst_282 = arith.constant 0.000000e+00 : f32
    %825 = vector.broadcast %cst_282 : f32 to vector<16x34xf32>
    %c0_283 = arith.constant 0 : index
    %826 = memref.load %arg9[%c0_283] : memref<8xf32, #tpu.memory_space<smem>>
    %827 = vector.broadcast %826 : f32 to vector<16x34xf32>
    %828 = arith.addf %825, %827 : vector<16x34xf32>
    %c0_284 = arith.constant 0 : index
    %829 = memref.load %arg7[%c0_284] : memref<4xf32, #tpu.memory_space<smem>>
    %830 = vector.broadcast %829 : f32 to vector<16x34xf32>
    %831 = arith.mulf %830, %812 : vector<16x34xf32>
    %832 = arith.addf %828, %831 : vector<16x34xf32>
    %c1_285 = arith.constant 1 : index
    %833 = memref.load %arg7[%c1_285] : memref<4xf32, #tpu.memory_space<smem>>
    %834 = vector.broadcast %833 : f32 to vector<16x34xf32>
    %835 = arith.mulf %834, %820 : vector<16x34xf32>
    %836 = arith.addf %832, %835 : vector<16x34xf32>
    %c2_286 = arith.constant 2 : index
    %837 = memref.load %arg7[%c2_286] : memref<4xf32, #tpu.memory_space<smem>>
    %838 = vector.broadcast %837 : f32 to vector<16x34xf32>
    %839 = arith.mulf %838, %816 : vector<16x34xf32>
    %840 = arith.addf %836, %839 : vector<16x34xf32>
    %c3_287 = arith.constant 3 : index
    %841 = memref.load %arg7[%c3_287] : memref<4xf32, #tpu.memory_space<smem>>
    %842 = vector.broadcast %841 : f32 to vector<16x34xf32>
    %843 = arith.mulf %842, %824 : vector<16x34xf32>
    %844 = arith.addf %840, %843 : vector<16x34xf32>
    %c1_288 = arith.constant 1 : index
    %845 = memref.load %arg9[%c1_288] : memref<8xf32, #tpu.memory_space<smem>>
    %846 = vector.broadcast %845 : f32 to vector<16x34xf32>
    %847 = arith.mulf %844, %846 : vector<16x34xf32>
    %c2_289 = arith.constant 2 : index
    %848 = memref.load %arg9[%c2_289] : memref<8xf32, #tpu.memory_space<smem>>
    %849 = vector.broadcast %848 : f32 to vector<16x34xf32>
    %850 = arith.addf %847, %849 : vector<16x34xf32>
    %851 = arith.maximumf %812, %820 : vector<16x34xf32>
    %852 = arith.addf %812, %820 : vector<16x34xf32>
    %853 = arith.maximumf %851, %816 : vector<16x34xf32>
    %854 = arith.addf %852, %816 : vector<16x34xf32>
    %855 = arith.maximumf %853, %824 : vector<16x34xf32>
    %856 = arith.addf %854, %824 : vector<16x34xf32>
    %cst_290 = arith.constant 2.500000e-01 : f32
    %857 = vector.broadcast %cst_290 : f32 to vector<16x34xf32>
    %858 = arith.mulf %856, %857 : vector<16x34xf32>
    %859 = vector.broadcast %112 : vector<1x34xf32> to vector<16x34xf32>
    %860 = arith.mulf %850, %859 : vector<16x34xf32>
    %c0_291 = arith.constant 0 : index
    %c1_292 = arith.constant 1 : index
    %c1_293 = arith.constant 1 : index
    %861 = vector.load %arg13[%c0_291, %c1_292, %c1_293] : memref<3x18x36xf32, #tpu.memory_space<vmem>>, vector<1x16x34xf32>
    %862 = vector.shape_cast %861 : vector<1x16x34xf32> to vector<16x34xf32>
    %863 = vector.shape_cast %860 : vector<16x34xf32> to vector<1x16x34xf32>
    tpu.vector_store %arg13[%c0_291, %c1_292, %c1_293], %863 {strides = array<i32>} : memref<3x18x36xf32, #tpu.memory_space<vmem>>, vector<1x16x34xf32>,
    %864 = vector.broadcast %112 : vector<1x34xf32> to vector<16x34xf32>
    %865 = arith.mulf %855, %864 : vector<16x34xf32>
    %c1_294 = arith.constant 1 : index
    %c1_295 = arith.constant 1 : index
    %c1_296 = arith.constant 1 : index
    %866 = vector.load %arg13[%c1_294, %c1_295, %c1_296] : memref<3x18x36xf32, #tpu.memory_space<vmem>>, vector<1x16x34xf32>
    %867 = vector.shape_cast %866 : vector<1x16x34xf32> to vector<16x34xf32>
    %868 = vector.shape_cast %865 : vector<16x34xf32> to vector<1x16x34xf32>
    tpu.vector_store %arg13[%c1_294, %c1_295, %c1_296], %868 {strides = array<i32>} : memref<3x18x36xf32, #tpu.memory_space<vmem>>, vector<1x16x34xf32>,
    %869 = vector.broadcast %112 : vector<1x34xf32> to vector<16x34xf32>
    %870 = arith.mulf %858, %869 : vector<16x34xf32>
    %c2_297 = arith.constant 2 : index
    %c1_298 = arith.constant 1 : index
    %c1_299 = arith.constant 1 : index
    %871 = vector.load %arg13[%c2_297, %c1_298, %c1_299] : memref<3x18x36xf32, #tpu.memory_space<vmem>>, vector<1x16x34xf32>
    %872 = vector.shape_cast %871 : vector<1x16x34xf32> to vector<16x34xf32>
    %873 = vector.shape_cast %870 : vector<16x34xf32> to vector<1x16x34xf32>
    tpu.vector_store %arg13[%c2_297, %c1_298, %c1_299], %873 {strides = array<i32>} : memref<3x18x36xf32, #tpu.memory_space<vmem>>, vector<1x16x34xf32>,
    %cst_300 = arith.constant 0.000000e+00 : f32
    %874 = vector.broadcast %cst_300 : f32 to vector<16x34xf32>
    %c3_301 = arith.constant 3 : index
    %875 = memref.load %arg9[%c3_301] : memref<8xf32, #tpu.memory_space<smem>>
    %876 = vector.broadcast %875 : f32 to vector<16x34xf32>
    %877 = arith.addf %874, %876 : vector<16x34xf32>
    %c0_302 = arith.constant 0 : index
    %c0_303 = arith.constant 0 : index
    %c0_304 = arith.constant 0 : index
    %878 = vector.load %arg13[%c0_302, %c0_303, %c0_304] : memref<3x18x36xf32, #tpu.memory_space<vmem>>, vector<1x18x34xf32>
    %879 = vector.shape_cast %878 : vector<1x18x34xf32> to vector<18x34xf32>
    %c0_305 = arith.constant 0 : index
    %c0_306 = arith.constant 0 : index
    %c1_307 = arith.constant 1 : index
    %880 = vector.load %arg13[%c0_305, %c0_306, %c1_307] : memref<3x18x36xf32, #tpu.memory_space<vmem>>, vector<1x18x34xf32>
    %881 = vector.shape_cast %880 : vector<1x18x34xf32> to vector<18x34xf32>
    %c0_308 = arith.constant 0 : index
    %c0_309 = arith.constant 0 : index
    %c2_310 = arith.constant 2 : index
    %882 = vector.load %arg13[%c0_308, %c0_309, %c2_310] : memref<3x18x36xf32, #tpu.memory_space<vmem>>, vector<1x18x34xf32>
    %883 = vector.shape_cast %882 : vector<1x18x34xf32> to vector<18x34xf32>
    %c0_311 = arith.constant 0 : index
    %884 = memref.load %arg8[%c0_311] : memref<27xf32, #tpu.memory_space<smem>>
    %885 = vector.extract_strided_slice %879 {offsets = [0, 0], sizes = [16, 34], strides = [1, 1]} : vector<18x34xf32> to vector<16x34xf32>
    %886 = vector.broadcast %884 : f32 to vector<16x34xf32>
    %887 = arith.mulf %886, %885 : vector<16x34xf32>
    %888 = arith.addf %877, %887 : vector<16x34xf32>
    %c9_312 = arith.constant 9 : index
    %889 = memref.load %arg8[%c9_312] : memref<27xf32, #tpu.memory_space<smem>>
    %890 = vector.extract_strided_slice %879 {offsets = [1, 0], sizes = [16, 34], strides = [1, 1]} : vector<18x34xf32> to vector<16x34xf32>
    %891 = vector.broadcast %889 : f32 to vector<16x34xf32>
    %892 = arith.mulf %891, %890 : vector<16x34xf32>
    %893 = arith.addf %888, %892 : vector<16x34xf32>
    %c18_313 = arith.constant 18 : index
    %894 = memref.load %arg8[%c18_313] : memref<27xf32, #tpu.memory_space<smem>>
    %895 = vector.extract_strided_slice %879 {offsets = [2, 0], sizes = [16, 34], strides = [1, 1]} : vector<18x34xf32> to vector<16x34xf32>
    %896 = vector.broadcast %894 : f32 to vector<16x34xf32>
    %897 = arith.mulf %896, %895 : vector<16x34xf32>
    %898 = arith.addf %893, %897 : vector<16x34xf32>
    %c3_314 = arith.constant 3 : index
    %899 = memref.load %arg8[%c3_314] : memref<27xf32, #tpu.memory_space<smem>>
    %900 = vector.extract_strided_slice %881 {offsets = [0, 0], sizes = [16, 34], strides = [1, 1]} : vector<18x34xf32> to vector<16x34xf32>
    %901 = vector.broadcast %899 : f32 to vector<16x34xf32>
    %902 = arith.mulf %901, %900 : vector<16x34xf32>
    %903 = arith.addf %898, %902 : vector<16x34xf32>
    %c12_315 = arith.constant 12 : index
    %904 = memref.load %arg8[%c12_315] : memref<27xf32, #tpu.memory_space<smem>>
    %905 = vector.extract_strided_slice %881 {offsets = [1, 0], sizes = [16, 34], strides = [1, 1]} : vector<18x34xf32> to vector<16x34xf32>
    %906 = vector.broadcast %904 : f32 to vector<16x34xf32>
    %907 = arith.mulf %906, %905 : vector<16x34xf32>
    %908 = arith.addf %903, %907 : vector<16x34xf32>
    %c21_316 = arith.constant 21 : index
    %909 = memref.load %arg8[%c21_316] : memref<27xf32, #tpu.memory_space<smem>>
    %910 = vector.extract_strided_slice %881 {offsets = [2, 0], sizes = [16, 34], strides = [1, 1]} : vector<18x34xf32> to vector<16x34xf32>
    %911 = vector.broadcast %909 : f32 to vector<16x34xf32>
    %912 = arith.mulf %911, %910 : vector<16x34xf32>
    %913 = arith.addf %908, %912 : vector<16x34xf32>
    %c6_317 = arith.constant 6 : index
    %914 = memref.load %arg8[%c6_317] : memref<27xf32, #tpu.memory_space<smem>>
    %915 = vector.extract_strided_slice %883 {offsets = [0, 0], sizes = [16, 34], strides = [1, 1]} : vector<18x34xf32> to vector<16x34xf32>
    %916 = vector.broadcast %914 : f32 to vector<16x34xf32>
    %917 = arith.mulf %916, %915 : vector<16x34xf32>
    %918 = arith.addf %913, %917 : vector<16x34xf32>
    %c15_318 = arith.constant 15 : index
    %919 = memref.load %arg8[%c15_318] : memref<27xf32, #tpu.memory_space<smem>>
    %920 = vector.extract_strided_slice %883 {offsets = [1, 0], sizes = [16, 34], strides = [1, 1]} : vector<18x34xf32> to vector<16x34xf32>
    %921 = vector.broadcast %919 : f32 to vector<16x34xf32>
    %922 = arith.mulf %921, %920 : vector<16x34xf32>
    %923 = arith.addf %918, %922 : vector<16x34xf32>
    %c24_319 = arith.constant 24 : index
    %924 = memref.load %arg8[%c24_319] : memref<27xf32, #tpu.memory_space<smem>>
    %925 = vector.extract_strided_slice %883 {offsets = [2, 0], sizes = [16, 34], strides = [1, 1]} : vector<18x34xf32> to vector<16x34xf32>
    %926 = vector.broadcast %924 : f32 to vector<16x34xf32>
    %927 = arith.mulf %926, %925 : vector<16x34xf32>
    %928 = arith.addf %923, %927 : vector<16x34xf32>
    %c1_320 = arith.constant 1 : index
    %c0_321 = arith.constant 0 : index
    %c0_322 = arith.constant 0 : index
    %929 = vector.load %arg13[%c1_320, %c0_321, %c0_322] : memref<3x18x36xf32, #tpu.memory_space<vmem>>, vector<1x18x34xf32>
    %930 = vector.shape_cast %929 : vector<1x18x34xf32> to vector<18x34xf32>
    %c1_323 = arith.constant 1 : index
    %c0_324 = arith.constant 0 : index
    %c1_325 = arith.constant 1 : index
    %931 = vector.load %arg13[%c1_323, %c0_324, %c1_325] : memref<3x18x36xf32, #tpu.memory_space<vmem>>, vector<1x18x34xf32>
    %932 = vector.shape_cast %931 : vector<1x18x34xf32> to vector<18x34xf32>
    %c1_326 = arith.constant 1 : index
    %c0_327 = arith.constant 0 : index
    %c2_328 = arith.constant 2 : index
    %933 = vector.load %arg13[%c1_326, %c0_327, %c2_328] : memref<3x18x36xf32, #tpu.memory_space<vmem>>, vector<1x18x34xf32>
    %934 = vector.shape_cast %933 : vector<1x18x34xf32> to vector<18x34xf32>
    %c1_329 = arith.constant 1 : index
    %935 = memref.load %arg8[%c1_329] : memref<27xf32, #tpu.memory_space<smem>>
    %936 = vector.extract_strided_slice %930 {offsets = [0, 0], sizes = [16, 34], strides = [1, 1]} : vector<18x34xf32> to vector<16x34xf32>
    %937 = vector.broadcast %935 : f32 to vector<16x34xf32>
    %938 = arith.mulf %937, %936 : vector<16x34xf32>
    %939 = arith.addf %928, %938 : vector<16x34xf32>
    %c10_330 = arith.constant 10 : index
    %940 = memref.load %arg8[%c10_330] : memref<27xf32, #tpu.memory_space<smem>>
    %941 = vector.extract_strided_slice %930 {offsets = [1, 0], sizes = [16, 34], strides = [1, 1]} : vector<18x34xf32> to vector<16x34xf32>
    %942 = vector.broadcast %940 : f32 to vector<16x34xf32>
    %943 = arith.mulf %942, %941 : vector<16x34xf32>
    %944 = arith.addf %939, %943 : vector<16x34xf32>
    %c19_331 = arith.constant 19 : index
    %945 = memref.load %arg8[%c19_331] : memref<27xf32, #tpu.memory_space<smem>>
    %946 = vector.extract_strided_slice %930 {offsets = [2, 0], sizes = [16, 34], strides = [1, 1]} : vector<18x34xf32> to vector<16x34xf32>
    %947 = vector.broadcast %945 : f32 to vector<16x34xf32>
    %948 = arith.mulf %947, %946 : vector<16x34xf32>
    %949 = arith.addf %944, %948 : vector<16x34xf32>
    %c4_332 = arith.constant 4 : index
    %950 = memref.load %arg8[%c4_332] : memref<27xf32, #tpu.memory_space<smem>>
    %951 = vector.extract_strided_slice %932 {offsets = [0, 0], sizes = [16, 34], strides = [1, 1]} : vector<18x34xf32> to vector<16x34xf32>
    %952 = vector.broadcast %950 : f32 to vector<16x34xf32>
    %953 = arith.mulf %952, %951 : vector<16x34xf32>
    %954 = arith.addf %949, %953 : vector<16x34xf32>
    %c13_333 = arith.constant 13 : index
    %955 = memref.load %arg8[%c13_333] : memref<27xf32, #tpu.memory_space<smem>>
    %956 = vector.extract_strided_slice %932 {offsets = [1, 0], sizes = [16, 34], strides = [1, 1]} : vector<18x34xf32> to vector<16x34xf32>
    %957 = vector.broadcast %955 : f32 to vector<16x34xf32>
    %958 = arith.mulf %957, %956 : vector<16x34xf32>
    %959 = arith.addf %954, %958 : vector<16x34xf32>
    %c22_334 = arith.constant 22 : index
    %960 = memref.load %arg8[%c22_334] : memref<27xf32, #tpu.memory_space<smem>>
    %961 = vector.extract_strided_slice %932 {offsets = [2, 0], sizes = [16, 34], strides = [1, 1]} : vector<18x34xf32> to vector<16x34xf32>
    %962 = vector.broadcast %960 : f32 to vector<16x34xf32>
    %963 = arith.mulf %962, %961 : vector<16x34xf32>
    %964 = arith.addf %959, %963 : vector<16x34xf32>
    %c7_335 = arith.constant 7 : index
    %965 = memref.load %arg8[%c7_335] : memref<27xf32, #tpu.memory_space<smem>>
    %966 = vector.extract_strided_slice %934 {offsets = [0, 0], sizes = [16, 34], strides = [1, 1]} : vector<18x34xf32> to vector<16x34xf32>
    %967 = vector.broadcast %965 : f32 to vector<16x34xf32>
    %968 = arith.mulf %967, %966 : vector<16x34xf32>
    %969 = arith.addf %964, %968 : vector<16x34xf32>
    %c16_336 = arith.constant 16 : index
    %970 = memref.load %arg8[%c16_336] : memref<27xf32, #tpu.memory_space<smem>>
    %971 = vector.extract_strided_slice %934 {offsets = [1, 0], sizes = [16, 34], strides = [1, 1]} : vector<18x34xf32> to vector<16x34xf32>
    %972 = vector.broadcast %970 : f32 to vector<16x34xf32>
    %973 = arith.mulf %972, %971 : vector<16x34xf32>
    %974 = arith.addf %969, %973 : vector<16x34xf32>
    %c25_337 = arith.constant 25 : index
    %975 = memref.load %arg8[%c25_337] : memref<27xf32, #tpu.memory_space<smem>>
    %976 = vector.extract_strided_slice %934 {offsets = [2, 0], sizes = [16, 34], strides = [1, 1]} : vector<18x34xf32> to vector<16x34xf32>
    %977 = vector.broadcast %975 : f32 to vector<16x34xf32>
    %978 = arith.mulf %977, %976 : vector<16x34xf32>
    %979 = arith.addf %974, %978 : vector<16x34xf32>
    %c2_338 = arith.constant 2 : index
    %c0_339 = arith.constant 0 : index
    %c0_340 = arith.constant 0 : index
    %980 = vector.load %arg13[%c2_338, %c0_339, %c0_340] : memref<3x18x36xf32, #tpu.memory_space<vmem>>, vector<1x18x34xf32>
    %981 = vector.shape_cast %980 : vector<1x18x34xf32> to vector<18x34xf32>
    %c2_341 = arith.constant 2 : index
    %c0_342 = arith.constant 0 : index
    %c1_343 = arith.constant 1 : index
    %982 = vector.load %arg13[%c2_341, %c0_342, %c1_343] : memref<3x18x36xf32, #tpu.memory_space<vmem>>, vector<1x18x34xf32>
    %983 = vector.shape_cast %982 : vector<1x18x34xf32> to vector<18x34xf32>
    %c2_344 = arith.constant 2 : index
    %c0_345 = arith.constant 0 : index
    %c2_346 = arith.constant 2 : index
    %984 = vector.load %arg13[%c2_344, %c0_345, %c2_346] : memref<3x18x36xf32, #tpu.memory_space<vmem>>, vector<1x18x34xf32>
    %985 = vector.shape_cast %984 : vector<1x18x34xf32> to vector<18x34xf32>
    %c2_347 = arith.constant 2 : index
    %986 = memref.load %arg8[%c2_347] : memref<27xf32, #tpu.memory_space<smem>>
    %987 = vector.extract_strided_slice %981 {offsets = [0, 0], sizes = [16, 34], strides = [1, 1]} : vector<18x34xf32> to vector<16x34xf32>
    %988 = vector.broadcast %986 : f32 to vector<16x34xf32>
    %989 = arith.mulf %988, %987 : vector<16x34xf32>
    %990 = arith.addf %979, %989 : vector<16x34xf32>
    %c11_348 = arith.constant 11 : index
    %991 = memref.load %arg8[%c11_348] : memref<27xf32, #tpu.memory_space<smem>>
    %992 = vector.extract_strided_slice %981 {offsets = [1, 0], sizes = [16, 34], strides = [1, 1]} : vector<18x34xf32> to vector<16x34xf32>
    %993 = vector.broadcast %991 : f32 to vector<16x34xf32>
    %994 = arith.mulf %993, %992 : vector<16x34xf32>
    %995 = arith.addf %990, %994 : vector<16x34xf32>
    %c20_349 = arith.constant 20 : index
    %996 = memref.load %arg8[%c20_349] : memref<27xf32, #tpu.memory_space<smem>>
    %997 = vector.extract_strided_slice %981 {offsets = [2, 0], sizes = [16, 34], strides = [1, 1]} : vector<18x34xf32> to vector<16x34xf32>
    %998 = vector.broadcast %996 : f32 to vector<16x34xf32>
    %999 = arith.mulf %998, %997 : vector<16x34xf32>
    %1000 = arith.addf %995, %999 : vector<16x34xf32>
    %c5_350 = arith.constant 5 : index
    %1001 = memref.load %arg8[%c5_350] : memref<27xf32, #tpu.memory_space<smem>>
    %1002 = vector.extract_strided_slice %983 {offsets = [0, 0], sizes = [16, 34], strides = [1, 1]} : vector<18x34xf32> to vector<16x34xf32>
    %1003 = vector.broadcast %1001 : f32 to vector<16x34xf32>
    %1004 = arith.mulf %1003, %1002 : vector<16x34xf32>
    %1005 = arith.addf %1000, %1004 : vector<16x34xf32>
    %c14_351 = arith.constant 14 : index
    %1006 = memref.load %arg8[%c14_351] : memref<27xf32, #tpu.memory_space<smem>>
    %1007 = vector.extract_strided_slice %983 {offsets = [1, 0], sizes = [16, 34], strides = [1, 1]} : vector<18x34xf32> to vector<16x34xf32>
    %1008 = vector.broadcast %1006 : f32 to vector<16x34xf32>
    %1009 = arith.mulf %1008, %1007 : vector<16x34xf32>
    %1010 = arith.addf %1005, %1009 : vector<16x34xf32>
    %c23_352 = arith.constant 23 : index
    %1011 = memref.load %arg8[%c23_352] : memref<27xf32, #tpu.memory_space<smem>>
    %1012 = vector.extract_strided_slice %983 {offsets = [2, 0], sizes = [16, 34], strides = [1, 1]} : vector<18x34xf32> to vector<16x34xf32>
    %1013 = vector.broadcast %1011 : f32 to vector<16x34xf32>
    %1014 = arith.mulf %1013, %1012 : vector<16x34xf32>
    %1015 = arith.addf %1010, %1014 : vector<16x34xf32>
    %c8_353 = arith.constant 8 : index
    %1016 = memref.load %arg8[%c8_353] : memref<27xf32, #tpu.memory_space<smem>>
    %1017 = vector.extract_strided_slice %985 {offsets = [0, 0], sizes = [16, 34], strides = [1, 1]} : vector<18x34xf32> to vector<16x34xf32>
    %1018 = vector.broadcast %1016 : f32 to vector<16x34xf32>
    %1019 = arith.mulf %1018, %1017 : vector<16x34xf32>
    %1020 = arith.addf %1015, %1019 : vector<16x34xf32>
    %c17_354 = arith.constant 17 : index
    %1021 = memref.load %arg8[%c17_354] : memref<27xf32, #tpu.memory_space<smem>>
    %1022 = vector.extract_strided_slice %985 {offsets = [1, 0], sizes = [16, 34], strides = [1, 1]} : vector<18x34xf32> to vector<16x34xf32>
    %1023 = vector.broadcast %1021 : f32 to vector<16x34xf32>
    %1024 = arith.mulf %1023, %1022 : vector<16x34xf32>
    %1025 = arith.addf %1020, %1024 : vector<16x34xf32>
    %c26_355 = arith.constant 26 : index
    %1026 = memref.load %arg8[%c26_355] : memref<27xf32, #tpu.memory_space<smem>>
    %1027 = vector.extract_strided_slice %985 {offsets = [2, 0], sizes = [16, 34], strides = [1, 1]} : vector<18x34xf32> to vector<16x34xf32>
    %1028 = vector.broadcast %1026 : f32 to vector<16x34xf32>
    %1029 = arith.mulf %1028, %1027 : vector<16x34xf32>
    %1030 = arith.addf %1025, %1029 : vector<16x34xf32>
    %1031 = arith.negf %1030 : vector<16x34xf32>
    %1032 = math.exp %1031 : vector<16x34xf32>
    %cst_356 = arith.constant 1.000000e+00 : f32
    %1033 = vector.broadcast %cst_356 : f32 to vector<16x34xf32>
    %1034 = arith.addf %1033, %1032 : vector<16x34xf32>
    %1035 = arith.divf %1033, %1034 : vector<16x34xf32>
    %c4_357 = arith.constant 4 : index
    %1036 = memref.load %arg9[%c4_357] : memref<8xf32, #tpu.memory_space<smem>>
    %1037 = vector.broadcast %1036 : f32 to vector<16x34xf32>
    %1038 = arith.mulf %1037, %1035 : vector<16x34xf32>
    %cst_358 = arith.constant 1.000000e+00 : f32
    %1039 = vector.broadcast %cst_358 : f32 to vector<16x34xf32>
    %1040 = arith.addf %1039, %1038 : vector<16x34xf32>
    %c5_359 = arith.constant 5 : index
    %1041 = memref.load %arg9[%c5_359] : memref<8xf32, #tpu.memory_space<smem>>
    %1042 = vector.broadcast %1041 : f32 to vector<16x34xf32>
    %1043 = arith.mulf %1042, %1035 : vector<16x34xf32>
    %cst_360 = arith.constant 1.000000e+00 : f32
    %1044 = vector.broadcast %cst_360 : f32 to vector<16x34xf32>
    %1045 = arith.addf %1044, %1043 : vector<16x34xf32>
    %1046 = arith.mulf %1040, %812 : vector<16x34xf32>
    %1047 = arith.mulf %1040, %820 : vector<16x34xf32>
    %1048 = arith.mulf %1045, %816 : vector<16x34xf32>
    %1049 = arith.mulf %1045, %824 : vector<16x34xf32>
    %1050 = vector.extract_strided_slice %1046 {offsets = [0, 0], sizes = [16, 16], strides = [1, 1]} : vector<16x34xf32> to vector<16x16xf32>
    %c0_361 = arith.constant 0 : index
    %c0_362 = arith.constant 0 : index
    %c0_363 = arith.constant 0 : index
    %c0_364 = arith.constant 0 : index
    %1051 = vector.load %arg10[%c0_361, %c0_362, %c0_363, %c0_364] : memref<2x4x16x16xf32, #tpu.memory_space<vmem>>, vector<1x1x16x16xf32>
    %1052 = vector.shape_cast %1051 : vector<1x1x16x16xf32> to vector<16x16xf32>
    %1053 = vector.shape_cast %1050 : vector<16x16xf32> to vector<1x1x16x16xf32>
    tpu.vector_store %arg10[%c0_361, %c0_362, %c0_363, %c0_364], %1053 {strides = array<i32>} : memref<2x4x16x16xf32, #tpu.memory_space<vmem>>, vector<1x1x16x16xf32>,
    %1054 = vector.extract_strided_slice %1048 {offsets = [0, 0], sizes = [16, 16], strides = [1, 1]} : vector<16x34xf32> to vector<16x16xf32>
    %c0_365 = arith.constant 0 : index
    %c2_366 = arith.constant 2 : index
    %c0_367 = arith.constant 0 : index
    %c0_368 = arith.constant 0 : index
    %1055 = vector.load %arg10[%c0_365, %c2_366, %c0_367, %c0_368] : memref<2x4x16x16xf32, #tpu.memory_space<vmem>>, vector<1x1x16x16xf32>
    %1056 = vector.shape_cast %1055 : vector<1x1x16x16xf32> to vector<16x16xf32>
    %1057 = vector.shape_cast %1054 : vector<16x16xf32> to vector<1x1x16x16xf32>
    tpu.vector_store %arg10[%c0_365, %c2_366, %c0_367, %c0_368], %1057 {strides = array<i32>} : memref<2x4x16x16xf32, #tpu.memory_space<vmem>>, vector<1x1x16x16xf32>,
    %1058 = vector.extract_strided_slice %1047 {offsets = [0, 0], sizes = [16, 16], strides = [1, 1]} : vector<16x34xf32> to vector<16x16xf32>
    %c0_369 = arith.constant 0 : index
    %c1_370 = arith.constant 1 : index
    %c0_371 = arith.constant 0 : index
    %c0_372 = arith.constant 0 : index
    %1059 = vector.load %arg10[%c0_369, %c1_370, %c0_371, %c0_372] : memref<2x4x16x16xf32, #tpu.memory_space<vmem>>, vector<1x1x16x16xf32>
    %1060 = vector.shape_cast %1059 : vector<1x1x16x16xf32> to vector<16x16xf32>
    %1061 = vector.shape_cast %1058 : vector<16x16xf32> to vector<1x1x16x16xf32>
    tpu.vector_store %arg10[%c0_369, %c1_370, %c0_371, %c0_372], %1061 {strides = array<i32>} : memref<2x4x16x16xf32, #tpu.memory_space<vmem>>, vector<1x1x16x16xf32>,
    %1062 = vector.extract_strided_slice %1049 {offsets = [0, 0], sizes = [16, 16], strides = [1, 1]} : vector<16x34xf32> to vector<16x16xf32>
    %c0_373 = arith.constant 0 : index
    %c3_374 = arith.constant 3 : index
    %c0_375 = arith.constant 0 : index
    %c0_376 = arith.constant 0 : index
    %1063 = vector.load %arg10[%c0_373, %c3_374, %c0_375, %c0_376] : memref<2x4x16x16xf32, #tpu.memory_space<vmem>>, vector<1x1x16x16xf32>
    %1064 = vector.shape_cast %1063 : vector<1x1x16x16xf32> to vector<16x16xf32>
    %1065 = vector.shape_cast %1062 : vector<16x16xf32> to vector<1x1x16x16xf32>
    tpu.vector_store %arg10[%c0_373, %c3_374, %c0_375, %c0_376], %1065 {strides = array<i32>} : memref<2x4x16x16xf32, #tpu.memory_space<vmem>>, vector<1x1x16x16xf32>,
    %1066 = vector.extract_strided_slice %1046 {offsets = [0, 18], sizes = [16, 16], strides = [1, 1]} : vector<16x34xf32> to vector<16x16xf32>
    %c1_377 = arith.constant 1 : index
    %c0_378 = arith.constant 0 : index
    %c0_379 = arith.constant 0 : index
    %c0_380 = arith.constant 0 : index
    %1067 = vector.load %arg10[%c1_377, %c0_378, %c0_379, %c0_380] : memref<2x4x16x16xf32, #tpu.memory_space<vmem>>, vector<1x1x16x16xf32>
    %1068 = vector.shape_cast %1067 : vector<1x1x16x16xf32> to vector<16x16xf32>
    %1069 = vector.shape_cast %1066 : vector<16x16xf32> to vector<1x1x16x16xf32>
    tpu.vector_store %arg10[%c1_377, %c0_378, %c0_379, %c0_380], %1069 {strides = array<i32>} : memref<2x4x16x16xf32, #tpu.memory_space<vmem>>, vector<1x1x16x16xf32>,
    %1070 = vector.extract_strided_slice %1048 {offsets = [0, 18], sizes = [16, 16], strides = [1, 1]} : vector<16x34xf32> to vector<16x16xf32>
    %c1_381 = arith.constant 1 : index
    %c2_382 = arith.constant 2 : index
    %c0_383 = arith.constant 0 : index
    %c0_384 = arith.constant 0 : index
    %1071 = vector.load %arg10[%c1_381, %c2_382, %c0_383, %c0_384] : memref<2x4x16x16xf32, #tpu.memory_space<vmem>>, vector<1x1x16x16xf32>
    %1072 = vector.shape_cast %1071 : vector<1x1x16x16xf32> to vector<16x16xf32>
    %1073 = vector.shape_cast %1070 : vector<16x16xf32> to vector<1x1x16x16xf32>
    tpu.vector_store %arg10[%c1_381, %c2_382, %c0_383, %c0_384], %1073 {strides = array<i32>} : memref<2x4x16x16xf32, #tpu.memory_space<vmem>>, vector<1x1x16x16xf32>,
    %1074 = vector.extract_strided_slice %1047 {offsets = [0, 18], sizes = [16, 16], strides = [1, 1]} : vector<16x34xf32> to vector<16x16xf32>
    %c1_385 = arith.constant 1 : index
    %c1_386 = arith.constant 1 : index
    %c0_387 = arith.constant 0 : index
    %c0_388 = arith.constant 0 : index
    %1075 = vector.load %arg10[%c1_385, %c1_386, %c0_387, %c0_388] : memref<2x4x16x16xf32, #tpu.memory_space<vmem>>, vector<1x1x16x16xf32>
    %1076 = vector.shape_cast %1075 : vector<1x1x16x16xf32> to vector<16x16xf32>
    %1077 = vector.shape_cast %1074 : vector<16x16xf32> to vector<1x1x16x16xf32>
    tpu.vector_store %arg10[%c1_385, %c1_386, %c0_387, %c0_388], %1077 {strides = array<i32>} : memref<2x4x16x16xf32, #tpu.memory_space<vmem>>, vector<1x1x16x16xf32>,
    %1078 = vector.extract_strided_slice %1049 {offsets = [0, 18], sizes = [16, 16], strides = [1, 1]} : vector<16x34xf32> to vector<16x16xf32>
    %c1_389 = arith.constant 1 : index
    %c3_390 = arith.constant 3 : index
    %c0_391 = arith.constant 0 : index
    %c0_392 = arith.constant 0 : index
    %1079 = vector.load %arg10[%c1_389, %c3_390, %c0_391, %c0_392] : memref<2x4x16x16xf32, #tpu.memory_space<vmem>>, vector<1x1x16x16xf32>
    %1080 = vector.shape_cast %1079 : vector<1x1x16x16xf32> to vector<16x16xf32>
    %1081 = vector.shape_cast %1078 : vector<16x16xf32> to vector<1x1x16x16xf32>
    tpu.vector_store %arg10[%c1_389, %c3_390, %c0_391, %c0_392], %1081 {strides = array<i32>} : memref<2x4x16x16xf32, #tpu.memory_space<vmem>>, vector<1x1x16x16xf32>,
    return
  }
  func.func @transform_0(%arg0: i32) -> (i32, i32, i32, i32) {
    %c0_i32 = arith.constant 0 : i32
    %c0_i32_0 = arith.constant 0 : i32
    %c0_i32_1 = arith.constant 0 : i32
    %c0_i32_2 = arith.constant 0 : i32
    return %arg0, %c0_i32, %c0_i32_0, %c0_i32_1 : i32, i32, i32, i32
  }
  func.func @transform_1(%arg0: i32) -> (i32, i32, i32, i32) {
    %c0_i32 = arith.constant 0 : i32
    %c0_i32_0 = arith.constant 0 : i32
    %c0_i32_1 = arith.constant 0 : i32
    %c0_i32_2 = arith.constant 0 : i32
    return %arg0, %c0_i32, %c0_i32_0, %c0_i32_1 : i32, i32, i32, i32
  }
  func.func @transform_2(%arg0: i32) -> i32 {
    %c0_i32 = arith.constant 0 : i32
    %c0_i32_0 = arith.constant 0 : i32
    return %c0_i32 : i32
  }
  func.func @transform_3(%arg0: i32) -> i32 {
    %c0_i32 = arith.constant 0 : i32
    %c0_i32_0 = arith.constant 0 : i32
    return %c0_i32 : i32
  }
  func.func @transform_4(%arg0: i32) -> i32 {
    %c0_i32 = arith.constant 0 : i32
    %c0_i32_0 = arith.constant 0 : i32
    return %c0_i32 : i32
  }
  func.func @transform_5(%arg0: i32) -> i32 {
    %c0_i32 = arith.constant 0 : i32
    %c0_i32_0 = arith.constant 0 : i32
    return %c0_i32 : i32
  }
  func.func @transform_6(%arg0: i32) -> i32 {
    %c0_i32 = arith.constant 0 : i32
    %c0_i32_0 = arith.constant 0 : i32
    return %c0_i32 : i32
  }
  func.func @transform_7(%arg0: i32) -> i32 {
    %c0_i32 = arith.constant 0 : i32
    %c0_i32_0 = arith.constant 0 : i32
    return %c0_i32 : i32
  }
  func.func @transform_8(%arg0: i32) -> i32 {
    %c0_i32 = arith.constant 0 : i32
    %c0_i32_0 = arith.constant 0 : i32
    return %c0_i32 : i32
  }
  func.func @transform_9(%arg0: i32) -> (i32, i32, i32, i32) {
    %c0_i32 = arith.constant 0 : i32
    %c0_i32_0 = arith.constant 0 : i32
    %c0_i32_1 = arith.constant 0 : i32
    %c0_i32_2 = arith.constant 0 : i32
    return %arg0, %c0_i32, %c0_i32_0, %c0_i32_1 : i32, i32, i32, i32
  }
}

</mosaic_0001>

<llo_original>
// kernel: tpu_custom_call.1
$region0: #{tpu_custom_call.1}
  #allocation0 [shape = 'u32[]', space=smem, size = 0x4, offset = 0x4, fixed_abs, tag = 'smem constant byte address 0x4 - core index']
  #allocation1 [shape = 'u32[144,128]{1,0:T(1,128)}', space=vmem, size = 0x12000, scoped, tag = 'internal scratch']
  #allocation2 [shape = 'f32[4,18,36]{2,1,0:T(8,128)}', space=vmem, size = 0xc000, scoped, tag = 'scratch operand']
  #allocation3 [shape = 'f32[4,18,36]{2,1,0:T(8,128)}', space=vmem, size = 0xc000, scoped, tag = 'scratch operand']
  #allocation4 [shape = 'f32[3,18,36]{2,1,0:T(8,128)}', space=vmem, size = 0x9000, scoped, tag = 'scratch operand']
  %s0 = inlined_call_operand.hbm [shape: f32[2,4,16,16], index: 0, kind: input, shape index: {}]
  %s1 = inlined_call_operand.hbm [shape: f32[2,4,16,16], index: 1, kind: input, shape index: {}]
  %s2 = inlined_call_operand.vmem [shape: f32[72], index: 2, kind: input, shape index: {}]
  %s3 = inlined_call_operand.vmem [shape: f32[2], index: 3, kind: input, shape index: {}]
  %s4 = inlined_call_operand.vmem [shape: f32[72], index: 4, kind: input, shape index: {}]
  %s5 = inlined_call_operand.vmem [shape: f32[2], index: 5, kind: input, shape index: {}]
  %s6 = inlined_call_operand.vmem [shape: f32[4], index: 6, kind: input, shape index: {}]
  %s7 = inlined_call_operand.vmem [shape: f32[27], index: 7, kind: input, shape index: {}]
  %s8 = inlined_call_operand.vmem [shape: f32[8], index: 8, kind: input, shape index: {}]
  %s9 = inlined_call_operand.hbm [shape: f32[2,4,16,16], index: 9, kind: output, shape index: {}]
  %s10 = sld [smem:[#allocation0]]
  $region82: #{tpu_custom_call.1} parent=0
    _
  %s12 = ssub.s32 1, %s10
  %s13 = scalar_select 0, %s12, %s10
  $region1: #{tpu_custom_call.1} parent=0
    #allocation5 [shape = 'u8[65536]{0}', space=vmem, size = 0x10000, scoped, tag = 'input window, operand 0, single buffered']
    #allocation6 [shape = 's32[1]{0}', space=sflag, size = 0x4, scoped, tag = 'scoped memory for tpu_custom_call.1']
    #allocation7 [shape = 's32[1]{0}', space=sflag, size = 0x4, scoped, tag = 'scoped memory for tpu_custom_call.1']
    #allocation8 [shape = 's32[1]{0}', space=sflag, size = 0x4, scoped, tag = 'scoped memory for tpu_custom_call.1']
    #allocation9 [shape = 'u8[65536]{0}', space=vmem, size = 0x10000, scoped, tag = 'input window, operand 1, single buffered']
    #allocation10 [shape = 's32[1]{0}', space=sflag, size = 0x4, scoped, tag = 'scoped memory for tpu_custom_call.1']
    #allocation11 [shape = 'u8[512]{0}', space=smem, size = 0x200, scoped, tag = 'input window, operand 2, single buffered']
    #allocation12 [shape = 'u8[512]{0}', space=smem, size = 0x200, scoped, tag = 'input window, operand 3, single buffered']
    #allocation13 [shape = 's32[1]{0}', space=sflag, size = 0x4, scoped, tag = 'scoped memory for tpu_custom_call.1']
    #allocation14 [shape = 'u8[512]{0}', space=smem, size = 0x200, scoped, tag = 'input window, operand 4, single buffered']
    #allocation15 [shape = 'u8[512]{0}', space=smem, size = 0x200, scoped, tag = 'input window, operand 5, single buffered']
    #allocation16 [shape = 's32[1]{0}', space=sflag, size = 0x4, scoped, tag = 'scoped memory for tpu_custom_call.1']
    #allocation17 [shape = 'u8[512]{0}', space=smem, size = 0x200, scoped, tag = 'input window, operand 6, single buffered']
    #allocation18 [shape = 'u8[512]{0}', space=smem, size = 0x200, scoped, tag = 'input window, operand 7, single buffered']
    #allocation19 [shape = 's32[1]{0}', space=sflag, size = 0x4, scoped, tag = 'scoped memory for tpu_custom_call.1']
    #allocation20 [shape = 'u8[512]{0}', space=smem, size = 0x200, scoped, tag = 'input window, operand 8, single buffered']
    #allocation21 [shape = 'u8[65536]{0}', space=vmem, size = 0x10000, scoped, tag = 'output window, operand 0, single buffered']
    %14 = vsyncpa [#allocation6], 0
    %15 = vsyncpa [#allocation10], 0
    %16 = vsyncpa [#allocation8], 0
    %17 = vsyncpa [#allocation13], 0
    %18 = vsyncpa [#allocation16], 0
    %19 = vsyncpa [#allocation19], 0
    %20 = vsyncpa [#allocation7], 0
    // Predicated region
    $region2: #{tpu_custom_call.1} parent=1 // pred_check
      _
    $region3: #{tpu_custom_call.1} parent=1 // pred_check_branch
      %22 = sbr.rel (0) target = $region5
    $region4: #{tpu_custom_call.1} parent=1 // pred_region
      %s24 = ssub.s32 2048, 2048
      %25 = vsyncadd [#allocation6], %s24
      %s26 = sshll.u32 [#allocation5], 4
      %s27 = int_to_ptr.vmem [resolvable:$true] %s26
      %32 = dma.hbm_to_vmem [thread:$0]  %s0, 2048, %s27, [#allocation6], 128, 128, 8
    $region5: #{tpu_custom_call.1} parent=1 // pred_fallthru
      _
    // Predicated region
    $region6: #{tpu_custom_call.1} parent=1 // pred_check
      _
    $region7: #{tpu_custom_call.1} parent=1 // pred_check_branch
      %34 = sbr.rel (0) target = $region9
    $region8: #{tpu_custom_call.1} parent=1 // pred_region
      %s36 = ssub.s32 2048, 2048
      %37 = vsyncadd [#allocation10], %s36
      %s38 = sshll.u32 [#allocation9], 4
      %s39 = int_to_ptr.vmem [resolvable:$true] %s38
      %44 = dma.hbm_to_vmem [thread:$0]  %s1, 2048, %s39, [#allocation10], 128, 128, 8
    $region9: #{tpu_custom_call.1} parent=1 // pred_fallthru
      _
    // Predicated region
    $region10: #{tpu_custom_call.1} parent=1 // pred_check
      _
    $region11: #{tpu_custom_call.1} parent=1 // pred_check_branch
      %46 = sbr.rel (0) target = $region13
    $region12: #{tpu_custom_call.1} parent=1 // pred_region
      %s48 = ssub.s32 16, 16
      %49 = vsyncadd [#allocation8], %s48
      %s51 = sshll.u32 %s2, 4
      %s52 = int_to_ptr.vmem [resolvable:$true] %s51
      %54 = dma.vmem_to_smem %s52, 16, [#allocation11], [#allocation8]
    $region13: #{tpu_custom_call.1} parent=1 // pred_fallthru
      _
    // Predicated region
    $region14: #{tpu_custom_call.1} parent=1 // pred_check
      _
    $region15: #{tpu_custom_call.1} parent=1 // pred_check_branch
      %56 = sbr.rel (0) target = $region17
    $region16: #{tpu_custom_call.1} parent=1 // pred_region
      %s58 = ssub.s32 16, 16
      %59 = vsyncadd [#allocation13], %s58
      %s61 = sshll.u32 %s3, 4
      %s62 = int_to_ptr.vmem [resolvable:$true] %s61
      %64 = dma.vmem_to_smem %s62, 16, [#allocation12], [#allocation13]
    $region17: #{tpu_custom_call.1} parent=1 // pred_fallthru
      _
    // Predicated region
    $region18: #{tpu_custom_call.1} parent=1 // pred_check
      _
    $region19: #{tpu_custom_call.1} parent=1 // pred_check_branch
      %66 = sbr.rel (0) target = $region21
    $region20: #{tpu_custom_call.1} parent=1 // pred_region
      %s68 = ssub.s32 16, 16
      %69 = vsyncadd [#allocation13], %s68
      %s71 = sshll.u32 %s4, 4
      %s72 = int_to_ptr.vmem [resolvable:$true] %s71
      %74 = dma.vmem_to_smem %s72, 16, [#allocation14], [#allocation13]
    $region21: #{tpu_custom_call.1} parent=1 // pred_fallthru
      _
    // Predicated region
    $region22: #{tpu_custom_call.1} parent=1 // pred_check
      _
    $region23: #{tpu_custom_call.1} parent=1 // pred_check_branch
      %76 = sbr.rel (0) target = $region25
    $region24: #{tpu_custom_call.1} parent=1 // pred_region
      %s78 = ssub.s32 16, 16
      %79 = vsyncadd [#allocation16], %s78
      %s81 = sshll.u32 %s5, 4
      %s82 = int_to_ptr.vmem [resolvable:$true] %s81
      %84 = dma.vmem_to_smem %s82, 16, [#allocation15], [#allocation16]
    $region25: #{tpu_custom_call.1} parent=1 // pred_fallthru
      _
    // Predicated region
    $region26: #{tpu_custom_call.1} parent=1 // pred_check
      _
    $region27: #{tpu_custom_call.1} parent=1 // pred_check_branch
      %86 = sbr.rel (0) target = $region29
    $region28: #{tpu_custom_call.1} parent=1 // pred_region
      %s88 = ssub.s32 16, 16
      %89 = vsyncadd [#allocation16], %s88
      %s91 = sshll.u32 %s6, 4
      %s92 = int_to_ptr.vmem [resolvable:$true] %s91
      %94 = dma.vmem_to_smem %s92, 16, [#allocation17], [#allocation16]
    $region29: #{tpu_custom_call.1} parent=1 // pred_fallthru
      _
    // Predicated region
    $region30: #{tpu_custom_call.1} parent=1 // pred_check
      _
    $region31: #{tpu_custom_call.1} parent=1 // pred_check_branch
      %96 = sbr.rel (0) target = $region33
    $region32: #{tpu_custom_call.1} parent=1 // pred_region
      %s98 = ssub.s32 16, 16
      %99 = vsyncadd [#allocation19], %s98
      %s101 = sshll.u32 %s7, 4
      %s102 = int_to_ptr.vmem [resolvable:$true] %s101
      %104 = dma.vmem_to_smem %s102, 16, [#allocation18], [#allocation19]
    $region33: #{tpu_custom_call.1} parent=1 // pred_fallthru
      _
    // Predicated region
    $region34: #{tpu_custom_call.1} parent=1 // pred_check
      _
    $region35: #{tpu_custom_call.1} parent=1 // pred_check_branch
      %106 = sbr.rel (0) target = $region37
    $region36: #{tpu_custom_call.1} parent=1 // pred_region
      %s108 = ssub.s32 16, 16
      %109 = vsyncadd [#allocation19], %s108
      %s111 = sshll.u32 %s8, 4
      %s112 = int_to_ptr.vmem [resolvable:$true] %s111
      %114 = dma.vmem_to_smem %s112, 16, [#allocation20], [#allocation19]
    $region37: #{tpu_custom_call.1} parent=1 // pred_fallthru
      _
    // Predicated region
    $region38: #{tpu_custom_call.1} parent=1 // pred_check
      _
    $region39: #{tpu_custom_call.1} parent=1 // pred_check_branch
      %116 = sbr.rel (0) target = $region41
    $region40: #{tpu_custom_call.1} parent=1 // pred_region
      %117 = dma.done [#allocation6], 2048
    $region41: #{tpu_custom_call.1} parent=1 // pred_fallthru
      _
    // Predicated region
    $region42: #{tpu_custom_call.1} parent=1 // pred_check
      _
    $region43: #{tpu_custom_call.1} parent=1 // pred_check_branch
      %119 = sbr.rel (0) target = $region45
    $region44: #{tpu_custom_call.1} parent=1 // pred_region
      %120 = dma.done [#allocation10], 2048
    $region45: #{tpu_custom_call.1} parent=1 // pred_fallthru
      _
    // Predicated region
    $region46: #{tpu_custom_call.1} parent=1 // pred_check
      _
    $region47: #{tpu_custom_call.1} parent=1 // pred_check_branch
      %122 = sbr.rel (0) target = $region49
    $region48: #{tpu_custom_call.1} parent=1 // pred_region
      %123 = dma.done [#allocation8], 16
    $region49: #{tpu_custom_call.1} parent=1 // pred_fallthru
      _
    // Predicated region
    $region50: #{tpu_custom_call.1} parent=1 // pred_check
      _
    $region51: #{tpu_custom_call.1} parent=1 // pred_check_branch
      %125 = sbr.rel (0) target = $region53
    $region52: #{tpu_custom_call.1} parent=1 // pred_region
      %126 = dma.done [#allocation13], 16
    $region53: #{tpu_custom_call.1} parent=1 // pred_fallthru
      _
    // Predicated region
    $region54: #{tpu_custom_call.1} parent=1 // pred_check
      _
    $region55: #{tpu_custom_call.1} parent=1 // pred_check_branch
      %128 = sbr.rel (0) target = $region57
    $region56: #{tpu_custom_call.1} parent=1 // pred_region
      %129 = dma.done [#allocation13], 16
    $region57: #{tpu_custom_call.1} parent=1 // pred_fallthru
      _
    // Predicated region
    $region58: #{tpu_custom_call.1} parent=1 // pred_check
      _
    $region59: #{tpu_custom_call.1} parent=1 // pred_check_branch
      %131 = sbr.rel (0) target = $region61
    $region60: #{tpu_custom_call.1} parent=1 // pred_region
      %132 = dma.done [#allocation16], 16
    $region61: #{tpu_custom_call.1} parent=1 // pred_fallthru
      _
    // Predicated region
    $region62: #{tpu_custom_call.1} parent=1 // pred_check
      _
    $region63: #{tpu_custom_call.1} parent=1 // pred_check_branch
      %134 = sbr.rel (0) target = $region65
    $region64: #{tpu_custom_call.1} parent=1 // pred_region
      %135 = dma.done [#allocation16], 16
    $region65: #{tpu_custom_call.1} parent=1 // pred_fallthru
      _
    // Predicated region
    $region66: #{tpu_custom_call.1} parent=1 // pred_check
      _
    $region67: #{tpu_custom_call.1} parent=1 // pred_check_branch
      %137 = sbr.rel (0) target = $region69
    $region68: #{tpu_custom_call.1} parent=1 // pred_region
      %138 = dma.done [#allocation19], 16
    $region69: #{tpu_custom_call.1} parent=1 // pred_fallthru
      _
    // Predicated region
    $region70: #{tpu_custom_call.1} parent=1 // pred_check
      _
    $region71: #{tpu_custom_call.1} parent=1 // pred_check_branch
      %140 = sbr.rel (0) target = $region73
    $region72: #{tpu_custom_call.1} parent=1 // pred_region
      %141 = dma.done [#allocation19], 16
    $region73: #{tpu_custom_call.1} parent=1 // pred_fallthru
      _
    %142 = sfence
    %vm143 = vcmask 293888
    %144 = vst.msk [vmem:[#allocation2] sm:$0xff] %vm143, 0.0
    %145 = vst.msk [vmem:[#allocation2 + $0x8] sm:$0xff] %vm143, 0.0
    %vm146 = vcmask 287744
    %147 = vst.msk [vmem:[#allocation2 + $0x10] sm:$0x3] %vm146, 0.0
    %148 = vst.msk [vmem:[#allocation2 + $0x18] sm:$0xff] %vm143, 0.0
    %149 = vst.msk [vmem:[#allocation2 + $0x20] sm:$0xff] %vm143, 0.0
    %150 = vst.msk [vmem:[#allocation2 + $0x28] sm:$0x3] %vm146, 0.0
    %151 = vst.msk [vmem:[#allocation2 + $0x30] sm:$0xff] %vm143, 0.0
    %152 = vst.msk [vmem:[#allocation2 + $0x38] sm:$0xff] %vm143, 0.0
    %153 = vst.msk [vmem:[#allocation2 + $0x40] sm:$0x3] %vm146, 0.0
    %154 = vst.msk [vmem:[#allocation2 + $0x48] sm:$0xff] %vm143, 0.0
    %155 = vst.msk [vmem:[#allocation2 + $0x50] sm:$0xff] %vm143, 0.0
    %156 = vst.msk [vmem:[#allocation2 + $0x58] sm:$0x3] %vm146, 0.0
    %157 = vst.msk [vmem:[#allocation3] sm:$0xff] %vm143, 0.0
    %158 = vst.msk [vmem:[#allocation3 + $0x8] sm:$0xff] %vm143, 0.0
    %159 = vst.msk [vmem:[#allocation3 + $0x10] sm:$0x3] %vm146, 0.0
    %160 = vst.msk [vmem:[#allocation3 + $0x18] sm:$0xff] %vm143, 0.0
    %161 = vst.msk [vmem:[#allocation3 + $0x20] sm:$0xff] %vm143, 0.0
    %162 = vst.msk [vmem:[#allocation3 + $0x28] sm:$0x3] %vm146, 0.0
    %163 = vst.msk [vmem:[#allocation3 + $0x30] sm:$0xff] %vm143, 0.0
    %164 = vst.msk [vmem:[#allocation3 + $0x38] sm:$0xff] %vm143, 0.0
    %165 = vst.msk [vmem:[#allocation3 + $0x40] sm:$0x3] %vm146, 0.0
    %166 = vst.msk [vmem:[#allocation3 + $0x48] sm:$0xff] %vm143, 0.0
    %167 = vst.msk [vmem:[#allocation3 + $0x50] sm:$0xff] %vm143, 0.0
    %168 = vst.msk [vmem:[#allocation3 + $0x58] sm:$0x3] %vm146, 0.0
    %169 = vst.msk [vmem:[#allocation4] sm:$0xff] %vm143, 0.0
    %170 = vst.msk [vmem:[#allocation4 + $0x8] sm:$0xff] %vm143, 0.0
    %171 = vst.msk [vmem:[#allocation4 + $0x10] sm:$0x3] %vm146, 0.0
    %172 = vst.msk [vmem:[#allocation4 + $0x18] sm:$0xff] %vm143, 0.0
    %173 = vst.msk [vmem:[#allocation4 + $0x20] sm:$0xff] %vm143, 0.0
    %174 = vst.msk [vmem:[#allocation4 + $0x28] sm:$0x3] %vm146, 0.0
    %175 = vst.msk [vmem:[#allocation4 + $0x30] sm:$0xff] %vm143, 0.0
    %176 = vst.msk [vmem:[#allocation4 + $0x38] sm:$0xff] %vm143, 0.0
    %177 = vst.msk [vmem:[#allocation4 + $0x40] sm:$0x3] %vm146, 0.0
    %v178 = vld [vmem:[#allocation5] sm:$0xff]
    %v179 = vld [vmem:[#allocation5 + $0x8] sm:$0xff]
    %182 = vrot.lane.b32.xlu0 %v178, 1
    %v183 = vpop.permute.xlu0 %182
    %184 = vrot.lane.b32.xlu0 %v179, 1
    %v185 = vpop.permute.xlu0 %184
    %vm188 = vcmask 138248
    %189 = vst.msk [vmem:[#allocation2 + $0x1] sm:$0xff] %vm188, %v183
    %190 = vst.msk [vmem:[#allocation2 + $0x9] sm:$0xff] %vm188, %v185
    %v191 = vld [vmem:[#allocation9] sm:$0xff]
    %v192 = vld [vmem:[#allocation9 + $0x8] sm:$0xff]
    %195 = vrot.lane.b32.xlu0 %v191, 1
    %v196 = vpop.permute.xlu0 %195
    %197 = vrot.lane.b32.xlu0 %v192, 1
    %v198 = vpop.permute.xlu0 %197
    %201 = vst.msk [vmem:[#allocation3 + $0x1] sm:$0xff] %vm188, %v196
    %202 = vst.msk [vmem:[#allocation3 + $0x9] sm:$0xff] %vm188, %v198
    %s203 = scalar_lea.vmem [#allocation5], 16
    %v204 = vld [vmem:[%s203] sm:$0xff]
    %v205 = vld [vmem:[%s203 + $0x8] sm:$0xff]
    %208 = vrot.lane.b32.xlu0 %v204, 1
    %v209 = vpop.permute.xlu0 %208
    %210 = vrot.lane.b32.xlu0 %v205, 1
    %v211 = vpop.permute.xlu0 %210
    %s214 = scalar_lea.vmem [#allocation2], 24
    %215 = vst.msk [vmem:[%s214 + $0x1] sm:$0xff] %vm188, %v209
    %216 = vst.msk [vmem:[%s214 + $0x9] sm:$0xff] %vm188, %v211
    %s217 = scalar_lea.vmem [#allocation9], 16
    %v218 = vld [vmem:[%s217] sm:$0xff]
    %v219 = vld [vmem:[%s217 + $0x8] sm:$0xff]
    %222 = vrot.lane.b32.xlu0 %v218, 1
    %v223 = vpop.permute.xlu0 %222
    %224 = vrot.lane.b32.xlu0 %v219, 1
    %v225 = vpop.permute.xlu0 %224
    %s228 = scalar_lea.vmem [#allocation3], 24
    %229 = vst.msk [vmem:[%s228 + $0x1] sm:$0xff] %vm188, %v223
    %230 = vst.msk [vmem:[%s228 + $0x9] sm:$0xff] %vm188, %v225
    %s231 = scalar_lea.vmem [#allocation5], 32
    %v232 = vld [vmem:[%s231] sm:$0xff]
    %v233 = vld [vmem:[%s231 + $0x8] sm:$0xff]
    %236 = vrot.lane.b32.xlu0 %v232, 1
    %v237 = vpop.permute.xlu0 %236
    %238 = vrot.lane.b32.xlu0 %v233, 1
    %v239 = vpop.permute.xlu0 %238
    %s242 = scalar_lea.vmem [#allocation2], 48
    %243 = vst.msk [vmem:[%s242 + $0x1] sm:$0xff] %vm188, %v237
    %244 = vst.msk [vmem:[%s242 + $0x9] sm:$0xff] %vm188, %v239
    %s245 = scalar_lea.vmem [#allocation9], 32
    %v246 = vld [vmem:[%s245] sm:$0xff]
    %v247 = vld [vmem:[%s245 + $0x8] sm:$0xff]
    %250 = vrot.lane.b32.xlu0 %v246, 1
    %v251 = vpop.permute.xlu0 %250
    %252 = vrot.lane.b32.xlu0 %v247, 1
    %v253 = vpop.permute.xlu0 %252
    %s256 = scalar_lea.vmem [#allocation3], 48
    %257 = vst.msk [vmem:[%s256 + $0x1] sm:$0xff] %vm188, %v251
    %258 = vst.msk [vmem:[%s256 + $0x9] sm:$0xff] %vm188, %v253
    %s259 = scalar_lea.vmem [#allocation5], 48
    %v260 = vld [vmem:[%s259] sm:$0xff]
    %v261 = vld [vmem:[%s259 + $0x8] sm:$0xff]
    %264 = vrot.lane.b32.xlu0 %v260, 1
    %v265 = vpop.permute.xlu0 %264
    %266 = vrot.lane.b32.xlu0 %v261, 1
    %v267 = vpop.permute.xlu0 %266
    %s270 = scalar_lea.vmem [#allocation2], 72
    %271 = vst.msk [vmem:[%s270 + $0x1] sm:$0xff] %vm188, %v265
    %272 = vst.msk [vmem:[%s270 + $0x9] sm:$0xff] %vm188, %v267
    %s273 = scalar_lea.vmem [#allocation9], 48
    %v274 = vld [vmem:[%s273] sm:$0xff]
    %v275 = vld [vmem:[%s273 + $0x8] sm:$0xff]
    %278 = vrot.lane.b32.xlu0 %v274, 1
    %v279 = vpop.permute.xlu0 %278
    %280 = vrot.lane.b32.xlu0 %v275, 1
    %v281 = vpop.permute.xlu0 %280
    %s284 = scalar_lea.vmem [#allocation3], 72
    %285 = vst.msk [vmem:[%s284 + $0x1] sm:$0xff] %vm188, %v279
    %286 = vst.msk [vmem:[%s284 + $0x9] sm:$0xff] %vm188, %v281
    %s287 = scalar_lea.vmem [#allocation5], 64
    %v288 = vld [vmem:[%s287] sm:$0xff]
    %v289 = vld [vmem:[%s287 + $0x8] sm:$0xff]
    %292 = vrot.lane.b32.xlu0 %v288, 19
    %v293 = vpop.permute.xlu0 %292
    %294 = vrot.lane.b32.xlu0 %v289, 19
    %v295 = vpop.permute.xlu0 %294
    %vm298 = vcmask 285848
    %299 = vst.msk [vmem:[#allocation2 + $0x1] sm:$0xff] %vm298, %v293
    %300 = vst.msk [vmem:[#allocation2 + $0x9] sm:$0xff] %vm298, %v295
    %s301 = scalar_lea.vmem [#allocation9], 64
    %v302 = vld [vmem:[%s301] sm:$0xff]
    %v303 = vld [vmem:[%s301 + $0x8] sm:$0xff]
    %306 = vrot.lane.b32.xlu0 %v302, 19
    %v307 = vpop.permute.xlu0 %306
    %308 = vrot.lane.b32.xlu0 %v303, 19
    %v309 = vpop.permute.xlu0 %308
    %312 = vst.msk [vmem:[#allocation3 + $0x1] sm:$0xff] %vm298, %v307
    %313 = vst.msk [vmem:[#allocation3 + $0x9] sm:$0xff] %vm298, %v309
    %s314 = scalar_lea.vmem [#allocation5], 80
    %v315 = vld [vmem:[%s314] sm:$0xff]
    %v316 = vld [vmem:[%s314 + $0x8] sm:$0xff]
    %319 = vrot.lane.b32.xlu0 %v315, 19
    %v320 = vpop.permute.xlu0 %319
    %321 = vrot.lane.b32.xlu0 %v316, 19
    %v322 = vpop.permute.xlu0 %321
    %325 = vst.msk [vmem:[%s214 + $0x1] sm:$0xff] %vm298, %v320
    %326 = vst.msk [vmem:[%s214 + $0x9] sm:$0xff] %vm298, %v322
    %s327 = scalar_lea.vmem [#allocation9], 80
    %v328 = vld [vmem:[%s327] sm:$0xff]
    %v329 = vld [vmem:[%s327 + $0x8] sm:$0xff]
    %332 = vrot.lane.b32.xlu0 %v328, 19
    %v333 = vpop.permute.xlu0 %332
    %334 = vrot.lane.b32.xlu0 %v329, 19
    %v335 = vpop.permute.xlu0 %334
    %338 = vst.msk [vmem:[%s228 + $0x1] sm:$0xff] %vm298, %v333
    %339 = vst.msk [vmem:[%s228 + $0x9] sm:$0xff] %vm298, %v335
    %s340 = scalar_lea.vmem [#allocation5], 96
    %v341 = vld [vmem:[%s340] sm:$0xff]
    %v342 = vld [vmem:[%s340 + $0x8] sm:$0xff]
    %345 = vrot.lane.b32.xlu0 %v341, 19
    %v346 = vpop.permute.xlu0 %345
    %347 = vrot.lane.b32.xlu0 %v342, 19
    %v348 = vpop.permute.xlu0 %347
    %351 = vst.msk [vmem:[%s242 + $0x1] sm:$0xff] %vm298, %v346
    %352 = vst.msk [vmem:[%s242 + $0x9] sm:$0xff] %vm298, %v348
    %s353 = scalar_lea.vmem [#allocation9], 96
    %v354 = vld [vmem:[%s353] sm:$0xff]
    %v355 = vld [vmem:[%s353 + $0x8] sm:$0xff]
    %358 = vrot.lane.b32.xlu0 %v354, 19
    %v359 = vpop.permute.xlu0 %358
    %360 = vrot.lane.b32.xlu0 %v355, 19
    %v361 = vpop.permute.xlu0 %360
    %364 = vst.msk [vmem:[%s256 + $0x1] sm:$0xff] %vm298, %v359
    %365 = vst.msk [vmem:[%s256 + $0x9] sm:$0xff] %vm298, %v361
    %s366 = scalar_lea.vmem [#allocation5], 112
    %v367 = vld [vmem:[%s366] sm:$0xff]
    %v368 = vld [vmem:[%s366 + $0x8] sm:$0xff]
    %371 = vrot.lane.b32.xlu0 %v367, 19
    %v372 = vpop.permute.xlu0 %371
    %373 = vrot.lane.b32.xlu0 %v368, 19
    %v374 = vpop.permute.xlu0 %373
    %377 = vst.msk [vmem:[%s270 + $0x1] sm:$0xff] %vm298, %v372
    %378 = vst.msk [vmem:[%s270 + $0x9] sm:$0xff] %vm298, %v374
    %s379 = scalar_lea.vmem [#allocation9], 112
    %v380 = vld [vmem:[%s379] sm:$0xff]
    %v381 = vld [vmem:[%s379 + $0x8] sm:$0xff]
    %384 = vrot.lane.b32.xlu0 %v380, 19
    %v385 = vpop.permute.xlu0 %384
    %386 = vrot.lane.b32.xlu0 %v381, 19
    %v387 = vpop.permute.xlu0 %386
    %390 = vst.msk [vmem:[%s284 + $0x1] sm:$0xff] %vm298, %v385
    %391 = vst.msk [vmem:[%s284 + $0x9] sm:$0xff] %vm298, %v387
    %v392 = vlaneseq
    %v393 = vand.u32 %v392, 127
    %v394 = vadd.s32 %v393, 1
    %vm395 = vcmp.lt.s32.totalorder %v394, 0
    %v396 = vsub.s32 0, %v394
    %v397 = vsel %vm395, %v396, %v394
    %v398 = vmul.u32.u64.compose %v397, 3817748708
    %v399 = vextract.low.u32 %v398
    %v400 = vextract.high.u32 %v398
    %v401 = vshrl.u32 %v400, 4
    %v402 = vmul.u32 %v401, 18
    %v403 = vsub.s32 %v397, %v402
    %v404 = vsub.s32 0, %v403
    %v405 = vsel %vm395, %v404, %v403
    %vm406 = vcmp.ne.s32.totalorder %v405, 0
    %vm407 = vcmp.lt.s32.totalorder %v405, 0
    %vm408 = vmand %vm407, %vm406
    %v409 = vadd.s32 %v405, 18
    %v410 = vsel %vm408, %v409, %v405
    %vm411 = vcmp.ge.s32.totalorder %v410, 1
    %vm412 = vcmp.le.s32.totalorder %v410, 16
    %vm413 = vmand %vm411, %vm412
    %v414 = vsel %vm413, 1.0, 0.0
    %s415 = sld [smem:[#allocation12]]
    %v416 = vstv %s415
    %v417 = vadd.f32 %v416, 0.0
    %s418 = sld [smem:[#allocation12 + $0x1]]
    %v419 = vstv %s418
    %v420 = vadd.f32 %v419, 0.0
    %s421 = sld [smem:[#allocation15]]
    %v422 = vstv %s421
    %v423 = vadd.f32 %v422, 0.0
    %s424 = sld [smem:[#allocation15 + $0x1]]
    %v425 = vstv %s424
    %v426 = vadd.f32 %v425, 0.0
    %v427 = vld [vmem:[#allocation2] sm:$0xff]
    %v428 = vld [vmem:[#allocation2 + $0x8] sm:$0xff]
    %v429 = vld [vmem:[#allocation2 + $0x10] sm:$0x3]
    %v430 = vld [vmem:[#allocation3] sm:$0xff]
    %v431 = vld [vmem:[#allocation3 + $0x8] sm:$0xff]
    %v432 = vld [vmem:[#allocation3 + $0x10] sm:$0x3]
    %s433 = sld [smem:[#allocation11]]
    %v434 = vstv %s433
    %v435 = vmul.f32 %v434, %v427
    %v436 = vmul.f32 %v434, %v428
    %v437 = vadd.f32 %v417, %v435
    %v438 = vadd.f32 %v417, %v436
    %s439 = sld [smem:[#allocation14]]
    %v440 = vstv %s439
    %v441 = vmul.f32 %v440, %v430
    %v442 = vmul.f32 %v440, %v431
    %v443 = vadd.f32 %v423, %v441
    %v444 = vadd.f32 %v423, %v442
    %s445 = sld [smem:[#allocation11 + $0x1]]
    %v446 = vstv %s445
    %v447 = vmul.f32 %v446, %v427
    %v448 = vmul.f32 %v446, %v428
    %v449 = vadd.f32 %v420, %v447
    %v450 = vadd.f32 %v420, %v448
    %s451 = sld [smem:[#allocation14 + $0x1]]
    %v452 = vstv %s451
    %v453 = vmul.f32 %v452, %v430
    %v454 = vmul.f32 %v452, %v431
    %v455 = vadd.f32 %v426, %v453
    %v456 = vadd.f32 %v426, %v454
    %s457 = sld [smem:[#allocation11 + $0x18]]
    %v458 = vstv %s457
    %v459 = vmul.f32 %v458, %v427
    %v460 = vmul.f32 %v458, %v428
    %v461 = vmul.f32 %v458, %v429
    %vm465 = vcmask 1046528
    %v466 = vrot.slane %v459, 1
    %v467 = vrot.slane %v460, 1
    %v468 = vsel %vm465, %v466, %v467
    %v469 = vrot.slane %v461, 1
    %v470 = vsel %vm465, %v467, %v469
    %v473 = vadd.f32 %v437, %v468
    %v474 = vadd.f32 %v438, %v470
    %s475 = sld [smem:[#allocation14 + $0x18]]
    %v476 = vstv %s475
    %v477 = vmul.f32 %v476, %v430
    %v478 = vmul.f32 %v476, %v431
    %v479 = vmul.f32 %v476, %v432
    %v483 = vrot.slane %v477, 1
    %v484 = vrot.slane %v478, 1
    %v485 = vsel %vm465, %v483, %v484
    %v486 = vrot.slane %v479, 1
    %v487 = vsel %vm465, %v484, %v486
    %v490 = vadd.f32 %v443, %v485
    %v491 = vadd.f32 %v444, %v487
    %s492 = sld [smem:[#allocation11 + $0x19]]
    %v493 = vstv %s492
    %v494 = vmul.f32 %v493, %v427
    %v495 = vmul.f32 %v493, %v428
    %v496 = vmul.f32 %v493, %v429
    %v500 = vrot.slane %v494, 1
    %v501 = vrot.slane %v495, 1
    %v502 = vsel %vm465, %v500, %v501
    %v503 = vrot.slane %v496, 1
    %v504 = vsel %vm465, %v501, %v503
    %v507 = vadd.f32 %v449, %v502
    %v508 = vadd.f32 %v450, %v504
    %s509 = sld [smem:[#allocation14 + $0x19]]
    %v510 = vstv %s509
    %v511 = vmul.f32 %v510, %v430
    %v512 = vmul.f32 %v510, %v431
    %v513 = vmul.f32 %v510, %v432
    %v517 = vrot.slane %v511, 1
    %v518 = vrot.slane %v512, 1
    %v519 = vsel %vm465, %v517, %v518
    %v520 = vrot.slane %v513, 1
    %v521 = vsel %vm465, %v518, %v520
    %v524 = vadd.f32 %v455, %v519
    %v525 = vadd.f32 %v456, %v521
    %s526 = sld [smem:[#allocation11 + $0x30]]
    %v527 = vstv %s526
    %v528 = vmul.f32 %v527, %v427
    %v529 = vmul.f32 %v527, %v428
    %v530 = vmul.f32 %v527, %v429
    %vm534 = vcmask 1045504
    %v535 = vrot.slane %v528, 2
    %v536 = vrot.slane %v529, 2
    %v537 = vsel %vm534, %v535, %v536
    %v538 = vrot.slane %v530, 2
    %v539 = vsel %vm534, %v536, %v538
    %v542 = vadd.f32 %v473, %v537
    %v543 = vadd.f32 %v474, %v539
    %s544 = sld [smem:[#allocation14 + $0x30]]
    %v545 = vstv %s544
    %v546 = vmul.f32 %v545, %v430
    %v547 = vmul.f32 %v545, %v431
    %v548 = vmul.f32 %v545, %v432
    %v552 = vrot.slane %v546, 2
    %v553 = vrot.slane %v547, 2
    %v554 = vsel %vm534, %v552, %v553
    %v555 = vrot.slane %v548, 2
    %v556 = vsel %vm534, %v553, %v555
    %v559 = vadd.f32 %v490, %v554
    %v560 = vadd.f32 %v491, %v556
    %s561 = sld [smem:[#allocation11 + $0x31]]
    %v562 = vstv %s561
    %v563 = vmul.f32 %v562, %v427
    %v564 = vmul.f32 %v562, %v428
    %v565 = vmul.f32 %v562, %v429
    %v569 = vrot.slane %v563, 2
    %v570 = vrot.slane %v564, 2
    %v571 = vsel %vm534, %v569, %v570
    %v572 = vrot.slane %v565, 2
    %v573 = vsel %vm534, %v570, %v572
    %v576 = vadd.f32 %v507, %v571
    %v577 = vadd.f32 %v508, %v573
    %s578 = sld [smem:[#allocation14 + $0x31]]
    %v579 = vstv %s578
    %v580 = vmul.f32 %v579, %v430
    %v581 = vmul.f32 %v579, %v431
    %v582 = vmul.f32 %v579, %v432
    %v586 = vrot.slane %v580, 2
    %v587 = vrot.slane %v581, 2
    %v588 = vsel %vm534, %v586, %v587
    %v589 = vrot.slane %v582, 2
    %v590 = vsel %vm534, %v587, %v589
    %v593 = vadd.f32 %v524, %v588
    %v594 = vadd.f32 %v525, %v590
    %s595 = sld [smem:[#allocation11 + $0x8]]
    %v596 = vstv %s595
    %v597 = vmul.f32 %v596, %v427
    %v598 = vmul.f32 %v596, %v428
    %601 = vrot.lane.b32.xlu0 %v597, 127
    %v602 = vpop.permute.xlu0 %601
    %603 = vrot.lane.b32.xlu0 %v598, 127
    %v604 = vpop.permute.xlu0 %603
    %v607 = vadd.f32 %v542, %v602
    %v608 = vadd.f32 %v543, %v604
    %s609 = sld [smem:[#allocation14 + $0x8]]
    %v610 = vstv %s609
    %v611 = vmul.f32 %v610, %v430
    %v612 = vmul.f32 %v610, %v431
    %615 = vrot.lane.b32.xlu0 %v611, 127
    %v616 = vpop.permute.xlu0 %615
    %617 = vrot.lane.b32.xlu0 %v612, 127
    %v618 = vpop.permute.xlu0 %617
    %v621 = vadd.f32 %v559, %v616
    %v622 = vadd.f32 %v560, %v618
    %s623 = sld [smem:[#allocation11 + $0x9]]
    %v624 = vstv %s623
    %v625 = vmul.f32 %v624, %v427
    %v626 = vmul.f32 %v624, %v428
    %629 = vrot.lane.b32.xlu0 %v625, 127
    %v630 = vpop.permute.xlu0 %629
    %631 = vrot.lane.b32.xlu0 %v626, 127
    %v632 = vpop.permute.xlu0 %631
    %v635 = vadd.f32 %v576, %v630
    %v636 = vadd.f32 %v577, %v632
    %s637 = sld [smem:[#allocation14 + $0x9]]
    %v638 = vstv %s637
    %v639 = vmul.f32 %v638, %v430
    %v640 = vmul.f32 %v638, %v431
    %643 = vrot.lane.b32.xlu0 %v639, 127
    %v644 = vpop.permute.xlu0 %643
    %645 = vrot.lane.b32.xlu0 %v640, 127
    %v646 = vpop.permute.xlu0 %645
    %v649 = vadd.f32 %v593, %v644
    %v650 = vadd.f32 %v594, %v646
    %s651 = sld [smem:[#allocation11 + $0x20]]
    %v652 = vstv %s651
    %v653 = vmul.f32 %v652, %v427
    %v654 = vmul.f32 %v652, %v428
    %v655 = vmul.f32 %v652, %v429
    %v659 = vrot.slane %v653, 1
    %v660 = vrot.slane %v654, 1
    %v661 = vsel %vm465, %v659, %v660
    %v662 = vrot.slane %v655, 1
    %v663 = vsel %vm465, %v660, %v662
    %664 = vrot.lane.b32.xlu0 %v661, 127
    %v665 = vpop.permute.xlu0 %664
    %666 = vrot.lane.b32.xlu0 %v663, 127
    %v667 = vpop.permute.xlu0 %666
    %v670 = vadd.f32 %v607, %v665
    %v671 = vadd.f32 %v608, %v667
    %s672 = sld [smem:[#allocation14 + $0x20]]
    %v673 = vstv %s672
    %v674 = vmul.f32 %v673, %v430
    %v675 = vmul.f32 %v673, %v431
    %v676 = vmul.f32 %v673, %v432
    %v680 = vrot.slane %v674, 1
    %v681 = vrot.slane %v675, 1
    %v682 = vsel %vm465, %v680, %v681
    %v683 = vrot.slane %v676, 1
    %v684 = vsel %vm465, %v681, %v683
    %685 = vrot.lane.b32.xlu0 %v682, 127
    %v686 = vpop.permute.xlu0 %685
    %687 = vrot.lane.b32.xlu0 %v684, 127
    %v688 = vpop.permute.xlu0 %687
    %v691 = vadd.f32 %v621, %v686
    %v692 = vadd.f32 %v622, %v688
    %s693 = sld [smem:[#allocation11 + $0x21]]
    %v694 = vstv %s693
    %v695 = vmul.f32 %v694, %v427
    %v696 = vmul.f32 %v694, %v428
    %v697 = vmul.f32 %v694, %v429
    %v701 = vrot.slane %v695, 1
    %v702 = vrot.slane %v696, 1
    %v703 = vsel %vm465, %v701, %v702
    %v704 = vrot.slane %v697, 1
    %v705 = vsel %vm465, %v702, %v704
    %706 = vrot.lane.b32.xlu0 %v703, 127
    %v707 = vpop.permute.xlu0 %706
    %708 = vrot.lane.b32.xlu0 %v705, 127
    %v709 = vpop.permute.xlu0 %708
    %v712 = vadd.f32 %v635, %v707
    %v713 = vadd.f32 %v636, %v709
    %s714 = sld [smem:[#allocation14 + $0x21]]
    %v715 = vstv %s714
    %v716 = vmul.f32 %v715, %v430
    %v717 = vmul.f32 %v715, %v431
    %v718 = vmul.f32 %v715, %v432
    %v722 = vrot.slane %v716, 1
    %v723 = vrot.slane %v717, 1
    %v724 = vsel %vm465, %v722, %v723
    %v725 = vrot.slane %v718, 1
    %v726 = vsel %vm465, %v723, %v725
    %727 = vrot.lane.b32.xlu0 %v724, 127
    %v728 = vpop.permute.xlu0 %727
    %729 = vrot.lane.b32.xlu0 %v726, 127
    %v730 = vpop.permute.xlu0 %729
    %v733 = vadd.f32 %v649, %v728
    %v734 = vadd.f32 %v650, %v730
    %s735 = sld [smem:[#allocation11 + $0x38]]
    %v736 = vstv %s735
    %v737 = vmul.f32 %v736, %v427
    %v738 = vmul.f32 %v736, %v428
    %v739 = vmul.f32 %v736, %v429
    %v743 = vrot.slane %v737, 2
    %v744 = vrot.slane %v738, 2
    %v745 = vsel %vm534, %v743, %v744
    %v746 = vrot.slane %v739, 2
    %v747 = vsel %vm534, %v744, %v746
    %748 = vrot.lane.b32.xlu0 %v745, 127
    %v749 = vpop.permute.xlu0 %748
    %750 = vrot.lane.b32.xlu0 %v747, 127
    %v751 = vpop.permute.xlu0 %750
    %v754 = vadd.f32 %v670, %v749
    %v755 = vadd.f32 %v671, %v751
    %s756 = sld [smem:[#allocation14 + $0x38]]
    %v757 = vstv %s756
    %v758 = vmul.f32 %v757, %v430
    %v759 = vmul.f32 %v757, %v431
    %v760 = vmul.f32 %v757, %v432
    %v764 = vrot.slane %v758, 2
    %v765 = vrot.slane %v759, 2
    %v766 = vsel %vm534, %v764, %v765
    %v767 = vrot.slane %v760, 2
    %v768 = vsel %vm534, %v765, %v767
    %769 = vrot.lane.b32.xlu0 %v766, 127
    %v770 = vpop.permute.xlu0 %769
    %771 = vrot.lane.b32.xlu0 %v768, 127
    %v772 = vpop.permute.xlu0 %771
    %v775 = vadd.f32 %v691, %v770
    %v776 = vadd.f32 %v692, %v772
    %s777 = sld [smem:[#allocation11 + $0x39]]
    %v778 = vstv %s777
    %v779 = vmul.f32 %v778, %v427
    %v780 = vmul.f32 %v778, %v428
    %v781 = vmul.f32 %v778, %v429
    %v785 = vrot.slane %v779, 2
    %v786 = vrot.slane %v780, 2
    %v787 = vsel %vm534, %v785, %v786
    %v788 = vrot.slane %v781, 2
    %v789 = vsel %vm534, %v786, %v788
    %790 = vrot.lane.b32.xlu0 %v787, 127
    %v791 = vpop.permute.xlu0 %790
    %792 = vrot.lane.b32.xlu0 %v789, 127
    %v793 = vpop.permute.xlu0 %792
    %v796 = vadd.f32 %v712, %v791
    %v797 = vadd.f32 %v713, %v793
    %s798 = sld [smem:[#allocation14 + $0x39]]
    %v799 = vstv %s798
    %v800 = vmul.f32 %v799, %v430
    %v801 = vmul.f32 %v799, %v431
    %v802 = vmul.f32 %v799, %v432
    %v806 = vrot.slane %v800, 2
    %v807 = vrot.slane %v801, 2
    %v808 = vsel %vm534, %v806, %v807
    %v809 = vrot.slane %v802, 2
    %v810 = vsel %vm534, %v807, %v809
    %811 = vrot.lane.b32.xlu0 %v808, 127
    %v812 = vpop.permute.xlu0 %811
    %813 = vrot.lane.b32.xlu0 %v810, 127
    %v814 = vpop.permute.xlu0 %813
    %v817 = vadd.f32 %v733, %v812
    %v818 = vadd.f32 %v734, %v814
    %s819 = sld [smem:[#allocation11 + $0x10]]
    %v820 = vstv %s819
    %v821 = vmul.f32 %v820, %v427
    %v822 = vmul.f32 %v820, %v428
    %825 = vrot.lane.b32.xlu0 %v821, 126
    %v826 = vpop.permute.xlu0 %825
    %827 = vrot.lane.b32.xlu0 %v822, 126
    %v828 = vpop.permute.xlu0 %827
    %v831 = vadd.f32 %v754, %v826
    %v832 = vadd.f32 %v755, %v828
    %s833 = sld [smem:[#allocation14 + $0x10]]
    %v834 = vstv %s833
    %v835 = vmul.f32 %v834, %v430
    %v836 = vmul.f32 %v834, %v431
    %839 = vrot.lane.b32.xlu0 %v835, 126
    %v840 = vpop.permute.xlu0 %839
    %841 = vrot.lane.b32.xlu0 %v836, 126
    %v842 = vpop.permute.xlu0 %841
    %v845 = vadd.f32 %v775, %v840
    %v846 = vadd.f32 %v776, %v842
    %s847 = sld [smem:[#allocation11 + $0x11]]
    %v848 = vstv %s847
    %v849 = vmul.f32 %v848, %v427
    %v850 = vmul.f32 %v848, %v428
    %853 = vrot.lane.b32.xlu0 %v849, 126
    %v854 = vpop.permute.xlu0 %853
    %855 = vrot.lane.b32.xlu0 %v850, 126
    %v856 = vpop.permute.xlu0 %855
    %v859 = vadd.f32 %v796, %v854
    %v860 = vadd.f32 %v797, %v856
    %s861 = sld [smem:[#allocation14 + $0x11]]
    %v862 = vstv %s861
    %v863 = vmul.f32 %v862, %v430
    %v864 = vmul.f32 %v862, %v431
    %867 = vrot.lane.b32.xlu0 %v863, 126
    %v868 = vpop.permute.xlu0 %867
    %869 = vrot.lane.b32.xlu0 %v864, 126
    %v870 = vpop.permute.xlu0 %869
    %v873 = vadd.f32 %v817, %v868
    %v874 = vadd.f32 %v818, %v870
    %s875 = sld [smem:[#allocation11 + $0x28]]
    %v876 = vstv %s875
    %v877 = vmul.f32 %v876, %v427
    %v878 = vmul.f32 %v876, %v428
    %v879 = vmul.f32 %v876, %v429
    %v883 = vrot.slane %v877, 1
    %v884 = vrot.slane %v878, 1
    %v885 = vsel %vm465, %v883, %v884
    %v886 = vrot.slane %v879, 1
    %v887 = vsel %vm465, %v884, %v886
    %888 = vrot.lane.b32.xlu0 %v885, 126
    %v889 = vpop.permute.xlu0 %888
    %890 = vrot.lane.b32.xlu0 %v887, 126
    %v891 = vpop.permute.xlu0 %890
    %v894 = vadd.f32 %v831, %v889
    %v895 = vadd.f32 %v832, %v891
    %s896 = sld [smem:[#allocation14 + $0x28]]
    %v897 = vstv %s896
    %v898 = vmul.f32 %v897, %v430
    %v899 = vmul.f32 %v897, %v431
    %v900 = vmul.f32 %v897, %v432
    %v904 = vrot.slane %v898, 1
    %v905 = vrot.slane %v899, 1
    %v906 = vsel %vm465, %v904, %v905
    %v907 = vrot.slane %v900, 1
    %v908 = vsel %vm465, %v905, %v907
    %909 = vrot.lane.b32.xlu0 %v906, 126
    %v910 = vpop.permute.xlu0 %909
    %911 = vrot.lane.b32.xlu0 %v908, 126
    %v912 = vpop.permute.xlu0 %911
    %v915 = vadd.f32 %v845, %v910
    %v916 = vadd.f32 %v846, %v912
    %s917 = sld [smem:[#allocation11 + $0x29]]
    %v918 = vstv %s917
    %v919 = vmul.f32 %v918, %v427
    %v920 = vmul.f32 %v918, %v428
    %v921 = vmul.f32 %v918, %v429
    %v925 = vrot.slane %v919, 1
    %v926 = vrot.slane %v920, 1
    %v927 = vsel %vm465, %v925, %v926
    %v928 = vrot.slane %v921, 1
    %v929 = vsel %vm465, %v926, %v928
    %930 = vrot.lane.b32.xlu0 %v927, 126
    %v931 = vpop.permute.xlu0 %930
    %932 = vrot.lane.b32.xlu0 %v929, 126
    %v933 = vpop.permute.xlu0 %932
    %v936 = vadd.f32 %v859, %v931
    %v937 = vadd.f32 %v860, %v933
    %s938 = sld [smem:[#allocation14 + $0x29]]
    %v939 = vstv %s938
    %v940 = vmul.f32 %v939, %v430
    %v941 = vmul.f32 %v939, %v431
    %v942 = vmul.f32 %v939, %v432
    %v946 = vrot.slane %v940, 1
    %v947 = vrot.slane %v941, 1
    %v948 = vsel %vm465, %v946, %v947
    %v949 = vrot.slane %v942, 1
    %v950 = vsel %vm465, %v947, %v949
    %951 = vrot.lane.b32.xlu0 %v948, 126
    %v952 = vpop.permute.xlu0 %951
    %953 = vrot.lane.b32.xlu0 %v950, 126
    %v954 = vpop.permute.xlu0 %953
    %v957 = vadd.f32 %v873, %v952
    %v958 = vadd.f32 %v874, %v954
    %s959 = sld [smem:[#allocation11 + $0x40]]
    %v960 = vstv %s959
    %v961 = vmul.f32 %v960, %v427
    %v962 = vmul.f32 %v960, %v428
    %v963 = vmul.f32 %v960, %v429
    %v967 = vrot.slane %v961, 2
    %v968 = vrot.slane %v962, 2
    %v969 = vsel %vm534, %v967, %v968
    %v970 = vrot.slane %v963, 2
    %v971 = vsel %vm534, %v968, %v970
    %972 = vrot.lane.b32.xlu0 %v969, 126
    %v973 = vpop.permute.xlu0 %972
    %974 = vrot.lane.b32.xlu0 %v971, 126
    %v975 = vpop.permute.xlu0 %974
    %v978 = vadd.f32 %v894, %v973
    %v979 = vadd.f32 %v895, %v975
    %s980 = sld [smem:[#allocation14 + $0x40]]
    %v981 = vstv %s980
    %v982 = vmul.f32 %v981, %v430
    %v983 = vmul.f32 %v981, %v431
    %v984 = vmul.f32 %v981, %v432
    %v988 = vrot.slane %v982, 2
    %v989 = vrot.slane %v983, 2
    %v990 = vsel %vm534, %v988, %v989
    %v991 = vrot.slane %v984, 2
    %v992 = vsel %vm534, %v989, %v991
    %993 = vrot.lane.b32.xlu0 %v990, 126
    %v994 = vpop.permute.xlu0 %993
    %995 = vrot.lane.b32.xlu0 %v992, 126
    %v996 = vpop.permute.xlu0 %995
    %v999 = vadd.f32 %v915, %v994
    %v1000 = vadd.f32 %v916, %v996
    %s1001 = sld [smem:[#allocation11 + $0x41]]
    %v1002 = vstv %s1001
    %v1003 = vmul.f32 %v1002, %v427
    %v1004 = vmul.f32 %v1002, %v428
    %v1005 = vmul.f32 %v1002, %v429
    %v1009 = vrot.slane %v1003, 2
    %v1010 = vrot.slane %v1004, 2
    %v1011 = vsel %vm534, %v1009, %v1010
    %v1012 = vrot.slane %v1005, 2
    %v1013 = vsel %vm534, %v1010, %v1012
    %1014 = vrot.lane.b32.xlu0 %v1011, 126
    %v1015 = vpop.permute.xlu0 %1014
    %1016 = vrot.lane.b32.xlu0 %v1013, 126
    %v1017 = vpop.permute.xlu0 %1016
    %v1020 = vadd.f32 %v936, %v1015
    %v1021 = vadd.f32 %v937, %v1017
    %s1022 = sld [smem:[#allocation14 + $0x41]]
    %v1023 = vstv %s1022
    %v1024 = vmul.f32 %v1023, %v430
    %v1025 = vmul.f32 %v1023, %v431
    %v1026 = vmul.f32 %v1023, %v432
    %v1030 = vrot.slane %v1024, 2
    %v1031 = vrot.slane %v1025, 2
    %v1032 = vsel %vm534, %v1030, %v1031
    %v1033 = vrot.slane %v1026, 2
    %v1034 = vsel %vm534, %v1031, %v1033
    %1035 = vrot.lane.b32.xlu0 %v1032, 126
    %v1036 = vpop.permute.xlu0 %1035
    %1037 = vrot.lane.b32.xlu0 %v1034, 126
    %v1038 = vpop.permute.xlu0 %1037
    %v1041 = vadd.f32 %v957, %v1036
    %v1042 = vadd.f32 %v958, %v1038
    %v1043 = vld [vmem:[%s214] sm:$0xff]
    %v1044 = vld [vmem:[%s214 + $0x8] sm:$0xff]
    %v1045 = vld [vmem:[%s214 + $0x10] sm:$0x3]
    %v1046 = vld [vmem:[%s228] sm:$0xff]
    %v1047 = vld [vmem:[%s228 + $0x8] sm:$0xff]
    %v1048 = vld [vmem:[%s228 + $0x10] sm:$0x3]
    %s1049 = sld [smem:[#allocation11 + $0x2]]
    %v1050 = vstv %s1049
    %v1051 = vmul.f32 %v1050, %v1043
    %v1052 = vmul.f32 %v1050, %v1044
    %v1053 = vadd.f32 %v978, %v1051
    %v1054 = vadd.f32 %v979, %v1052
    %s1055 = sld [smem:[#allocation14 + $0x2]]
    %v1056 = vstv %s1055
    %v1057 = vmul.f32 %v1056, %v1046
    %v1058 = vmul.f32 %v1056, %v1047
    %v1059 = vadd.f32 %v999, %v1057
    %v1060 = vadd.f32 %v1000, %v1058
    %s1061 = sld [smem:[#allocation11 + $0x3]]
    %v1062 = vstv %s1061
    %v1063 = vmul.f32 %v1062, %v1043
    %v1064 = vmul.f32 %v1062, %v1044
    %v1065 = vadd.f32 %v1020, %v1063
    %v1066 = vadd.f32 %v1021, %v1064
    %s1067 = sld [smem:[#allocation14 + $0x3]]
    %v1068 = vstv %s1067
    %v1069 = vmul.f32 %v1068, %v1046
    %v1070 = vmul.f32 %v1068, %v1047
    %v1071 = vadd.f32 %v1041, %v1069
    %v1072 = vadd.f32 %v1042, %v1070
    %s1073 = sld [smem:[#allocation11 + $0x1a]]
    %v1074 = vstv %s1073
    %v1075 = vmul.f32 %v1074, %v1043
    %v1076 = vmul.f32 %v1074, %v1044
    %v1077 = vmul.f32 %v1074, %v1045
    %v1081 = vrot.slane %v1075, 1
    %v1082 = vrot.slane %v1076, 1
    %v1083 = vsel %vm465, %v1081, %v1082
    %v1084 = vrot.slane %v1077, 1
    %v1085 = vsel %vm465, %v1082, %v1084
    %v1088 = vadd.f32 %v1053, %v1083
    %v1089 = vadd.f32 %v1054, %v1085
    %s1090 = sld [smem:[#allocation14 + $0x1a]]
    %v1091 = vstv %s1090
    %v1092 = vmul.f32 %v1091, %v1046
    %v1093 = vmul.f32 %v1091, %v1047
    %v1094 = vmul.f32 %v1091, %v1048
    %v1098 = vrot.slane %v1092, 1
    %v1099 = vrot.slane %v1093, 1
    %v1100 = vsel %vm465, %v1098, %v1099
    %v1101 = vrot.slane %v1094, 1
    %v1102 = vsel %vm465, %v1099, %v1101
    %v1105 = vadd.f32 %v1059, %v1100
    %v1106 = vadd.f32 %v1060, %v1102
    %s1107 = sld [smem:[#allocation11 + $0x1b]]
    %v1108 = vstv %s1107
    %v1109 = vmul.f32 %v1108, %v1043
    %v1110 = vmul.f32 %v1108, %v1044
    %v1111 = vmul.f32 %v1108, %v1045
    %v1115 = vrot.slane %v1109, 1
    %v1116 = vrot.slane %v1110, 1
    %v1117 = vsel %vm465, %v1115, %v1116
    %v1118 = vrot.slane %v1111, 1
    %v1119 = vsel %vm465, %v1116, %v1118
    %v1122 = vadd.f32 %v1065, %v1117
    %v1123 = vadd.f32 %v1066, %v1119
    %s1124 = sld [smem:[#allocation14 + $0x1b]]
    %v1125 = vstv %s1124
    %v1126 = vmul.f32 %v1125, %v1046
    %v1127 = vmul.f32 %v1125, %v1047
    %v1128 = vmul.f32 %v1125, %v1048
    %v1132 = vrot.slane %v1126, 1
    %v1133 = vrot.slane %v1127, 1
    %v1134 = vsel %vm465, %v1132, %v1133
    %v1135 = vrot.slane %v1128, 1
    %v1136 = vsel %vm465, %v1133, %v1135
    %v1139 = vadd.f32 %v1071, %v1134
    %v1140 = vadd.f32 %v1072, %v1136
    %s1141 = sld [smem:[#allocation11 + $0x32]]
    %v1142 = vstv %s1141
    %v1143 = vmul.f32 %v1142, %v1043
    %v1144 = vmul.f32 %v1142, %v1044
    %v1145 = vmul.f32 %v1142, %v1045
    %v1149 = vrot.slane %v1143, 2
    %v1150 = vrot.slane %v1144, 2
    %v1151 = vsel %vm534, %v1149, %v1150
    %v1152 = vrot.slane %v1145, 2
    %v1153 = vsel %vm534, %v1150, %v1152
    %v1156 = vadd.f32 %v1088, %v1151
    %v1157 = vadd.f32 %v1089, %v1153
    %s1158 = sld [smem:[#allocation14 + $0x32]]
    %v1159 = vstv %s1158
    %v1160 = vmul.f32 %v1159, %v1046
    %v1161 = vmul.f32 %v1159, %v1047
    %v1162 = vmul.f32 %v1159, %v1048
    %v1166 = vrot.slane %v1160, 2
    %v1167 = vrot.slane %v1161, 2
    %v1168 = vsel %vm534, %v1166, %v1167
    %v1169 = vrot.slane %v1162, 2
    %v1170 = vsel %vm534, %v1167, %v1169
    %v1173 = vadd.f32 %v1105, %v1168
    %v1174 = vadd.f32 %v1106, %v1170
    %s1175 = sld [smem:[#allocation11 + $0x33]]
    %v1176 = vstv %s1175
    %v1177 = vmul.f32 %v1176, %v1043
    %v1178 = vmul.f32 %v1176, %v1044
    %v1179 = vmul.f32 %v1176, %v1045
    %v1183 = vrot.slane %v1177, 2
    %v1184 = vrot.slane %v1178, 2
    %v1185 = vsel %vm534, %v1183, %v1184
    %v1186 = vrot.slane %v1179, 2
    %v1187 = vsel %vm534, %v1184, %v1186
    %v1190 = vadd.f32 %v1122, %v1185
    %v1191 = vadd.f32 %v1123, %v1187
    %s1192 = sld [smem:[#allocation14 + $0x33]]
    %v1193 = vstv %s1192
    %v1194 = vmul.f32 %v1193, %v1046
    %v1195 = vmul.f32 %v1193, %v1047
    %v1196 = vmul.f32 %v1193, %v1048
    %v1200 = vrot.slane %v1194, 2
    %v1201 = vrot.slane %v1195, 2
    %v1202 = vsel %vm534, %v1200, %v1201
    %v1203 = vrot.slane %v1196, 2
    %v1204 = vsel %vm534, %v1201, %v1203
    %v1207 = vadd.f32 %v1139, %v1202
    %v1208 = vadd.f32 %v1140, %v1204
    %s1209 = sld [smem:[#allocation11 + $0xa]]
    %v1210 = vstv %s1209
    %v1211 = vmul.f32 %v1210, %v1043
    %v1212 = vmul.f32 %v1210, %v1044
    %1215 = vrot.lane.b32.xlu0 %v1211, 127
    %v1216 = vpop.permute.xlu0 %1215
    %1217 = vrot.lane.b32.xlu0 %v1212, 127
    %v1218 = vpop.permute.xlu0 %1217
    %v1221 = vadd.f32 %v1156, %v1216
    %v1222 = vadd.f32 %v1157, %v1218
    %s1223 = sld [smem:[#allocation14 + $0xa]]
    %v1224 = vstv %s1223
    %v1225 = vmul.f32 %v1224, %v1046
    %v1226 = vmul.f32 %v1224, %v1047
    %1229 = vrot.lane.b32.xlu0 %v1225, 127
    %v1230 = vpop.permute.xlu0 %1229
    %1231 = vrot.lane.b32.xlu0 %v1226, 127
    %v1232 = vpop.permute.xlu0 %1231
    %v1235 = vadd.f32 %v1173, %v1230
    %v1236 = vadd.f32 %v1174, %v1232
    %s1237 = sld [smem:[#allocation11 + $0xb]]
    %v1238 = vstv %s1237
    %v1239 = vmul.f32 %v1238, %v1043
    %v1240 = vmul.f32 %v1238, %v1044
    %1243 = vrot.lane.b32.xlu0 %v1239, 127
    %v1244 = vpop.permute.xlu0 %1243
    %1245 = vrot.lane.b32.xlu0 %v1240, 127
    %v1246 = vpop.permute.xlu0 %1245
    %v1249 = vadd.f32 %v1190, %v1244
    %v1250 = vadd.f32 %v1191, %v1246
    %s1251 = sld [smem:[#allocation14 + $0xb]]
    %v1252 = vstv %s1251
    %v1253 = vmul.f32 %v1252, %v1046
    %v1254 = vmul.f32 %v1252, %v1047
    %1257 = vrot.lane.b32.xlu0 %v1253, 127
    %v1258 = vpop.permute.xlu0 %1257
    %1259 = vrot.lane.b32.xlu0 %v1254, 127
    %v1260 = vpop.permute.xlu0 %1259
    %v1263 = vadd.f32 %v1207, %v1258
    %v1264 = vadd.f32 %v1208, %v1260
    %s1265 = sld [smem:[#allocation11 + $0x22]]
    %v1266 = vstv %s1265
    %v1267 = vmul.f32 %v1266, %v1043
    %v1268 = vmul.f32 %v1266, %v1044
    %v1269 = vmul.f32 %v1266, %v1045
    %v1273 = vrot.slane %v1267, 1
    %v1274 = vrot.slane %v1268, 1
    %v1275 = vsel %vm465, %v1273, %v1274
    %v1276 = vrot.slane %v1269, 1
    %v1277 = vsel %vm465, %v1274, %v1276
    %1278 = vrot.lane.b32.xlu0 %v1275, 127
    %v1279 = vpop.permute.xlu0 %1278
    %1280 = vrot.lane.b32.xlu0 %v1277, 127
    %v1281 = vpop.permute.xlu0 %1280
    %v1284 = vadd.f32 %v1221, %v1279
    %v1285 = vadd.f32 %v1222, %v1281
    %s1286 = sld [smem:[#allocation14 + $0x22]]
    %v1287 = vstv %s1286
    %v1288 = vmul.f32 %v1287, %v1046
    %v1289 = vmul.f32 %v1287, %v1047
    %v1290 = vmul.f32 %v1287, %v1048
    %v1294 = vrot.slane %v1288, 1
    %v1295 = vrot.slane %v1289, 1
    %v1296 = vsel %vm465, %v1294, %v1295
    %v1297 = vrot.slane %v1290, 1
    %v1298 = vsel %vm465, %v1295, %v1297
    %1299 = vrot.lane.b32.xlu0 %v1296, 127
    %v1300 = vpop.permute.xlu0 %1299
    %1301 = vrot.lane.b32.xlu0 %v1298, 127
    %v1302 = vpop.permute.xlu0 %1301
    %v1305 = vadd.f32 %v1235, %v1300
    %v1306 = vadd.f32 %v1236, %v1302
    %s1307 = sld [smem:[#allocation11 + $0x23]]
    %v1308 = vstv %s1307
    %v1309 = vmul.f32 %v1308, %v1043
    %v1310 = vmul.f32 %v1308, %v1044
    %v1311 = vmul.f32 %v1308, %v1045
    %v1315 = vrot.slane %v1309, 1
    %v1316 = vrot.slane %v1310, 1
    %v1317 = vsel %vm465, %v1315, %v1316
    %v1318 = vrot.slane %v1311, 1
    %v1319 = vsel %vm465, %v1316, %v1318
    %1320 = vrot.lane.b32.xlu0 %v1317, 127
    %v1321 = vpop.permute.xlu0 %1320
    %1322 = vrot.lane.b32.xlu0 %v1319, 127
    %v1323 = vpop.permute.xlu0 %1322
    %v1326 = vadd.f32 %v1249, %v1321
    %v1327 = vadd.f32 %v1250, %v1323
    %s1328 = sld [smem:[#allocation14 + $0x23]]
    %v1329 = vstv %s1328
    %v1330 = vmul.f32 %v1329, %v1046
    %v1331 = vmul.f32 %v1329, %v1047
    %v1332 = vmul.f32 %v1329, %v1048
    %v1336 = vrot.slane %v1330, 1
    %v1337 = vrot.slane %v1331, 1
    %v1338 = vsel %vm465, %v1336, %v1337
    %v1339 = vrot.slane %v1332, 1
    %v1340 = vsel %vm465, %v1337, %v1339
    %1341 = vrot.lane.b32.xlu0 %v1338, 127
    %v1342 = vpop.permute.xlu0 %1341
    %1343 = vrot.lane.b32.xlu0 %v1340, 127
    %v1344 = vpop.permute.xlu0 %1343
    %v1347 = vadd.f32 %v1263, %v1342
    %v1348 = vadd.f32 %v1264, %v1344
    %s1349 = sld [smem:[#allocation11 + $0x3a]]
    %v1350 = vstv %s1349
    %v1351 = vmul.f32 %v1350, %v1043
    %v1352 = vmul.f32 %v1350, %v1044
    %v1353 = vmul.f32 %v1350, %v1045
    %v1357 = vrot.slane %v1351, 2
    %v1358 = vrot.slane %v1352, 2
    %v1359 = vsel %vm534, %v1357, %v1358
    %v1360 = vrot.slane %v1353, 2
    %v1361 = vsel %vm534, %v1358, %v1360
    %1362 = vrot.lane.b32.xlu0 %v1359, 127
    %v1363 = vpop.permute.xlu0 %1362
    %1364 = vrot.lane.b32.xlu0 %v1361, 127
    %v1365 = vpop.permute.xlu0 %1364
    %v1368 = vadd.f32 %v1284, %v1363
    %v1369 = vadd.f32 %v1285, %v1365
    %s1370 = sld [smem:[#allocation14 + $0x3a]]
    %v1371 = vstv %s1370
    %v1372 = vmul.f32 %v1371, %v1046
    %v1373 = vmul.f32 %v1371, %v1047
    %v1374 = vmul.f32 %v1371, %v1048
    %v1378 = vrot.slane %v1372, 2
    %v1379 = vrot.slane %v1373, 2
    %v1380 = vsel %vm534, %v1378, %v1379
    %v1381 = vrot.slane %v1374, 2
    %v1382 = vsel %vm534, %v1379, %v1381
    %1383 = vrot.lane.b32.xlu0 %v1380, 127
    %v1384 = vpop.permute.xlu0 %1383
    %1385 = vrot.lane.b32.xlu0 %v1382, 127
    %v1386 = vpop.permute.xlu0 %1385
    %v1389 = vadd.f32 %v1305, %v1384
    %v1390 = vadd.f32 %v1306, %v1386
    %s1391 = sld [smem:[#allocation11 + $0x3b]]
    %v1392 = vstv %s1391
    %v1393 = vmul.f32 %v1392, %v1043
    %v1394 = vmul.f32 %v1392, %v1044
    %v1395 = vmul.f32 %v1392, %v1045
    %v1399 = vrot.slane %v1393, 2
    %v1400 = vrot.slane %v1394, 2
    %v1401 = vsel %vm534, %v1399, %v1400
    %v1402 = vrot.slane %v1395, 2
    %v1403 = vsel %vm534, %v1400, %v1402
    %1404 = vrot.lane.b32.xlu0 %v1401, 127
    %v1405 = vpop.permute.xlu0 %1404
    %1406 = vrot.lane.b32.xlu0 %v1403, 127
    %v1407 = vpop.permute.xlu0 %1406
    %v1410 = vadd.f32 %v1326, %v1405
    %v1411 = vadd.f32 %v1327, %v1407
    %s1412 = sld [smem:[#allocation14 + $0x3b]]
    %v1413 = vstv %s1412
    %v1414 = vmul.f32 %v1413, %v1046
    %v1415 = vmul.f32 %v1413, %v1047
    %v1416 = vmul.f32 %v1413, %v1048
    %v1420 = vrot.slane %v1414, 2
    %v1421 = vrot.slane %v1415, 2
    %v1422 = vsel %vm534, %v1420, %v1421
    %v1423 = vrot.slane %v1416, 2
    %v1424 = vsel %vm534, %v1421, %v1423
    %1425 = vrot.lane.b32.xlu0 %v1422, 127
    %v1426 = vpop.permute.xlu0 %1425
    %1427 = vrot.lane.b32.xlu0 %v1424, 127
    %v1428 = vpop.permute.xlu0 %1427
    %v1431 = vadd.f32 %v1347, %v1426
    %v1432 = vadd.f32 %v1348, %v1428
    %s1433 = sld [smem:[#allocation11 + $0x12]]
    %v1434 = vstv %s1433
    %v1435 = vmul.f32 %v1434, %v1043
    %v1436 = vmul.f32 %v1434, %v1044
    %1439 = vrot.lane.b32.xlu0 %v1435, 126
    %v1440 = vpop.permute.xlu0 %1439
    %1441 = vrot.lane.b32.xlu0 %v1436, 126
    %v1442 = vpop.permute.xlu0 %1441
    %v1445 = vadd.f32 %v1368, %v1440
    %v1446 = vadd.f32 %v1369, %v1442
    %s1447 = sld [smem:[#allocation14 + $0x12]]
    %v1448 = vstv %s1447
    %v1449 = vmul.f32 %v1448, %v1046
    %v1450 = vmul.f32 %v1448, %v1047
    %1453 = vrot.lane.b32.xlu0 %v1449, 126
    %v1454 = vpop.permute.xlu0 %1453
    %1455 = vrot.lane.b32.xlu0 %v1450, 126
    %v1456 = vpop.permute.xlu0 %1455
    %v1459 = vadd.f32 %v1389, %v1454
    %v1460 = vadd.f32 %v1390, %v1456
    %s1461 = sld [smem:[#allocation11 + $0x13]]
    %v1462 = vstv %s1461
    %v1463 = vmul.f32 %v1462, %v1043
    %v1464 = vmul.f32 %v1462, %v1044
    %1467 = vrot.lane.b32.xlu0 %v1463, 126
    %v1468 = vpop.permute.xlu0 %1467
    %1469 = vrot.lane.b32.xlu0 %v1464, 126
    %v1470 = vpop.permute.xlu0 %1469
    %v1473 = vadd.f32 %v1410, %v1468
    %v1474 = vadd.f32 %v1411, %v1470
    %s1475 = sld [smem:[#allocation14 + $0x13]]
    %v1476 = vstv %s1475
    %v1477 = vmul.f32 %v1476, %v1046
    %v1478 = vmul.f32 %v1476, %v1047
    %1481 = vrot.lane.b32.xlu0 %v1477, 126
    %v1482 = vpop.permute.xlu0 %1481
    %1483 = vrot.lane.b32.xlu0 %v1478, 126
    %v1484 = vpop.permute.xlu0 %1483
    %v1487 = vadd.f32 %v1431, %v1482
    %v1488 = vadd.f32 %v1432, %v1484
    %s1489 = sld [smem:[#allocation11 + $0x2a]]
    %v1490 = vstv %s1489
    %v1491 = vmul.f32 %v1490, %v1043
    %v1492 = vmul.f32 %v1490, %v1044
    %v1493 = vmul.f32 %v1490, %v1045
    %v1497 = vrot.slane %v1491, 1
    %v1498 = vrot.slane %v1492, 1
    %v1499 = vsel %vm465, %v1497, %v1498
    %v1500 = vrot.slane %v1493, 1
    %v1501 = vsel %vm465, %v1498, %v1500
    %1502 = vrot.lane.b32.xlu0 %v1499, 126
    %v1503 = vpop.permute.xlu0 %1502
    %1504 = vrot.lane.b32.xlu0 %v1501, 126
    %v1505 = vpop.permute.xlu0 %1504
    %v1508 = vadd.f32 %v1445, %v1503
    %v1509 = vadd.f32 %v1446, %v1505
    %s1510 = sld [smem:[#allocation14 + $0x2a]]
    %v1511 = vstv %s1510
    %v1512 = vmul.f32 %v1511, %v1046
    %v1513 = vmul.f32 %v1511, %v1047
    %v1514 = vmul.f32 %v1511, %v1048
    %v1518 = vrot.slane %v1512, 1
    %v1519 = vrot.slane %v1513, 1
    %v1520 = vsel %vm465, %v1518, %v1519
    %v1521 = vrot.slane %v1514, 1
    %v1522 = vsel %vm465, %v1519, %v1521
    %1523 = vrot.lane.b32.xlu0 %v1520, 126
    %v1524 = vpop.permute.xlu0 %1523
    %1525 = vrot.lane.b32.xlu0 %v1522, 126
    %v1526 = vpop.permute.xlu0 %1525
    %v1529 = vadd.f32 %v1459, %v1524
    %v1530 = vadd.f32 %v1460, %v1526
    %s1531 = sld [smem:[#allocation11 + $0x2b]]
    %v1532 = vstv %s1531
    %v1533 = vmul.f32 %v1532, %v1043
    %v1534 = vmul.f32 %v1532, %v1044
    %v1535 = vmul.f32 %v1532, %v1045
    %v1539 = vrot.slane %v1533, 1
    %v1540 = vrot.slane %v1534, 1
    %v1541 = vsel %vm465, %v1539, %v1540
    %v1542 = vrot.slane %v1535, 1
    %v1543 = vsel %vm465, %v1540, %v1542
    %1544 = vrot.lane.b32.xlu0 %v1541, 126
    %v1545 = vpop.permute.xlu0 %1544
    %1546 = vrot.lane.b32.xlu0 %v1543, 126
    %v1547 = vpop.permute.xlu0 %1546
    %v1550 = vadd.f32 %v1473, %v1545
    %v1551 = vadd.f32 %v1474, %v1547
    %s1552 = sld [smem:[#allocation14 + $0x2b]]
    %v1553 = vstv %s1552
    %v1554 = vmul.f32 %v1553, %v1046
    %v1555 = vmul.f32 %v1553, %v1047
    %v1556 = vmul.f32 %v1553, %v1048
    %v1560 = vrot.slane %v1554, 1
    %v1561 = vrot.slane %v1555, 1
    %v1562 = vsel %vm465, %v1560, %v1561
    %v1563 = vrot.slane %v1556, 1
    %v1564 = vsel %vm465, %v1561, %v1563
    %1565 = vrot.lane.b32.xlu0 %v1562, 126
    %v1566 = vpop.permute.xlu0 %1565
    %1567 = vrot.lane.b32.xlu0 %v1564, 126
    %v1568 = vpop.permute.xlu0 %1567
    %v1571 = vadd.f32 %v1487, %v1566
    %v1572 = vadd.f32 %v1488, %v1568
    %s1573 = sld [smem:[#allocation11 + $0x42]]
    %v1574 = vstv %s1573
    %v1575 = vmul.f32 %v1574, %v1043
    %v1576 = vmul.f32 %v1574, %v1044
    %v1577 = vmul.f32 %v1574, %v1045
    %v1581 = vrot.slane %v1575, 2
    %v1582 = vrot.slane %v1576, 2
    %v1583 = vsel %vm534, %v1581, %v1582
    %v1584 = vrot.slane %v1577, 2
    %v1585 = vsel %vm534, %v1582, %v1584
    %1586 = vrot.lane.b32.xlu0 %v1583, 126
    %v1587 = vpop.permute.xlu0 %1586
    %1588 = vrot.lane.b32.xlu0 %v1585, 126
    %v1589 = vpop.permute.xlu0 %1588
    %v1592 = vadd.f32 %v1508, %v1587
    %v1593 = vadd.f32 %v1509, %v1589
    %s1594 = sld [smem:[#allocation14 + $0x42]]
    %v1595 = vstv %s1594
    %v1596 = vmul.f32 %v1595, %v1046
    %v1597 = vmul.f32 %v1595, %v1047
    %v1598 = vmul.f32 %v1595, %v1048
    %v1602 = vrot.slane %v1596, 2
    %v1603 = vrot.slane %v1597, 2
    %v1604 = vsel %vm534, %v1602, %v1603
    %v1605 = vrot.slane %v1598, 2
    %v1606 = vsel %vm534, %v1603, %v1605
    %1607 = vrot.lane.b32.xlu0 %v1604, 126
    %v1608 = vpop.permute.xlu0 %1607
    %1609 = vrot.lane.b32.xlu0 %v1606, 126
    %v1610 = vpop.permute.xlu0 %1609
    %v1613 = vadd.f32 %v1529, %v1608
    %v1614 = vadd.f32 %v1530, %v1610
    %s1615 = sld [smem:[#allocation11 + $0x43]]
    %v1616 = vstv %s1615
    %v1617 = vmul.f32 %v1616, %v1043
    %v1618 = vmul.f32 %v1616, %v1044
    %v1619 = vmul.f32 %v1616, %v1045
    %v1623 = vrot.slane %v1617, 2
    %v1624 = vrot.slane %v1618, 2
    %v1625 = vsel %vm534, %v1623, %v1624
    %v1626 = vrot.slane %v1619, 2
    %v1627 = vsel %vm534, %v1624, %v1626
    %1628 = vrot.lane.b32.xlu0 %v1625, 126
    %v1629 = vpop.permute.xlu0 %1628
    %1630 = vrot.lane.b32.xlu0 %v1627, 126
    %v1631 = vpop.permute.xlu0 %1630
    %v1634 = vadd.f32 %v1550, %v1629
    %v1635 = vadd.f32 %v1551, %v1631
    %s1636 = sld [smem:[#allocation14 + $0x43]]
    %v1637 = vstv %s1636
    %v1638 = vmul.f32 %v1637, %v1046
    %v1639 = vmul.f32 %v1637, %v1047
    %v1640 = vmul.f32 %v1637, %v1048
    %v1644 = vrot.slane %v1638, 2
    %v1645 = vrot.slane %v1639, 2
    %v1646 = vsel %vm534, %v1644, %v1645
    %v1647 = vrot.slane %v1640, 2
    %v1648 = vsel %vm534, %v1645, %v1647
    %1649 = vrot.lane.b32.xlu0 %v1646, 126
    %v1650 = vpop.permute.xlu0 %1649
    %1651 = vrot.lane.b32.xlu0 %v1648, 126
    %v1652 = vpop.permute.xlu0 %1651
    %v1655 = vadd.f32 %v1571, %v1650
    %v1656 = vadd.f32 %v1572, %v1652
    %v1657 = vld [vmem:[%s242] sm:$0xff]
    %v1658 = vld [vmem:[%s242 + $0x8] sm:$0xff]
    %v1659 = vld [vmem:[%s242 + $0x10] sm:$0x3]
    %v1660 = vld [vmem:[%s256] sm:$0xff]
    %v1661 = vld [vmem:[%s256 + $0x8] sm:$0xff]
    %v1662 = vld [vmem:[%s256 + $0x10] sm:$0x3]
    %s1663 = sld [smem:[#allocation11 + $0x4]]
    %v1664 = vstv %s1663
    %v1665 = vmul.f32 %v1664, %v1657
    %v1666 = vmul.f32 %v1664, %v1658
    %v1667 = vadd.f32 %v1592, %v1665
    %v1668 = vadd.f32 %v1593, %v1666
    %s1669 = sld [smem:[#allocation14 + $0x4]]
    %v1670 = vstv %s1669
    %v1671 = vmul.f32 %v1670, %v1660
    %v1672 = vmul.f32 %v1670, %v1661
    %v1673 = vadd.f32 %v1613, %v1671
    %v1674 = vadd.f32 %v1614, %v1672
    %s1675 = sld [smem:[#allocation11 + $0x5]]
    %v1676 = vstv %s1675
    %v1677 = vmul.f32 %v1676, %v1657
    %v1678 = vmul.f32 %v1676, %v1658
    %v1679 = vadd.f32 %v1634, %v1677
    %v1680 = vadd.f32 %v1635, %v1678
    %s1681 = sld [smem:[#allocation14 + $0x5]]
    %v1682 = vstv %s1681
    %v1683 = vmul.f32 %v1682, %v1660
    %v1684 = vmul.f32 %v1682, %v1661
    %v1685 = vadd.f32 %v1655, %v1683
    %v1686 = vadd.f32 %v1656, %v1684
    %s1687 = sld [smem:[#allocation11 + $0x1c]]
    %v1688 = vstv %s1687
    %v1689 = vmul.f32 %v1688, %v1657
    %v1690 = vmul.f32 %v1688, %v1658
    %v1691 = vmul.f32 %v1688, %v1659
    %v1695 = vrot.slane %v1689, 1
    %v1696 = vrot.slane %v1690, 1
    %v1697 = vsel %vm465, %v1695, %v1696
    %v1698 = vrot.slane %v1691, 1
    %v1699 = vsel %vm465, %v1696, %v1698
    %v1702 = vadd.f32 %v1667, %v1697
    %v1703 = vadd.f32 %v1668, %v1699
    %s1704 = sld [smem:[#allocation14 + $0x1c]]
    %v1705 = vstv %s1704
    %v1706 = vmul.f32 %v1705, %v1660
    %v1707 = vmul.f32 %v1705, %v1661
    %v1708 = vmul.f32 %v1705, %v1662
    %v1712 = vrot.slane %v1706, 1
    %v1713 = vrot.slane %v1707, 1
    %v1714 = vsel %vm465, %v1712, %v1713
    %v1715 = vrot.slane %v1708, 1
    %v1716 = vsel %vm465, %v1713, %v1715
    %v1719 = vadd.f32 %v1673, %v1714
    %v1720 = vadd.f32 %v1674, %v1716
    %s1721 = sld [smem:[#allocation11 + $0x1d]]
    %v1722 = vstv %s1721
    %v1723 = vmul.f32 %v1722, %v1657
    %v1724 = vmul.f32 %v1722, %v1658
    %v1725 = vmul.f32 %v1722, %v1659
    %v1729 = vrot.slane %v1723, 1
    %v1730 = vrot.slane %v1724, 1
    %v1731 = vsel %vm465, %v1729, %v1730
    %v1732 = vrot.slane %v1725, 1
    %v1733 = vsel %vm465, %v1730, %v1732
    %v1736 = vadd.f32 %v1679, %v1731
    %v1737 = vadd.f32 %v1680, %v1733
    %s1738 = sld [smem:[#allocation14 + $0x1d]]
    %v1739 = vstv %s1738
    %v1740 = vmul.f32 %v1739, %v1660
    %v1741 = vmul.f32 %v1739, %v1661
    %v1742 = vmul.f32 %v1739, %v1662
    %v1746 = vrot.slane %v1740, 1
    %v1747 = vrot.slane %v1741, 1
    %v1748 = vsel %vm465, %v1746, %v1747
    %v1749 = vrot.slane %v1742, 1
    %v1750 = vsel %vm465, %v1747, %v1749
    %v1753 = vadd.f32 %v1685, %v1748
    %v1754 = vadd.f32 %v1686, %v1750
    %s1755 = sld [smem:[#allocation11 + $0x34]]
    %v1756 = vstv %s1755
    %v1757 = vmul.f32 %v1756, %v1657
    %v1758 = vmul.f32 %v1756, %v1658
    %v1759 = vmul.f32 %v1756, %v1659
    %v1763 = vrot.slane %v1757, 2
    %v1764 = vrot.slane %v1758, 2
    %v1765 = vsel %vm534, %v1763, %v1764
    %v1766 = vrot.slane %v1759, 2
    %v1767 = vsel %vm534, %v1764, %v1766
    %v1770 = vadd.f32 %v1702, %v1765
    %v1771 = vadd.f32 %v1703, %v1767
    %s1772 = sld [smem:[#allocation14 + $0x34]]
    %v1773 = vstv %s1772
    %v1774 = vmul.f32 %v1773, %v1660
    %v1775 = vmul.f32 %v1773, %v1661
    %v1776 = vmul.f32 %v1773, %v1662
    %v1780 = vrot.slane %v1774, 2
    %v1781 = vrot.slane %v1775, 2
    %v1782 = vsel %vm534, %v1780, %v1781
    %v1783 = vrot.slane %v1776, 2
    %v1784 = vsel %vm534, %v1781, %v1783
    %v1787 = vadd.f32 %v1719, %v1782
    %v1788 = vadd.f32 %v1720, %v1784
    %s1789 = sld [smem:[#allocation11 + $0x35]]
    %v1790 = vstv %s1789
    %v1791 = vmul.f32 %v1790, %v1657
    %v1792 = vmul.f32 %v1790, %v1658
    %v1793 = vmul.f32 %v1790, %v1659
    %v1797 = vrot.slane %v1791, 2
    %v1798 = vrot.slane %v1792, 2
    %v1799 = vsel %vm534, %v1797, %v1798
    %v1800 = vrot.slane %v1793, 2
    %v1801 = vsel %vm534, %v1798, %v1800
    %v1804 = vadd.f32 %v1736, %v1799
    %v1805 = vadd.f32 %v1737, %v1801
    %s1806 = sld [smem:[#allocation14 + $0x35]]
    %v1807 = vstv %s1806
    %v1808 = vmul.f32 %v1807, %v1660
    %v1809 = vmul.f32 %v1807, %v1661
    %v1810 = vmul.f32 %v1807, %v1662
    %v1814 = vrot.slane %v1808, 2
    %v1815 = vrot.slane %v1809, 2
    %v1816 = vsel %vm534, %v1814, %v1815
    %v1817 = vrot.slane %v1810, 2
    %v1818 = vsel %vm534, %v1815, %v1817
    %v1821 = vadd.f32 %v1753, %v1816
    %v1822 = vadd.f32 %v1754, %v1818
    %s1823 = sld [smem:[#allocation11 + $0xc]]
    %v1824 = vstv %s1823
    %v1825 = vmul.f32 %v1824, %v1657
    %v1826 = vmul.f32 %v1824, %v1658
    %1829 = vrot.lane.b32.xlu0 %v1825, 127
    %v1830 = vpop.permute.xlu0 %1829
    %1831 = vrot.lane.b32.xlu0 %v1826, 127
    %v1832 = vpop.permute.xlu0 %1831
    %v1835 = vadd.f32 %v1770, %v1830
    %v1836 = vadd.f32 %v1771, %v1832
    %s1837 = sld [smem:[#allocation14 + $0xc]]
    %v1838 = vstv %s1837
    %v1839 = vmul.f32 %v1838, %v1660
    %v1840 = vmul.f32 %v1838, %v1661
    %1843 = vrot.lane.b32.xlu0 %v1839, 127
    %v1844 = vpop.permute.xlu0 %1843
    %1845 = vrot.lane.b32.xlu0 %v1840, 127
    %v1846 = vpop.permute.xlu0 %1845
    %v1849 = vadd.f32 %v1787, %v1844
    %v1850 = vadd.f32 %v1788, %v1846
    %s1851 = sld [smem:[#allocation11 + $0xd]]
    %v1852 = vstv %s1851
    %v1853 = vmul.f32 %v1852, %v1657
    %v1854 = vmul.f32 %v1852, %v1658
    %1857 = vrot.lane.b32.xlu0 %v1853, 127
    %v1858 = vpop.permute.xlu0 %1857
    %1859 = vrot.lane.b32.xlu0 %v1854, 127
    %v1860 = vpop.permute.xlu0 %1859
    %v1863 = vadd.f32 %v1804, %v1858
    %v1864 = vadd.f32 %v1805, %v1860
    %s1865 = sld [smem:[#allocation14 + $0xd]]
    %v1866 = vstv %s1865
    %v1867 = vmul.f32 %v1866, %v1660
    %v1868 = vmul.f32 %v1866, %v1661
    %1871 = vrot.lane.b32.xlu0 %v1867, 127
    %v1872 = vpop.permute.xlu0 %1871
    %1873 = vrot.lane.b32.xlu0 %v1868, 127
    %v1874 = vpop.permute.xlu0 %1873
    %v1877 = vadd.f32 %v1821, %v1872
    %v1878 = vadd.f32 %v1822, %v1874
    %s1879 = sld [smem:[#allocation11 + $0x24]]
    %v1880 = vstv %s1879
    %v1881 = vmul.f32 %v1880, %v1657
    %v1882 = vmul.f32 %v1880, %v1658
    %v1883 = vmul.f32 %v1880, %v1659
    %v1887 = vrot.slane %v1881, 1
    %v1888 = vrot.slane %v1882, 1
    %v1889 = vsel %vm465, %v1887, %v1888
    %v1890 = vrot.slane %v1883, 1
    %v1891 = vsel %vm465, %v1888, %v1890
    %1892 = vrot.lane.b32.xlu0 %v1889, 127
    %v1893 = vpop.permute.xlu0 %1892
    %1894 = vrot.lane.b32.xlu0 %v1891, 127
    %v1895 = vpop.permute.xlu0 %1894
    %v1898 = vadd.f32 %v1835, %v1893
    %v1899 = vadd.f32 %v1836, %v1895
    %s1900 = sld [smem:[#allocation14 + $0x24]]
    %v1901 = vstv %s1900
    %v1902 = vmul.f32 %v1901, %v1660
    %v1903 = vmul.f32 %v1901, %v1661
    %v1904 = vmul.f32 %v1901, %v1662
    %v1908 = vrot.slane %v1902, 1
    %v1909 = vrot.slane %v1903, 1
    %v1910 = vsel %vm465, %v1908, %v1909
    %v1911 = vrot.slane %v1904, 1
    %v1912 = vsel %vm465, %v1909, %v1911
    %1913 = vrot.lane.b32.xlu0 %v1910, 127
    %v1914 = vpop.permute.xlu0 %1913
    %1915 = vrot.lane.b32.xlu0 %v1912, 127
    %v1916 = vpop.permute.xlu0 %1915
    %v1919 = vadd.f32 %v1849, %v1914
    %v1920 = vadd.f32 %v1850, %v1916
    %s1921 = sld [smem:[#allocation11 + $0x25]]
    %v1922 = vstv %s1921
    %v1923 = vmul.f32 %v1922, %v1657
    %v1924 = vmul.f32 %v1922, %v1658
    %v1925 = vmul.f32 %v1922, %v1659
    %v1929 = vrot.slane %v1923, 1
    %v1930 = vrot.slane %v1924, 1
    %v1931 = vsel %vm465, %v1929, %v1930
    %v1932 = vrot.slane %v1925, 1
    %v1933 = vsel %vm465, %v1930, %v1932
    %1934 = vrot.lane.b32.xlu0 %v1931, 127
    %v1935 = vpop.permute.xlu0 %1934
    %1936 = vrot.lane.b32.xlu0 %v1933, 127
    %v1937 = vpop.permute.xlu0 %1936
    %v1940 = vadd.f32 %v1863, %v1935
    %v1941 = vadd.f32 %v1864, %v1937
    %s1942 = sld [smem:[#allocation14 + $0x25]]
    %v1943 = vstv %s1942
    %v1944 = vmul.f32 %v1943, %v1660
    %v1945 = vmul.f32 %v1943, %v1661
    %v1946 = vmul.f32 %v1943, %v1662
    %v1950 = vrot.slane %v1944, 1
    %v1951 = vrot.slane %v1945, 1
    %v1952 = vsel %vm465, %v1950, %v1951
    %v1953 = vrot.slane %v1946, 1
    %v1954 = vsel %vm465, %v1951, %v1953
    %1955 = vrot.lane.b32.xlu0 %v1952, 127
    %v1956 = vpop.permute.xlu0 %1955
    %1957 = vrot.lane.b32.xlu0 %v1954, 127
    %v1958 = vpop.permute.xlu0 %1957
    %v1961 = vadd.f32 %v1877, %v1956
    %v1962 = vadd.f32 %v1878, %v1958
    %s1963 = sld [smem:[#allocation11 + $0x3c]]
    %v1964 = vstv %s1963
    %v1965 = vmul.f32 %v1964, %v1657
    %v1966 = vmul.f32 %v1964, %v1658
    %v1967 = vmul.f32 %v1964, %v1659
    %v1971 = vrot.slane %v1965, 2
    %v1972 = vrot.slane %v1966, 2
    %v1973 = vsel %vm534, %v1971, %v1972
    %v1974 = vrot.slane %v1967, 2
    %v1975 = vsel %vm534, %v1972, %v1974
    %1976 = vrot.lane.b32.xlu0 %v1973, 127
    %v1977 = vpop.permute.xlu0 %1976
    %1978 = vrot.lane.b32.xlu0 %v1975, 127
    %v1979 = vpop.permute.xlu0 %1978
    %v1982 = vadd.f32 %v1898, %v1977
    %v1983 = vadd.f32 %v1899, %v1979
    %s1984 = sld [smem:[#allocation14 + $0x3c]]
    %v1985 = vstv %s1984
    %v1986 = vmul.f32 %v1985, %v1660
    %v1987 = vmul.f32 %v1985, %v1661
    %v1988 = vmul.f32 %v1985, %v1662
    %v1992 = vrot.slane %v1986, 2
    %v1993 = vrot.slane %v1987, 2
    %v1994 = vsel %vm534, %v1992, %v1993
    %v1995 = vrot.slane %v1988, 2
    %v1996 = vsel %vm534, %v1993, %v1995
    %1997 = vrot.lane.b32.xlu0 %v1994, 127
    %v1998 = vpop.permute.xlu0 %1997
    %1999 = vrot.lane.b32.xlu0 %v1996, 127
    %v2000 = vpop.permute.xlu0 %1999
    %v2003 = vadd.f32 %v1919, %v1998
    %v2004 = vadd.f32 %v1920, %v2000
    %s2005 = sld [smem:[#allocation11 + $0x3d]]
    %v2006 = vstv %s2005
    %v2007 = vmul.f32 %v2006, %v1657
    %v2008 = vmul.f32 %v2006, %v1658
    %v2009 = vmul.f32 %v2006, %v1659
    %v2013 = vrot.slane %v2007, 2
    %v2014 = vrot.slane %v2008, 2
    %v2015 = vsel %vm534, %v2013, %v2014
    %v2016 = vrot.slane %v2009, 2
    %v2017 = vsel %vm534, %v2014, %v2016
    %2018 = vrot.lane.b32.xlu0 %v2015, 127
    %v2019 = vpop.permute.xlu0 %2018
    %2020 = vrot.lane.b32.xlu0 %v2017, 127
    %v2021 = vpop.permute.xlu0 %2020
    %v2024 = vadd.f32 %v1940, %v2019
    %v2025 = vadd.f32 %v1941, %v2021
    %s2026 = sld [smem:[#allocation14 + $0x3d]]
    %v2027 = vstv %s2026
    %v2028 = vmul.f32 %v2027, %v1660
    %v2029 = vmul.f32 %v2027, %v1661
    %v2030 = vmul.f32 %v2027, %v1662
    %v2034 = vrot.slane %v2028, 2
    %v2035 = vrot.slane %v2029, 2
    %v2036 = vsel %vm534, %v2034, %v2035
    %v2037 = vrot.slane %v2030, 2
    %v2038 = vsel %vm534, %v2035, %v2037
    %2039 = vrot.lane.b32.xlu0 %v2036, 127
    %v2040 = vpop.permute.xlu0 %2039
    %2041 = vrot.lane.b32.xlu0 %v2038, 127
    %v2042 = vpop.permute.xlu0 %2041
    %v2045 = vadd.f32 %v1961, %v2040
    %v2046 = vadd.f32 %v1962, %v2042
    %s2047 = sld [smem:[#allocation11 + $0x14]]
    %v2048 = vstv %s2047
    %v2049 = vmul.f32 %v2048, %v1657
    %v2050 = vmul.f32 %v2048, %v1658
    %2053 = vrot.lane.b32.xlu0 %v2049, 126
    %v2054 = vpop.permute.xlu0 %2053
    %2055 = vrot.lane.b32.xlu0 %v2050, 126
    %v2056 = vpop.permute.xlu0 %2055
    %v2059 = vadd.f32 %v1982, %v2054
    %v2060 = vadd.f32 %v1983, %v2056
    %s2061 = sld [smem:[#allocation14 + $0x14]]
    %v2062 = vstv %s2061
    %v2063 = vmul.f32 %v2062, %v1660
    %v2064 = vmul.f32 %v2062, %v1661
    %2067 = vrot.lane.b32.xlu0 %v2063, 126
    %v2068 = vpop.permute.xlu0 %2067
    %2069 = vrot.lane.b32.xlu0 %v2064, 126
    %v2070 = vpop.permute.xlu0 %2069
    %v2073 = vadd.f32 %v2003, %v2068
    %v2074 = vadd.f32 %v2004, %v2070
    %s2075 = sld [smem:[#allocation11 + $0x15]]
    %v2076 = vstv %s2075
    %v2077 = vmul.f32 %v2076, %v1657
    %v2078 = vmul.f32 %v2076, %v1658
    %2081 = vrot.lane.b32.xlu0 %v2077, 126
    %v2082 = vpop.permute.xlu0 %2081
    %2083 = vrot.lane.b32.xlu0 %v2078, 126
    %v2084 = vpop.permute.xlu0 %2083
    %v2087 = vadd.f32 %v2024, %v2082
    %v2088 = vadd.f32 %v2025, %v2084
    %s2089 = sld [smem:[#allocation14 + $0x15]]
    %v2090 = vstv %s2089
    %v2091 = vmul.f32 %v2090, %v1660
    %v2092 = vmul.f32 %v2090, %v1661
    %2095 = vrot.lane.b32.xlu0 %v2091, 126
    %v2096 = vpop.permute.xlu0 %2095
    %2097 = vrot.lane.b32.xlu0 %v2092, 126
    %v2098 = vpop.permute.xlu0 %2097
    %v2101 = vadd.f32 %v2045, %v2096
    %v2102 = vadd.f32 %v2046, %v2098
    %s2103 = sld [smem:[#allocation11 + $0x2c]]
    %v2104 = vstv %s2103
    %v2105 = vmul.f32 %v2104, %v1657
    %v2106 = vmul.f32 %v2104, %v1658
    %v2107 = vmul.f32 %v2104, %v1659
    %v2111 = vrot.slane %v2105, 1
    %v2112 = vrot.slane %v2106, 1
    %v2113 = vsel %vm465, %v2111, %v2112
    %v2114 = vrot.slane %v2107, 1
    %v2115 = vsel %vm465, %v2112, %v2114
    %2116 = vrot.lane.b32.xlu0 %v2113, 126
    %v2117 = vpop.permute.xlu0 %2116
    %2118 = vrot.lane.b32.xlu0 %v2115, 126
    %v2119 = vpop.permute.xlu0 %2118
    %v2122 = vadd.f32 %v2059, %v2117
    %v2123 = vadd.f32 %v2060, %v2119
    %s2124 = sld [smem:[#allocation14 + $0x2c]]
    %v2125 = vstv %s2124
    %v2126 = vmul.f32 %v2125, %v1660
    %v2127 = vmul.f32 %v2125, %v1661
    %v2128 = vmul.f32 %v2125, %v1662
    %v2132 = vrot.slane %v2126, 1
    %v2133 = vrot.slane %v2127, 1
    %v2134 = vsel %vm465, %v2132, %v2133
    %v2135 = vrot.slane %v2128, 1
    %v2136 = vsel %vm465, %v2133, %v2135
    %2137 = vrot.lane.b32.xlu0 %v2134, 126
    %v2138 = vpop.permute.xlu0 %2137
    %2139 = vrot.lane.b32.xlu0 %v2136, 126
    %v2140 = vpop.permute.xlu0 %2139
    %v2143 = vadd.f32 %v2073, %v2138
    %v2144 = vadd.f32 %v2074, %v2140
    %s2145 = sld [smem:[#allocation11 + $0x2d]]
    %v2146 = vstv %s2145
    %v2147 = vmul.f32 %v2146, %v1657
    %v2148 = vmul.f32 %v2146, %v1658
    %v2149 = vmul.f32 %v2146, %v1659
    %v2153 = vrot.slane %v2147, 1
    %v2154 = vrot.slane %v2148, 1
    %v2155 = vsel %vm465, %v2153, %v2154
    %v2156 = vrot.slane %v2149, 1
    %v2157 = vsel %vm465, %v2154, %v2156
    %2158 = vrot.lane.b32.xlu0 %v2155, 126
    %v2159 = vpop.permute.xlu0 %2158
    %2160 = vrot.lane.b32.xlu0 %v2157, 126
    %v2161 = vpop.permute.xlu0 %2160
    %v2164 = vadd.f32 %v2087, %v2159
    %v2165 = vadd.f32 %v2088, %v2161
    %s2166 = sld [smem:[#allocation14 + $0x2d]]
    %v2167 = vstv %s2166
    %v2168 = vmul.f32 %v2167, %v1660
    %v2169 = vmul.f32 %v2167, %v1661
    %v2170 = vmul.f32 %v2167, %v1662
    %v2174 = vrot.slane %v2168, 1
    %v2175 = vrot.slane %v2169, 1
    %v2176 = vsel %vm465, %v2174, %v2175
    %v2177 = vrot.slane %v2170, 1
    %v2178 = vsel %vm465, %v2175, %v2177
    %2179 = vrot.lane.b32.xlu0 %v2176, 126
    %v2180 = vpop.permute.xlu0 %2179
    %2181 = vrot.lane.b32.xlu0 %v2178, 126
    %v2182 = vpop.permute.xlu0 %2181
    %v2185 = vadd.f32 %v2101, %v2180
    %v2186 = vadd.f32 %v2102, %v2182
    %s2187 = sld [smem:[#allocation11 + $0x44]]
    %v2188 = vstv %s2187
    %v2189 = vmul.f32 %v2188, %v1657
    %v2190 = vmul.f32 %v2188, %v1658
    %v2191 = vmul.f32 %v2188, %v1659
    %v2195 = vrot.slane %v2189, 2
    %v2196 = vrot.slane %v2190, 2
    %v2197 = vsel %vm534, %v2195, %v2196
    %v2198 = vrot.slane %v2191, 2
    %v2199 = vsel %vm534, %v2196, %v2198
    %2200 = vrot.lane.b32.xlu0 %v2197, 126
    %v2201 = vpop.permute.xlu0 %2200
    %2202 = vrot.lane.b32.xlu0 %v2199, 126
    %v2203 = vpop.permute.xlu0 %2202
    %v2206 = vadd.f32 %v2122, %v2201
    %v2207 = vadd.f32 %v2123, %v2203
    %s2208 = sld [smem:[#allocation14 + $0x44]]
    %v2209 = vstv %s2208
    %v2210 = vmul.f32 %v2209, %v1660
    %v2211 = vmul.f32 %v2209, %v1661
    %v2212 = vmul.f32 %v2209, %v1662
    %v2216 = vrot.slane %v2210, 2
    %v2217 = vrot.slane %v2211, 2
    %v2218 = vsel %vm534, %v2216, %v2217
    %v2219 = vrot.slane %v2212, 2
    %v2220 = vsel %vm534, %v2217, %v2219
    %2221 = vrot.lane.b32.xlu0 %v2218, 126
    %v2222 = vpop.permute.xlu0 %2221
    %2223 = vrot.lane.b32.xlu0 %v2220, 126
    %v2224 = vpop.permute.xlu0 %2223
    %v2227 = vadd.f32 %v2143, %v2222
    %v2228 = vadd.f32 %v2144, %v2224
    %s2229 = sld [smem:[#allocation11 + $0x45]]
    %v2230 = vstv %s2229
    %v2231 = vmul.f32 %v2230, %v1657
    %v2232 = vmul.f32 %v2230, %v1658
    %v2233 = vmul.f32 %v2230, %v1659
    %v2237 = vrot.slane %v2231, 2
    %v2238 = vrot.slane %v2232, 2
    %v2239 = vsel %vm534, %v2237, %v2238
    %v2240 = vrot.slane %v2233, 2
    %v2241 = vsel %vm534, %v2238, %v2240
    %2242 = vrot.lane.b32.xlu0 %v2239, 126
    %v2243 = vpop.permute.xlu0 %2242
    %2244 = vrot.lane.b32.xlu0 %v2241, 126
    %v2245 = vpop.permute.xlu0 %2244
    %v2248 = vadd.f32 %v2164, %v2243
    %v2249 = vadd.f32 %v2165, %v2245
    %s2250 = sld [smem:[#allocation14 + $0x45]]
    %v2251 = vstv %s2250
    %v2252 = vmul.f32 %v2251, %v1660
    %v2253 = vmul.f32 %v2251, %v1661
    %v2254 = vmul.f32 %v2251, %v1662
    %v2258 = vrot.slane %v2252, 2
    %v2259 = vrot.slane %v2253, 2
    %v2260 = vsel %vm534, %v2258, %v2259
    %v2261 = vrot.slane %v2254, 2
    %v2262 = vsel %vm534, %v2259, %v2261
    %2263 = vrot.lane.b32.xlu0 %v2260, 126
    %v2264 = vpop.permute.xlu0 %2263
    %2265 = vrot.lane.b32.xlu0 %v2262, 126
    %v2266 = vpop.permute.xlu0 %2265
    %v2269 = vadd.f32 %v2185, %v2264
    %v2270 = vadd.f32 %v2186, %v2266
    %v2271 = vld [vmem:[%s270] sm:$0xff]
    %v2272 = vld [vmem:[%s270 + $0x8] sm:$0xff]
    %v2273 = vld [vmem:[%s270 + $0x10] sm:$0x3]
    %v2274 = vld [vmem:[%s284] sm:$0xff]
    %v2275 = vld [vmem:[%s284 + $0x8] sm:$0xff]
    %v2276 = vld [vmem:[%s284 + $0x10] sm:$0x3]
    %s2277 = sld [smem:[#allocation11 + $0x6]]
    %v2278 = vstv %s2277
    %v2279 = vmul.f32 %v2278, %v2271
    %v2280 = vmul.f32 %v2278, %v2272
    %v2281 = vadd.f32 %v2206, %v2279
    %v2282 = vadd.f32 %v2207, %v2280
    %s2283 = sld [smem:[#allocation14 + $0x6]]
    %v2284 = vstv %s2283
    %v2285 = vmul.f32 %v2284, %v2274
    %v2286 = vmul.f32 %v2284, %v2275
    %v2287 = vadd.f32 %v2227, %v2285
    %v2288 = vadd.f32 %v2228, %v2286
    %s2289 = sld [smem:[#allocation11 + $0x7]]
    %v2290 = vstv %s2289
    %v2291 = vmul.f32 %v2290, %v2271
    %v2292 = vmul.f32 %v2290, %v2272
    %v2293 = vadd.f32 %v2248, %v2291
    %v2294 = vadd.f32 %v2249, %v2292
    %s2295 = sld [smem:[#allocation14 + $0x7]]
    %v2296 = vstv %s2295
    %v2297 = vmul.f32 %v2296, %v2274
    %v2298 = vmul.f32 %v2296, %v2275
    %v2299 = vadd.f32 %v2269, %v2297
    %v2300 = vadd.f32 %v2270, %v2298
    %s2301 = sld [smem:[#allocation11 + $0x1e]]
    %v2302 = vstv %s2301
    %v2303 = vmul.f32 %v2302, %v2271
    %v2304 = vmul.f32 %v2302, %v2272
    %v2305 = vmul.f32 %v2302, %v2273
    %v2309 = vrot.slane %v2303, 1
    %v2310 = vrot.slane %v2304, 1
    %v2311 = vsel %vm465, %v2309, %v2310
    %v2312 = vrot.slane %v2305, 1
    %v2313 = vsel %vm465, %v2310, %v2312
    %v2316 = vadd.f32 %v2281, %v2311
    %v2317 = vadd.f32 %v2282, %v2313
    %s2318 = sld [smem:[#allocation14 + $0x1e]]
    %v2319 = vstv %s2318
    %v2320 = vmul.f32 %v2319, %v2274
    %v2321 = vmul.f32 %v2319, %v2275
    %v2322 = vmul.f32 %v2319, %v2276
    %v2326 = vrot.slane %v2320, 1
    %v2327 = vrot.slane %v2321, 1
    %v2328 = vsel %vm465, %v2326, %v2327
    %v2329 = vrot.slane %v2322, 1
    %v2330 = vsel %vm465, %v2327, %v2329
    %v2333 = vadd.f32 %v2287, %v2328
    %v2334 = vadd.f32 %v2288, %v2330
    %s2335 = sld [smem:[#allocation11 + $0x1f]]
    %v2336 = vstv %s2335
    %v2337 = vmul.f32 %v2336, %v2271
    %v2338 = vmul.f32 %v2336, %v2272
    %v2339 = vmul.f32 %v2336, %v2273
    %v2343 = vrot.slane %v2337, 1
    %v2344 = vrot.slane %v2338, 1
    %v2345 = vsel %vm465, %v2343, %v2344
    %v2346 = vrot.slane %v2339, 1
    %v2347 = vsel %vm465, %v2344, %v2346
    %v2350 = vadd.f32 %v2293, %v2345
    %v2351 = vadd.f32 %v2294, %v2347
    %s2352 = sld [smem:[#allocation14 + $0x1f]]
    %v2353 = vstv %s2352
    %v2354 = vmul.f32 %v2353, %v2274
    %v2355 = vmul.f32 %v2353, %v2275
    %v2356 = vmul.f32 %v2353, %v2276
    %v2360 = vrot.slane %v2354, 1
    %v2361 = vrot.slane %v2355, 1
    %v2362 = vsel %vm465, %v2360, %v2361
    %v2363 = vrot.slane %v2356, 1
    %v2364 = vsel %vm465, %v2361, %v2363
    %v2367 = vadd.f32 %v2299, %v2362
    %v2368 = vadd.f32 %v2300, %v2364
    %s2369 = sld [smem:[#allocation11 + $0x36]]
    %v2370 = vstv %s2369
    %v2371 = vmul.f32 %v2370, %v2271
    %v2372 = vmul.f32 %v2370, %v2272
    %v2373 = vmul.f32 %v2370, %v2273
    %v2377 = vrot.slane %v2371, 2
    %v2378 = vrot.slane %v2372, 2
    %v2379 = vsel %vm534, %v2377, %v2378
    %v2380 = vrot.slane %v2373, 2
    %v2381 = vsel %vm534, %v2378, %v2380
    %v2384 = vadd.f32 %v2316, %v2379
    %v2385 = vadd.f32 %v2317, %v2381
    %s2386 = sld [smem:[#allocation14 + $0x36]]
    %v2387 = vstv %s2386
    %v2388 = vmul.f32 %v2387, %v2274
    %v2389 = vmul.f32 %v2387, %v2275
    %v2390 = vmul.f32 %v2387, %v2276
    %v2394 = vrot.slane %v2388, 2
    %v2395 = vrot.slane %v2389, 2
    %v2396 = vsel %vm534, %v2394, %v2395
    %v2397 = vrot.slane %v2390, 2
    %v2398 = vsel %vm534, %v2395, %v2397
    %v2401 = vadd.f32 %v2333, %v2396
    %v2402 = vadd.f32 %v2334, %v2398
    %s2403 = sld [smem:[#allocation11 + $0x37]]
    %v2404 = vstv %s2403
    %v2405 = vmul.f32 %v2404, %v2271
    %v2406 = vmul.f32 %v2404, %v2272
    %v2407 = vmul.f32 %v2404, %v2273
    %v2411 = vrot.slane %v2405, 2
    %v2412 = vrot.slane %v2406, 2
    %v2413 = vsel %vm534, %v2411, %v2412
    %v2414 = vrot.slane %v2407, 2
    %v2415 = vsel %vm534, %v2412, %v2414
    %v2418 = vadd.f32 %v2350, %v2413
    %v2419 = vadd.f32 %v2351, %v2415
    %s2420 = sld [smem:[#allocation14 + $0x37]]
    %v2421 = vstv %s2420
    %v2422 = vmul.f32 %v2421, %v2274
    %v2423 = vmul.f32 %v2421, %v2275
    %v2424 = vmul.f32 %v2421, %v2276
    %v2428 = vrot.slane %v2422, 2
    %v2429 = vrot.slane %v2423, 2
    %v2430 = vsel %vm534, %v2428, %v2429
    %v2431 = vrot.slane %v2424, 2
    %v2432 = vsel %vm534, %v2429, %v2431
    %v2435 = vadd.f32 %v2367, %v2430
    %v2436 = vadd.f32 %v2368, %v2432
    %s2437 = sld [smem:[#allocation11 + $0xe]]
    %v2438 = vstv %s2437
    %v2439 = vmul.f32 %v2438, %v2271
    %v2440 = vmul.f32 %v2438, %v2272
    %2443 = vrot.lane.b32.xlu0 %v2439, 127
    %v2444 = vpop.permute.xlu0 %2443
    %2445 = vrot.lane.b32.xlu0 %v2440, 127
    %v2446 = vpop.permute.xlu0 %2445
    %v2449 = vadd.f32 %v2384, %v2444
    %v2450 = vadd.f32 %v2385, %v2446
    %s2451 = sld [smem:[#allocation14 + $0xe]]
    %v2452 = vstv %s2451
    %v2453 = vmul.f32 %v2452, %v2274
    %v2454 = vmul.f32 %v2452, %v2275
    %2457 = vrot.lane.b32.xlu0 %v2453, 127
    %v2458 = vpop.permute.xlu0 %2457
    %2459 = vrot.lane.b32.xlu0 %v2454, 127
    %v2460 = vpop.permute.xlu0 %2459
    %v2463 = vadd.f32 %v2401, %v2458
    %v2464 = vadd.f32 %v2402, %v2460
    %s2465 = sld [smem:[#allocation11 + $0xf]]
    %v2466 = vstv %s2465
    %v2467 = vmul.f32 %v2466, %v2271
    %v2468 = vmul.f32 %v2466, %v2272
    %2471 = vrot.lane.b32.xlu0 %v2467, 127
    %v2472 = vpop.permute.xlu0 %2471
    %2473 = vrot.lane.b32.xlu0 %v2468, 127
    %v2474 = vpop.permute.xlu0 %2473
    %v2477 = vadd.f32 %v2418, %v2472
    %v2478 = vadd.f32 %v2419, %v2474
    %s2479 = sld [smem:[#allocation14 + $0xf]]
    %v2480 = vstv %s2479
    %v2481 = vmul.f32 %v2480, %v2274
    %v2482 = vmul.f32 %v2480, %v2275
    %2485 = vrot.lane.b32.xlu0 %v2481, 127
    %v2486 = vpop.permute.xlu0 %2485
    %2487 = vrot.lane.b32.xlu0 %v2482, 127
    %v2488 = vpop.permute.xlu0 %2487
    %v2491 = vadd.f32 %v2435, %v2486
    %v2492 = vadd.f32 %v2436, %v2488
    %s2493 = sld [smem:[#allocation11 + $0x26]]
    %v2494 = vstv %s2493
    %v2495 = vmul.f32 %v2494, %v2271
    %v2496 = vmul.f32 %v2494, %v2272
    %v2497 = vmul.f32 %v2494, %v2273
    %v2501 = vrot.slane %v2495, 1
    %v2502 = vrot.slane %v2496, 1
    %v2503 = vsel %vm465, %v2501, %v2502
    %v2504 = vrot.slane %v2497, 1
    %v2505 = vsel %vm465, %v2502, %v2504
    %2506 = vrot.lane.b32.xlu0 %v2503, 127
    %v2507 = vpop.permute.xlu0 %2506
    %2508 = vrot.lane.b32.xlu0 %v2505, 127
    %v2509 = vpop.permute.xlu0 %2508
    %v2512 = vadd.f32 %v2449, %v2507
    %v2513 = vadd.f32 %v2450, %v2509
    %s2514 = sld [smem:[#allocation14 + $0x26]]
    %v2515 = vstv %s2514
    %v2516 = vmul.f32 %v2515, %v2274
    %v2517 = vmul.f32 %v2515, %v2275
    %v2518 = vmul.f32 %v2515, %v2276
    %v2522 = vrot.slane %v2516, 1
    %v2523 = vrot.slane %v2517, 1
    %v2524 = vsel %vm465, %v2522, %v2523
    %v2525 = vrot.slane %v2518, 1
    %v2526 = vsel %vm465, %v2523, %v2525
    %2527 = vrot.lane.b32.xlu0 %v2524, 127
    %v2528 = vpop.permute.xlu0 %2527
    %2529 = vrot.lane.b32.xlu0 %v2526, 127
    %v2530 = vpop.permute.xlu0 %2529
    %v2533 = vadd.f32 %v2463, %v2528
    %v2534 = vadd.f32 %v2464, %v2530
    %s2535 = sld [smem:[#allocation11 + $0x27]]
    %v2536 = vstv %s2535
    %v2537 = vmul.f32 %v2536, %v2271
    %v2538 = vmul.f32 %v2536, %v2272
    %v2539 = vmul.f32 %v2536, %v2273
    %v2543 = vrot.slane %v2537, 1
    %v2544 = vrot.slane %v2538, 1
    %v2545 = vsel %vm465, %v2543, %v2544
    %v2546 = vrot.slane %v2539, 1
    %v2547 = vsel %vm465, %v2544, %v2546
    %2548 = vrot.lane.b32.xlu0 %v2545, 127
    %v2549 = vpop.permute.xlu0 %2548
    %2550 = vrot.lane.b32.xlu0 %v2547, 127
    %v2551 = vpop.permute.xlu0 %2550
    %v2554 = vadd.f32 %v2477, %v2549
    %v2555 = vadd.f32 %v2478, %v2551
    %s2556 = sld [smem:[#allocation14 + $0x27]]
    %v2557 = vstv %s2556
    %v2558 = vmul.f32 %v2557, %v2274
    %v2559 = vmul.f32 %v2557, %v2275
    %v2560 = vmul.f32 %v2557, %v2276
    %v2564 = vrot.slane %v2558, 1
    %v2565 = vrot.slane %v2559, 1
    %v2566 = vsel %vm465, %v2564, %v2565
    %v2567 = vrot.slane %v2560, 1
    %v2568 = vsel %vm465, %v2565, %v2567
    %2569 = vrot.lane.b32.xlu0 %v2566, 127
    %v2570 = vpop.permute.xlu0 %2569
    %2571 = vrot.lane.b32.xlu0 %v2568, 127
    %v2572 = vpop.permute.xlu0 %2571
    %v2575 = vadd.f32 %v2491, %v2570
    %v2576 = vadd.f32 %v2492, %v2572
    %s2577 = sld [smem:[#allocation11 + $0x3e]]
    %v2578 = vstv %s2577
    %v2579 = vmul.f32 %v2578, %v2271
    %v2580 = vmul.f32 %v2578, %v2272
    %v2581 = vmul.f32 %v2578, %v2273
    %v2585 = vrot.slane %v2579, 2
    %v2586 = vrot.slane %v2580, 2
    %v2587 = vsel %vm534, %v2585, %v2586
    %v2588 = vrot.slane %v2581, 2
    %v2589 = vsel %vm534, %v2586, %v2588
    %2590 = vrot.lane.b32.xlu0 %v2587, 127
    %v2591 = vpop.permute.xlu0 %2590
    %2592 = vrot.lane.b32.xlu0 %v2589, 127
    %v2593 = vpop.permute.xlu0 %2592
    %v2596 = vadd.f32 %v2512, %v2591
    %v2597 = vadd.f32 %v2513, %v2593
    %s2598 = sld [smem:[#allocation14 + $0x3e]]
    %v2599 = vstv %s2598
    %v2600 = vmul.f32 %v2599, %v2274
    %v2601 = vmul.f32 %v2599, %v2275
    %v2602 = vmul.f32 %v2599, %v2276
    %v2606 = vrot.slane %v2600, 2
    %v2607 = vrot.slane %v2601, 2
    %v2608 = vsel %vm534, %v2606, %v2607
    %v2609 = vrot.slane %v2602, 2
    %v2610 = vsel %vm534, %v2607, %v2609
    %2611 = vrot.lane.b32.xlu0 %v2608, 127
    %v2612 = vpop.permute.xlu0 %2611
    %2613 = vrot.lane.b32.xlu0 %v2610, 127
    %v2614 = vpop.permute.xlu0 %2613
    %v2617 = vadd.f32 %v2533, %v2612
    %v2618 = vadd.f32 %v2534, %v2614
    %s2619 = sld [smem:[#allocation11 + $0x3f]]
    %v2620 = vstv %s2619
    %v2621 = vmul.f32 %v2620, %v2271
    %v2622 = vmul.f32 %v2620, %v2272
    %v2623 = vmul.f32 %v2620, %v2273
    %v2627 = vrot.slane %v2621, 2
    %v2628 = vrot.slane %v2622, 2
    %v2629 = vsel %vm534, %v2627, %v2628
    %v2630 = vrot.slane %v2623, 2
    %v2631 = vsel %vm534, %v2628, %v2630
    %2632 = vrot.lane.b32.xlu0 %v2629, 127
    %v2633 = vpop.permute.xlu0 %2632
    %2634 = vrot.lane.b32.xlu0 %v2631, 127
    %v2635 = vpop.permute.xlu0 %2634
    %v2638 = vadd.f32 %v2554, %v2633
    %v2639 = vadd.f32 %v2555, %v2635
    %s2640 = sld [smem:[#allocation14 + $0x3f]]
    %v2641 = vstv %s2640
    %v2642 = vmul.f32 %v2641, %v2274
    %v2643 = vmul.f32 %v2641, %v2275
    %v2644 = vmul.f32 %v2641, %v2276
    %v2648 = vrot.slane %v2642, 2
    %v2649 = vrot.slane %v2643, 2
    %v2650 = vsel %vm534, %v2648, %v2649
    %v2651 = vrot.slane %v2644, 2
    %v2652 = vsel %vm534, %v2649, %v2651
    %2653 = vrot.lane.b32.xlu0 %v2650, 127
    %v2654 = vpop.permute.xlu0 %2653
    %2655 = vrot.lane.b32.xlu0 %v2652, 127
    %v2656 = vpop.permute.xlu0 %2655
    %v2659 = vadd.f32 %v2575, %v2654
    %v2660 = vadd.f32 %v2576, %v2656
    %s2661 = sld [smem:[#allocation11 + $0x16]]
    %v2662 = vstv %s2661
    %v2663 = vmul.f32 %v2662, %v2271
    %v2664 = vmul.f32 %v2662, %v2272
    %2667 = vrot.lane.b32.xlu0 %v2663, 126
    %v2668 = vpop.permute.xlu0 %2667
    %2669 = vrot.lane.b32.xlu0 %v2664, 126
    %v2670 = vpop.permute.xlu0 %2669
    %v2673 = vadd.f32 %v2596, %v2668
    %v2674 = vadd.f32 %v2597, %v2670
    %s2675 = sld [smem:[#allocation14 + $0x16]]
    %v2676 = vstv %s2675
    %v2677 = vmul.f32 %v2676, %v2274
    %v2678 = vmul.f32 %v2676, %v2275
    %2681 = vrot.lane.b32.xlu0 %v2677, 126
    %v2682 = vpop.permute.xlu0 %2681
    %2683 = vrot.lane.b32.xlu0 %v2678, 126
    %v2684 = vpop.permute.xlu0 %2683
    %v2687 = vadd.f32 %v2617, %v2682
    %v2688 = vadd.f32 %v2618, %v2684
    %s2689 = sld [smem:[#allocation11 + $0x17]]
    %v2690 = vstv %s2689
    %v2691 = vmul.f32 %v2690, %v2271
    %v2692 = vmul.f32 %v2690, %v2272
    %2695 = vrot.lane.b32.xlu0 %v2691, 126
    %v2696 = vpop.permute.xlu0 %2695
    %2697 = vrot.lane.b32.xlu0 %v2692, 126
    %v2698 = vpop.permute.xlu0 %2697
    %v2701 = vadd.f32 %v2638, %v2696
    %v2702 = vadd.f32 %v2639, %v2698
    %s2703 = sld [smem:[#allocation14 + $0x17]]
    %v2704 = vstv %s2703
    %v2705 = vmul.f32 %v2704, %v2274
    %v2706 = vmul.f32 %v2704, %v2275
    %2709 = vrot.lane.b32.xlu0 %v2705, 126
    %v2710 = vpop.permute.xlu0 %2709
    %2711 = vrot.lane.b32.xlu0 %v2706, 126
    %v2712 = vpop.permute.xlu0 %2711
    %v2715 = vadd.f32 %v2659, %v2710
    %v2716 = vadd.f32 %v2660, %v2712
    %s2717 = sld [smem:[#allocation11 + $0x2e]]
    %v2718 = vstv %s2717
    %v2719 = vmul.f32 %v2718, %v2271
    %v2720 = vmul.f32 %v2718, %v2272
    %v2721 = vmul.f32 %v2718, %v2273
    %v2725 = vrot.slane %v2719, 1
    %v2726 = vrot.slane %v2720, 1
    %v2727 = vsel %vm465, %v2725, %v2726
    %v2728 = vrot.slane %v2721, 1
    %v2729 = vsel %vm465, %v2726, %v2728
    %2730 = vrot.lane.b32.xlu0 %v2727, 126
    %v2731 = vpop.permute.xlu0 %2730
    %2732 = vrot.lane.b32.xlu0 %v2729, 126
    %v2733 = vpop.permute.xlu0 %2732
    %v2736 = vadd.f32 %v2673, %v2731
    %v2737 = vadd.f32 %v2674, %v2733
    %s2738 = sld [smem:[#allocation14 + $0x2e]]
    %v2739 = vstv %s2738
    %v2740 = vmul.f32 %v2739, %v2274
    %v2741 = vmul.f32 %v2739, %v2275
    %v2742 = vmul.f32 %v2739, %v2276
    %v2746 = vrot.slane %v2740, 1
    %v2747 = vrot.slane %v2741, 1
    %v2748 = vsel %vm465, %v2746, %v2747
    %v2749 = vrot.slane %v2742, 1
    %v2750 = vsel %vm465, %v2747, %v2749
    %2751 = vrot.lane.b32.xlu0 %v2748, 126
    %v2752 = vpop.permute.xlu0 %2751
    %2753 = vrot.lane.b32.xlu0 %v2750, 126
    %v2754 = vpop.permute.xlu0 %2753
    %v2757 = vadd.f32 %v2687, %v2752
    %v2758 = vadd.f32 %v2688, %v2754
    %s2759 = sld [smem:[#allocation11 + $0x2f]]
    %v2760 = vstv %s2759
    %v2761 = vmul.f32 %v2760, %v2271
    %v2762 = vmul.f32 %v2760, %v2272
    %v2763 = vmul.f32 %v2760, %v2273
    %v2767 = vrot.slane %v2761, 1
    %v2768 = vrot.slane %v2762, 1
    %v2769 = vsel %vm465, %v2767, %v2768
    %v2770 = vrot.slane %v2763, 1
    %v2771 = vsel %vm465, %v2768, %v2770
    %2772 = vrot.lane.b32.xlu0 %v2769, 126
    %v2773 = vpop.permute.xlu0 %2772
    %2774 = vrot.lane.b32.xlu0 %v2771, 126
    %v2775 = vpop.permute.xlu0 %2774
    %v2778 = vadd.f32 %v2701, %v2773
    %v2779 = vadd.f32 %v2702, %v2775
    %s2780 = sld [smem:[#allocation14 + $0x2f]]
    %v2781 = vstv %s2780
    %v2782 = vmul.f32 %v2781, %v2274
    %v2783 = vmul.f32 %v2781, %v2275
    %v2784 = vmul.f32 %v2781, %v2276
    %v2788 = vrot.slane %v2782, 1
    %v2789 = vrot.slane %v2783, 1
    %v2790 = vsel %vm465, %v2788, %v2789
    %v2791 = vrot.slane %v2784, 1
    %v2792 = vsel %vm465, %v2789, %v2791
    %2793 = vrot.lane.b32.xlu0 %v2790, 126
    %v2794 = vpop.permute.xlu0 %2793
    %2795 = vrot.lane.b32.xlu0 %v2792, 126
    %v2796 = vpop.permute.xlu0 %2795
    %v2799 = vadd.f32 %v2715, %v2794
    %v2800 = vadd.f32 %v2716, %v2796
    %s2801 = sld [smem:[#allocation11 + $0x46]]
    %v2802 = vstv %s2801
    %v2803 = vmul.f32 %v2802, %v2271
    %v2804 = vmul.f32 %v2802, %v2272
    %v2805 = vmul.f32 %v2802, %v2273
    %v2809 = vrot.slane %v2803, 2
    %v2810 = vrot.slane %v2804, 2
    %v2811 = vsel %vm534, %v2809, %v2810
    %v2812 = vrot.slane %v2805, 2
    %v2813 = vsel %vm534, %v2810, %v2812
    %2814 = vrot.lane.b32.xlu0 %v2811, 126
    %v2815 = vpop.permute.xlu0 %2814
    %2816 = vrot.lane.b32.xlu0 %v2813, 126
    %v2817 = vpop.permute.xlu0 %2816
    %v2820 = vadd.f32 %v2736, %v2815
    %v2821 = vadd.f32 %v2737, %v2817
    %s2822 = sld [smem:[#allocation14 + $0x46]]
    %v2823 = vstv %s2822
    %v2824 = vmul.f32 %v2823, %v2274
    %v2825 = vmul.f32 %v2823, %v2275
    %v2826 = vmul.f32 %v2823, %v2276
    %v2830 = vrot.slane %v2824, 2
    %v2831 = vrot.slane %v2825, 2
    %v2832 = vsel %vm534, %v2830, %v2831
    %v2833 = vrot.slane %v2826, 2
    %v2834 = vsel %vm534, %v2831, %v2833
    %2835 = vrot.lane.b32.xlu0 %v2832, 126
    %v2836 = vpop.permute.xlu0 %2835
    %2837 = vrot.lane.b32.xlu0 %v2834, 126
    %v2838 = vpop.permute.xlu0 %2837
    %v2841 = vadd.f32 %v2757, %v2836
    %v2842 = vadd.f32 %v2758, %v2838
    %s2843 = sld [smem:[#allocation11 + $0x47]]
    %v2844 = vstv %s2843
    %v2845 = vmul.f32 %v2844, %v2271
    %v2846 = vmul.f32 %v2844, %v2272
    %v2847 = vmul.f32 %v2844, %v2273
    %v2851 = vrot.slane %v2845, 2
    %v2852 = vrot.slane %v2846, 2
    %v2853 = vsel %vm534, %v2851, %v2852
    %v2854 = vrot.slane %v2847, 2
    %v2855 = vsel %vm534, %v2852, %v2854
    %2856 = vrot.lane.b32.xlu0 %v2853, 126
    %v2857 = vpop.permute.xlu0 %2856
    %2858 = vrot.lane.b32.xlu0 %v2855, 126
    %v2859 = vpop.permute.xlu0 %2858
    %v2862 = vadd.f32 %v2778, %v2857
    %v2863 = vadd.f32 %v2779, %v2859
    %s2864 = sld [smem:[#allocation14 + $0x47]]
    %v2865 = vstv %s2864
    %v2866 = vmul.f32 %v2865, %v2274
    %v2867 = vmul.f32 %v2865, %v2275
    %v2868 = vmul.f32 %v2865, %v2276
    %v2872 = vrot.slane %v2866, 2
    %v2873 = vrot.slane %v2867, 2
    %v2874 = vsel %vm534, %v2872, %v2873
    %v2875 = vrot.slane %v2868, 2
    %v2876 = vsel %vm534, %v2873, %v2875
    %2877 = vrot.lane.b32.xlu0 %v2874, 126
    %v2878 = vpop.permute.xlu0 %2877
    %2879 = vrot.lane.b32.xlu0 %v2876, 126
    %v2880 = vpop.permute.xlu0 %2879
    %v2883 = vadd.f32 %v2799, %v2878
    %v2884 = vadd.f32 %v2800, %v2880
    %s2885 = sld [smem:[#allocation20]]
    %v2886 = vstv %s2885
    %v2887 = vadd.f32 %v2886, 0.0
    %s2888 = sld [smem:[#allocation17]]
    %v2889 = vstv %s2888
    %v2890 = vmul.f32 %v2889, %v2820
    %v2891 = vmul.f32 %v2889, %v2821
    %v2892 = vadd.f32 %v2887, %v2890
    %v2893 = vadd.f32 %v2887, %v2891
    %s2894 = sld [smem:[#allocation17 + $0x1]]
    %v2895 = vstv %s2894
    %v2896 = vmul.f32 %v2895, %v2862
    %v2897 = vmul.f32 %v2895, %v2863
    %v2898 = vadd.f32 %v2892, %v2896
    %v2899 = vadd.f32 %v2893, %v2897
    %s2900 = sld [smem:[#allocation17 + $0x2]]
    %v2901 = vstv %s2900
    %v2902 = vmul.f32 %v2901, %v2841
    %v2903 = vmul.f32 %v2901, %v2842
    %v2904 = vadd.f32 %v2898, %v2902
    %v2905 = vadd.f32 %v2899, %v2903
    %s2906 = sld [smem:[#allocation17 + $0x3]]
    %v2907 = vstv %s2906
    %v2908 = vmul.f32 %v2907, %v2883
    %v2909 = vmul.f32 %v2907, %v2884
    %v2910 = vadd.f32 %v2904, %v2908
    %v2911 = vadd.f32 %v2905, %v2909
    %s2912 = sld [smem:[#allocation20 + $0x1]]
    %v2913 = vstv %s2912
    %v2914 = vmul.f32 %v2910, %v2913
    %v2915 = vmul.f32 %v2911, %v2913
    %s2916 = sld [smem:[#allocation20 + $0x2]]
    %v2917 = vstv %s2916
    %v2918 = vadd.f32 %v2914, %v2917
    %v2919 = vadd.f32 %v2915, %v2917
    %v2920 = vmax.f32 %v2820, %v2862
    %v2921 = vmax.f32 %v2821, %v2863
    %v2922 = vadd.f32 %v2820, %v2862
    %v2923 = vadd.f32 %v2821, %v2863
    %v2924 = vmax.f32 %v2920, %v2841
    %v2925 = vmax.f32 %v2921, %v2842
    %v2926 = vadd.f32 %v2922, %v2841
    %v2927 = vadd.f32 %v2923, %v2842
    %v2928 = vmax.f32 %v2924, %v2883
    %v2929 = vmax.f32 %v2925, %v2884
    %v2930 = vadd.f32 %v2926, %v2883
    %v2931 = vadd.f32 %v2927, %v2884
    %v2932 = vmul.f32 %v2930, 0.25
    %v2933 = vmul.f32 %v2931, 0.25
    %v2934 = vmul.f32 %v2918, %v414
    %v2935 = vmul.f32 %v2919, %v414
    %2938 = vrot.lane.b32.xlu0 %v2934, 1
    %v2939 = vpop.permute.xlu0 %2938
    %2940 = vrot.lane.b32.xlu0 %v2935, 1
    %v2941 = vpop.permute.xlu0 %2940
    %vm2944 = vcmask 285704
    %2945 = vst.msk [vmem:[#allocation4 + $0x1] sm:$0xff] %vm2944, %v2939
    %2946 = vst.msk [vmem:[#allocation4 + $0x9] sm:$0xff] %vm2944, %v2941
    %v2947 = vmul.f32 %v2928, %v414
    %v2948 = vmul.f32 %v2929, %v414
    %2951 = vrot.lane.b32.xlu0 %v2947, 1
    %v2952 = vpop.permute.xlu0 %2951
    %2953 = vrot.lane.b32.xlu0 %v2948, 1
    %v2954 = vpop.permute.xlu0 %2953
    %s2957 = scalar_lea.vmem [#allocation4], 24
    %2958 = vst.msk [vmem:[%s2957 + $0x1] sm:$0xff] %vm2944, %v2952
    %2959 = vst.msk [vmem:[%s2957 + $0x9] sm:$0xff] %vm2944, %v2954
    %v2960 = vmul.f32 %v2932, %v414
    %v2961 = vmul.f32 %v2933, %v414
    %2964 = vrot.lane.b32.xlu0 %v2960, 1
    %v2965 = vpop.permute.xlu0 %2964
    %2966 = vrot.lane.b32.xlu0 %v2961, 1
    %v2967 = vpop.permute.xlu0 %2966
    %s2970 = scalar_lea.vmem [#allocation4], 48
    %2971 = vst.msk [vmem:[%s2970 + $0x1] sm:$0xff] %vm2944, %v2965
    %2972 = vst.msk [vmem:[%s2970 + $0x9] sm:$0xff] %vm2944, %v2967
    %s2973 = sld [smem:[#allocation20 + $0x3]]
    %v2974 = vstv %s2973
    %v2975 = vadd.f32 %v2974, 0.0
    %v2976 = vld [vmem:[#allocation4] sm:$0xff]
    %v2977 = vld [vmem:[#allocation4 + $0x8] sm:$0xff]
    %v2978 = vld [vmem:[#allocation4 + $0x10] sm:$0x3]
    %s2979 = sld [smem:[#allocation18]]
    %v2980 = vstv %s2979
    %v2981 = vmul.f32 %v2980, %v2976
    %v2982 = vmul.f32 %v2980, %v2977
    %v2983 = vadd.f32 %v2975, %v2981
    %v2984 = vadd.f32 %v2975, %v2982
    %s2985 = sld [smem:[#allocation18 + $0x9]]
    %v2986 = vstv %s2985
    %v2987 = vmul.f32 %v2986, %v2976
    %v2988 = vmul.f32 %v2986, %v2977
    %v2989 = vmul.f32 %v2986, %v2978
    %v2993 = vrot.slane %v2987, 1
    %v2994 = vrot.slane %v2988, 1
    %v2995 = vsel %vm465, %v2993, %v2994
    %v2996 = vrot.slane %v2989, 1
    %v2997 = vsel %vm465, %v2994, %v2996
    %v3000 = vadd.f32 %v2983, %v2995
    %v3001 = vadd.f32 %v2984, %v2997
    %s3002 = sld [smem:[#allocation18 + $0x12]]
    %v3003 = vstv %s3002
    %v3004 = vmul.f32 %v3003, %v2976
    %v3005 = vmul.f32 %v3003, %v2977
    %v3006 = vmul.f32 %v3003, %v2978
    %v3010 = vrot.slane %v3004, 2
    %v3011 = vrot.slane %v3005, 2
    %v3012 = vsel %vm534, %v3010, %v3011
    %v3013 = vrot.slane %v3006, 2
    %v3014 = vsel %vm534, %v3011, %v3013
    %v3017 = vadd.f32 %v3000, %v3012
    %v3018 = vadd.f32 %v3001, %v3014
    %s3019 = sld [smem:[#allocation18 + $0x3]]
    %v3020 = vstv %s3019
    %v3021 = vmul.f32 %v3020, %v2976
    %v3022 = vmul.f32 %v3020, %v2977
    %3025 = vrot.lane.b32.xlu0 %v3021, 127
    %v3026 = vpop.permute.xlu0 %3025
    %3027 = vrot.lane.b32.xlu0 %v3022, 127
    %v3028 = vpop.permute.xlu0 %3027
    %v3031 = vadd.f32 %v3017, %v3026
    %v3032 = vadd.f32 %v3018, %v3028
    %s3033 = sld [smem:[#allocation18 + $0xc]]
    %v3034 = vstv %s3033
    %v3035 = vmul.f32 %v3034, %v2976
    %v3036 = vmul.f32 %v3034, %v2977
    %v3037 = vmul.f32 %v3034, %v2978
    %v3041 = vrot.slane %v3035, 1
    %v3042 = vrot.slane %v3036, 1
    %v3043 = vsel %vm465, %v3041, %v3042
    %v3044 = vrot.slane %v3037, 1
    %v3045 = vsel %vm465, %v3042, %v3044
    %3046 = vrot.lane.b32.xlu0 %v3043, 127
    %v3047 = vpop.permute.xlu0 %3046
    %3048 = vrot.lane.b32.xlu0 %v3045, 127
    %v3049 = vpop.permute.xlu0 %3048
    %v3052 = vadd.f32 %v3031, %v3047
    %v3053 = vadd.f32 %v3032, %v3049
    %s3054 = sld [smem:[#allocation18 + $0x15]]
    %v3055 = vstv %s3054
    %v3056 = vmul.f32 %v3055, %v2976
    %v3057 = vmul.f32 %v3055, %v2977
    %v3058 = vmul.f32 %v3055, %v2978
    %v3062 = vrot.slane %v3056, 2
    %v3063 = vrot.slane %v3057, 2
    %v3064 = vsel %vm534, %v3062, %v3063
    %v3065 = vrot.slane %v3058, 2
    %v3066 = vsel %vm534, %v3063, %v3065
    %3067 = vrot.lane.b32.xlu0 %v3064, 127
    %v3068 = vpop.permute.xlu0 %3067
    %3069 = vrot.lane.b32.xlu0 %v3066, 127
    %v3070 = vpop.permute.xlu0 %3069
    %v3073 = vadd.f32 %v3052, %v3068
    %v3074 = vadd.f32 %v3053, %v3070
    %s3075 = sld [smem:[#allocation18 + $0x6]]
    %v3076 = vstv %s3075
    %v3077 = vmul.f32 %v3076, %v2976
    %v3078 = vmul.f32 %v3076, %v2977
    %3081 = vrot.lane.b32.xlu0 %v3077, 126
    %v3082 = vpop.permute.xlu0 %3081
    %3083 = vrot.lane.b32.xlu0 %v3078, 126
    %v3084 = vpop.permute.xlu0 %3083
    %v3087 = vadd.f32 %v3073, %v3082
    %v3088 = vadd.f32 %v3074, %v3084
    %s3089 = sld [smem:[#allocation18 + $0xf]]
    %v3090 = vstv %s3089
    %v3091 = vmul.f32 %v3090, %v2976
    %v3092 = vmul.f32 %v3090, %v2977
    %v3093 = vmul.f32 %v3090, %v2978
    %v3097 = vrot.slane %v3091, 1
    %v3098 = vrot.slane %v3092, 1
    %v3099 = vsel %vm465, %v3097, %v3098
    %v3100 = vrot.slane %v3093, 1
    %v3101 = vsel %vm465, %v3098, %v3100
    %3102 = vrot.lane.b32.xlu0 %v3099, 126
    %v3103 = vpop.permute.xlu0 %3102
    %3104 = vrot.lane.b32.xlu0 %v3101, 126
    %v3105 = vpop.permute.xlu0 %3104
    %v3108 = vadd.f32 %v3087, %v3103
    %v3109 = vadd.f32 %v3088, %v3105
    %s3110 = sld [smem:[#allocation18 + $0x18]]
    %v3111 = vstv %s3110
    %v3112 = vmul.f32 %v3111, %v2976
    %v3113 = vmul.f32 %v3111, %v2977
    %v3114 = vmul.f32 %v3111, %v2978
    %v3118 = vrot.slane %v3112, 2
    %v3119 = vrot.slane %v3113, 2
    %v3120 = vsel %vm534, %v3118, %v3119
    %v3121 = vrot.slane %v3114, 2
    %v3122 = vsel %vm534, %v3119, %v3121
    %3123 = vrot.lane.b32.xlu0 %v3120, 126
    %v3124 = vpop.permute.xlu0 %3123
    %3125 = vrot.lane.b32.xlu0 %v3122, 126
    %v3126 = vpop.permute.xlu0 %3125
    %v3129 = vadd.f32 %v3108, %v3124
    %v3130 = vadd.f32 %v3109, %v3126
    %v3131 = vld [vmem:[%s2957] sm:$0xff]
    %v3132 = vld [vmem:[%s2957 + $0x8] sm:$0xff]
    %v3133 = vld [vmem:[%s2957 + $0x10] sm:$0x3]
    %s3134 = sld [smem:[#allocation18 + $0x1]]
    %v3135 = vstv %s3134
    %v3136 = vmul.f32 %v3135, %v3131
    %v3137 = vmul.f32 %v3135, %v3132
    %v3138 = vadd.f32 %v3129, %v3136
    %v3139 = vadd.f32 %v3130, %v3137
    %s3140 = sld [smem:[#allocation18 + $0xa]]
    %v3141 = vstv %s3140
    %v3142 = vmul.f32 %v3141, %v3131
    %v3143 = vmul.f32 %v3141, %v3132
    %v3144 = vmul.f32 %v3141, %v3133
    %v3148 = vrot.slane %v3142, 1
    %v3149 = vrot.slane %v3143, 1
    %v3150 = vsel %vm465, %v3148, %v3149
    %v3151 = vrot.slane %v3144, 1
    %v3152 = vsel %vm465, %v3149, %v3151
    %v3155 = vadd.f32 %v3138, %v3150
    %v3156 = vadd.f32 %v3139, %v3152
    %s3157 = sld [smem:[#allocation18 + $0x13]]
    %v3158 = vstv %s3157
    %v3159 = vmul.f32 %v3158, %v3131
    %v3160 = vmul.f32 %v3158, %v3132
    %v3161 = vmul.f32 %v3158, %v3133
    %v3165 = vrot.slane %v3159, 2
    %v3166 = vrot.slane %v3160, 2
    %v3167 = vsel %vm534, %v3165, %v3166
    %v3168 = vrot.slane %v3161, 2
    %v3169 = vsel %vm534, %v3166, %v3168
    %v3172 = vadd.f32 %v3155, %v3167
    %v3173 = vadd.f32 %v3156, %v3169
    %s3174 = sld [smem:[#allocation18 + $0x4]]
    %v3175 = vstv %s3174
    %v3176 = vmul.f32 %v3175, %v3131
    %v3177 = vmul.f32 %v3175, %v3132
    %3180 = vrot.lane.b32.xlu0 %v3176, 127
    %v3181 = vpop.permute.xlu0 %3180
    %3182 = vrot.lane.b32.xlu0 %v3177, 127
    %v3183 = vpop.permute.xlu0 %3182
    %v3186 = vadd.f32 %v3172, %v3181
    %v3187 = vadd.f32 %v3173, %v3183
    %s3188 = sld [smem:[#allocation18 + $0xd]]
    %v3189 = vstv %s3188
    %v3190 = vmul.f32 %v3189, %v3131
    %v3191 = vmul.f32 %v3189, %v3132
    %v3192 = vmul.f32 %v3189, %v3133
    %v3196 = vrot.slane %v3190, 1
    %v3197 = vrot.slane %v3191, 1
    %v3198 = vsel %vm465, %v3196, %v3197
    %v3199 = vrot.slane %v3192, 1
    %v3200 = vsel %vm465, %v3197, %v3199
    %3201 = vrot.lane.b32.xlu0 %v3198, 127
    %v3202 = vpop.permute.xlu0 %3201
    %3203 = vrot.lane.b32.xlu0 %v3200, 127
    %v3204 = vpop.permute.xlu0 %3203
    %v3207 = vadd.f32 %v3186, %v3202
    %v3208 = vadd.f32 %v3187, %v3204
    %s3209 = sld [smem:[#allocation18 + $0x16]]
    %v3210 = vstv %s3209
    %v3211 = vmul.f32 %v3210, %v3131
    %v3212 = vmul.f32 %v3210, %v3132
    %v3213 = vmul.f32 %v3210, %v3133
    %v3217 = vrot.slane %v3211, 2
    %v3218 = vrot.slane %v3212, 2
    %v3219 = vsel %vm534, %v3217, %v3218
    %v3220 = vrot.slane %v3213, 2
    %v3221 = vsel %vm534, %v3218, %v3220
    %3222 = vrot.lane.b32.xlu0 %v3219, 127
    %v3223 = vpop.permute.xlu0 %3222
    %3224 = vrot.lane.b32.xlu0 %v3221, 127
    %v3225 = vpop.permute.xlu0 %3224
    %v3228 = vadd.f32 %v3207, %v3223
    %v3229 = vadd.f32 %v3208, %v3225
    %s3230 = sld [smem:[#allocation18 + $0x7]]
    %v3231 = vstv %s3230
    %v3232 = vmul.f32 %v3231, %v3131
    %v3233 = vmul.f32 %v3231, %v3132
    %3236 = vrot.lane.b32.xlu0 %v3232, 126
    %v3237 = vpop.permute.xlu0 %3236
    %3238 = vrot.lane.b32.xlu0 %v3233, 126
    %v3239 = vpop.permute.xlu0 %3238
    %v3242 = vadd.f32 %v3228, %v3237
    %v3243 = vadd.f32 %v3229, %v3239
    %s3244 = sld [smem:[#allocation18 + $0x10]]
    %v3245 = vstv %s3244
    %v3246 = vmul.f32 %v3245, %v3131
    %v3247 = vmul.f32 %v3245, %v3132
    %v3248 = vmul.f32 %v3245, %v3133
    %v3252 = vrot.slane %v3246, 1
    %v3253 = vrot.slane %v3247, 1
    %v3254 = vsel %vm465, %v3252, %v3253
    %v3255 = vrot.slane %v3248, 1
    %v3256 = vsel %vm465, %v3253, %v3255
    %3257 = vrot.lane.b32.xlu0 %v3254, 126
    %v3258 = vpop.permute.xlu0 %3257
    %3259 = vrot.lane.b32.xlu0 %v3256, 126
    %v3260 = vpop.permute.xlu0 %3259
    %v3263 = vadd.f32 %v3242, %v3258
    %v3264 = vadd.f32 %v3243, %v3260
    %s3265 = sld [smem:[#allocation18 + $0x19]]
    %v3266 = vstv %s3265
    %v3267 = vmul.f32 %v3266, %v3131
    %v3268 = vmul.f32 %v3266, %v3132
    %v3269 = vmul.f32 %v3266, %v3133
    %v3273 = vrot.slane %v3267, 2
    %v3274 = vrot.slane %v3268, 2
    %v3275 = vsel %vm534, %v3273, %v3274
    %v3276 = vrot.slane %v3269, 2
    %v3277 = vsel %vm534, %v3274, %v3276
    %3278 = vrot.lane.b32.xlu0 %v3275, 126
    %v3279 = vpop.permute.xlu0 %3278
    %3280 = vrot.lane.b32.xlu0 %v3277, 126
    %v3281 = vpop.permute.xlu0 %3280
    %v3284 = vadd.f32 %v3263, %v3279
    %v3285 = vadd.f32 %v3264, %v3281
    %v3286 = vld [vmem:[%s2970] sm:$0xff]
    %v3287 = vld [vmem:[%s2970 + $0x8] sm:$0xff]
    %v3288 = vld [vmem:[%s2970 + $0x10] sm:$0x3]
    %s3289 = sld [smem:[#allocation18 + $0x2]]
    %v3290 = vstv %s3289
    %v3291 = vmul.f32 %v3290, %v3286
    %v3292 = vmul.f32 %v3290, %v3287
    %v3293 = vadd.f32 %v3284, %v3291
    %v3294 = vadd.f32 %v3285, %v3292
    %s3295 = sld [smem:[#allocation18 + $0xb]]
    %v3296 = vstv %s3295
    %v3297 = vmul.f32 %v3296, %v3286
    %v3298 = vmul.f32 %v3296, %v3287
    %v3299 = vmul.f32 %v3296, %v3288
    %v3303 = vrot.slane %v3297, 1
    %v3304 = vrot.slane %v3298, 1
    %v3305 = vsel %vm465, %v3303, %v3304
    %v3306 = vrot.slane %v3299, 1
    %v3307 = vsel %vm465, %v3304, %v3306
    %v3310 = vadd.f32 %v3293, %v3305
    %v3311 = vadd.f32 %v3294, %v3307
    %s3312 = sld [smem:[#allocation18 + $0x14]]
    %v3313 = vstv %s3312
    %v3314 = vmul.f32 %v3313, %v3286
    %v3315 = vmul.f32 %v3313, %v3287
    %v3316 = vmul.f32 %v3313, %v3288
    %v3320 = vrot.slane %v3314, 2
    %v3321 = vrot.slane %v3315, 2
    %v3322 = vsel %vm534, %v3320, %v3321
    %v3323 = vrot.slane %v3316, 2
    %v3324 = vsel %vm534, %v3321, %v3323
    %v3327 = vadd.f32 %v3310, %v3322
    %v3328 = vadd.f32 %v3311, %v3324
    %s3329 = sld [smem:[#allocation18 + $0x5]]
    %v3330 = vstv %s3329
    %v3331 = vmul.f32 %v3330, %v3286
    %v3332 = vmul.f32 %v3330, %v3287
    %3335 = vrot.lane.b32.xlu0 %v3331, 127
    %v3336 = vpop.permute.xlu0 %3335
    %3337 = vrot.lane.b32.xlu0 %v3332, 127
    %v3338 = vpop.permute.xlu0 %3337
    %v3341 = vadd.f32 %v3327, %v3336
    %v3342 = vadd.f32 %v3328, %v3338
    %s3343 = sld [smem:[#allocation18 + $0xe]]
    %v3344 = vstv %s3343
    %v3345 = vmul.f32 %v3344, %v3286
    %v3346 = vmul.f32 %v3344, %v3287
    %v3347 = vmul.f32 %v3344, %v3288
    %v3351 = vrot.slane %v3345, 1
    %v3352 = vrot.slane %v3346, 1
    %v3353 = vsel %vm465, %v3351, %v3352
    %v3354 = vrot.slane %v3347, 1
    %v3355 = vsel %vm465, %v3352, %v3354
    %3356 = vrot.lane.b32.xlu0 %v3353, 127
    %v3357 = vpop.permute.xlu0 %3356
    %3358 = vrot.lane.b32.xlu0 %v3355, 127
    %v3359 = vpop.permute.xlu0 %3358
    %v3362 = vadd.f32 %v3341, %v3357
    %v3363 = vadd.f32 %v3342, %v3359
    %s3364 = sld [smem:[#allocation18 + $0x17]]
    %v3365 = vstv %s3364
    %v3366 = vmul.f32 %v3365, %v3286
    %v3367 = vmul.f32 %v3365, %v3287
    %v3368 = vmul.f32 %v3365, %v3288
    %v3372 = vrot.slane %v3366, 2
    %v3373 = vrot.slane %v3367, 2
    %v3374 = vsel %vm534, %v3372, %v3373
    %v3375 = vrot.slane %v3368, 2
    %v3376 = vsel %vm534, %v3373, %v3375
    %3377 = vrot.lane.b32.xlu0 %v3374, 127
    %v3378 = vpop.permute.xlu0 %3377
    %3379 = vrot.lane.b32.xlu0 %v3376, 127
    %v3380 = vpop.permute.xlu0 %3379
    %v3383 = vadd.f32 %v3362, %v3378
    %v3384 = vadd.f32 %v3363, %v3380
    %s3385 = sld [smem:[#allocation18 + $0x8]]
    %v3386 = vstv %s3385
    %v3387 = vmul.f32 %v3386, %v3286
    %v3388 = vmul.f32 %v3386, %v3287
    %3391 = vrot.lane.b32.xlu0 %v3387, 126
    %v3392 = vpop.permute.xlu0 %3391
    %3393 = vrot.lane.b32.xlu0 %v3388, 126
    %v3394 = vpop.permute.xlu0 %3393
    %v3397 = vadd.f32 %v3383, %v3392
    %v3398 = vadd.f32 %v3384, %v3394
    %s3399 = sld [smem:[#allocation18 + $0x11]]
    %v3400 = vstv %s3399
    %v3401 = vmul.f32 %v3400, %v3286
    %v3402 = vmul.f32 %v3400, %v3287
    %v3403 = vmul.f32 %v3400, %v3288
    %v3407 = vrot.slane %v3401, 1
    %v3408 = vrot.slane %v3402, 1
    %v3409 = vsel %vm465, %v3407, %v3408
    %v3410 = vrot.slane %v3403, 1
    %v3411 = vsel %vm465, %v3408, %v3410
    %3412 = vrot.lane.b32.xlu0 %v3409, 126
    %v3413 = vpop.permute.xlu0 %3412
    %3414 = vrot.lane.b32.xlu0 %v3411, 126
    %v3415 = vpop.permute.xlu0 %3414
    %v3418 = vadd.f32 %v3397, %v3413
    %v3419 = vadd.f32 %v3398, %v3415
    %s3420 = sld [smem:[#allocation18 + $0x1a]]
    %v3421 = vstv %s3420
    %v3422 = vmul.f32 %v3421, %v3286
    %v3423 = vmul.f32 %v3421, %v3287
    %v3424 = vmul.f32 %v3421, %v3288
    %v3428 = vrot.slane %v3422, 2
    %v3429 = vrot.slane %v3423, 2
    %v3430 = vsel %vm534, %v3428, %v3429
    %v3431 = vrot.slane %v3424, 2
    %v3432 = vsel %vm534, %v3429, %v3431
    %3433 = vrot.lane.b32.xlu0 %v3430, 126
    %v3434 = vpop.permute.xlu0 %3433
    %3435 = vrot.lane.b32.xlu0 %v3432, 126
    %v3436 = vpop.permute.xlu0 %3435
    %v3439 = vadd.f32 %v3418, %v3434
    %v3440 = vadd.f32 %v3419, %v3436
    %v3441 = vxor.u32 %v3439, 2147483648
    %v3442 = vxor.u32 %v3440, 2147483648
    %v3443 = vmul.f32 %v3441, 1.442695
    %v3444 = vpow.pop %v3443
    %v3445 = vmul.f32 %v3442, 1.442695
    %v3446 = vpow.pop %v3445
    %v3447 = vadd.f32 %v3444, 1.0
    %v3448 = vadd.f32 %v3446, 1.0
    %v3449 = vrcp.pop %v3447
    %v3450 = vmul.f32 1.0, %v3449
    %v3451 = vrcp.pop %v3448
    %v3452 = vmul.f32 1.0, %v3451
    %s3453 = sld [smem:[#allocation20 + $0x4]]
    %v3454 = vstv %s3453
    %v3455 = vmul.f32 %v3454, %v3450
    %v3456 = vmul.f32 %v3454, %v3452
    %v3457 = vadd.f32 %v3455, 1.0
    %v3458 = vadd.f32 %v3456, 1.0
    %s3459 = sld [smem:[#allocation20 + $0x5]]
    %v3460 = vstv %s3459
    %v3461 = vmul.f32 %v3460, %v3450
    %v3462 = vmul.f32 %v3460, %v3452
    %v3463 = vadd.f32 %v3461, 1.0
    %v3464 = vadd.f32 %v3462, 1.0
    %v3465 = vmul.f32 %v3457, %v2820
    %v3466 = vmul.f32 %v3458, %v2821
    %v3467 = vmul.f32 %v3457, %v2862
    %v3468 = vmul.f32 %v3458, %v2863
    %v3469 = vmul.f32 %v3463, %v2841
    %v3470 = vmul.f32 %v3464, %v2842
    %v3471 = vmul.f32 %v3463, %v2883
    %v3472 = vmul.f32 %v3464, %v2884
    %vm3473 = vcmask 130048
    %3474 = vst.msk [vmem:[#allocation21] sm:$0xff] %vm3473, %v3465
    %3475 = vst.msk [vmem:[#allocation21 + $0x8] sm:$0xff] %vm3473, %v3466
    %s3476 = scalar_lea.vmem [#allocation21], 32
    %3477 = vst.msk [vmem:[%s3476] sm:$0xff] %vm3473, %v3469
    %3478 = vst.msk [vmem:[%s3476 + $0x8] sm:$0xff] %vm3473, %v3470
    %s3479 = scalar_lea.vmem [#allocation21], 16
    %3480 = vst.msk [vmem:[%s3479] sm:$0xff] %vm3473, %v3467
    %3481 = vst.msk [vmem:[%s3479 + $0x8] sm:$0xff] %vm3473, %v3468
    %s3482 = scalar_lea.vmem [#allocation21], 48
    %3483 = vst.msk [vmem:[%s3482] sm:$0xff] %vm3473, %v3471
    %3484 = vst.msk [vmem:[%s3482 + $0x8] sm:$0xff] %vm3473, %v3472
    %3487 = vrot.lane.b32.xlu0 %v3465, 110
    %v3488 = vpop.permute.xlu0 %3487
    %3489 = vrot.lane.b32.xlu0 %v3466, 110
    %v3490 = vpop.permute.xlu0 %3489
    %s3493 = scalar_lea.vmem [#allocation21], 64
    %3494 = vst.msk [vmem:[%s3493] sm:$0xff] %vm3473, %v3488
    %3495 = vst.msk [vmem:[%s3493 + $0x8] sm:$0xff] %vm3473, %v3490
    %3498 = vrot.lane.b32.xlu0 %v3469, 110
    %v3499 = vpop.permute.xlu0 %3498
    %3500 = vrot.lane.b32.xlu0 %v3470, 110
    %v3501 = vpop.permute.xlu0 %3500
    %s3504 = scalar_lea.vmem [#allocation21], 96
    %3505 = vst.msk [vmem:[%s3504] sm:$0xff] %vm3473, %v3499
    %3506 = vst.msk [vmem:[%s3504 + $0x8] sm:$0xff] %vm3473, %v3501
    %3509 = vrot.lane.b32.xlu0 %v3467, 110
    %v3510 = vpop.permute.xlu0 %3509
    %3511 = vrot.lane.b32.xlu0 %v3468, 110
    %v3512 = vpop.permute.xlu0 %3511
    %s3515 = scalar_lea.vmem [#allocation21], 80
    %3516 = vst.msk [vmem:[%s3515] sm:$0xff] %vm3473, %v3510
    %3517 = vst.msk [vmem:[%s3515 + $0x8] sm:$0xff] %vm3473, %v3512
    %3520 = vrot.lane.b32.xlu0 %v3471, 110
    %v3521 = vpop.permute.xlu0 %3520
    %3522 = vrot.lane.b32.xlu0 %v3472, 110
    %v3523 = vpop.permute.xlu0 %3522
    %s3526 = scalar_lea.vmem [#allocation21], 112
    %3527 = vst.msk [vmem:[%s3526] sm:$0xff] %vm3473, %v3521
    %3528 = vst.msk [vmem:[%s3526 + $0x8] sm:$0xff] %vm3473, %v3523
    // Predicated region
    $region74: #{tpu_custom_call.1} parent=1 // pred_check
      _
    $region75: #{tpu_custom_call.1} parent=1 // pred_check_branch
      %3530 = sbr.rel (0) target = $region77
    $region76: #{tpu_custom_call.1} parent=1 // pred_region
      %s3532 = ssub.s32 2048, 2048
      %3533 = vsyncadd [#allocation7], %s3532
      %s3534 = sshll.u32 [#allocation21], 4
      %s3535 = int_to_ptr.vmem [resolvable:$true] %s3534
      %3540 = dma.vmem_to_hbm [thread:$0]  %s3535, 2048, %s9, [#allocation7], 128, 128, 8
    $region77: #{tpu_custom_call.1} parent=1 // pred_fallthru
      _
    // Predicated region
    $region78: #{tpu_custom_call.1} parent=1 // pred_check
      _
    $region79: #{tpu_custom_call.1} parent=1 // pred_check_branch
      %3542 = sbr.rel (0) target = $region81
    $region80: #{tpu_custom_call.1} parent=1 // pred_region
      %3543 = dma.done [#allocation7], 2048
    $region81: #{tpu_custom_call.1} parent=1 // pred_fallthru
      _
    %3544 = vsyncpa [#allocation6], 1
    %3545 = vsyncpa [#allocation10], 1
    %3546 = vsyncpa [#allocation7], 1
    %3547 = vsyncpa [#allocation8], 1
    %3548 = vsyncpa [#allocation13], 1
    %3549 = vsyncpa [#allocation16], 1
    %3550 = vsyncpa [#allocation19], 1

</llo_original>
